<compile_context>
chip_gen: v5e
topology: v5e:2x2
jax: 0.10.0
libtpu: 0.0.40
codegen_flags: <defaults>
</compile_context>

<pallas_src>
import numpy as np
import jax
import jax.numpy as jnp
from jax import lax
from jax.experimental import pallas as pl
from jax.experimental.pallas import tpu as pltpu

EMBED_SIZE = 32
HIDDEN_SIZE = 32
MONONUCLEAR = ['Joint', 'Contrast', 'TextualOrganization', 'Same-Unit']


class TreeNode:
    def __init__(self, role, rel_type, left=None, right=None):
        self.role = role
        self.rel_type = rel_type
        self.left_child = left
        self.right_child = right


def embed_index(node, embed_dict, use_relations=True):
    if node.rel_type in MONONUCLEAR and use_relations:
        return embed_dict[node.rel_type]
    elif use_relations:
        return embed_dict[node.rel_type + '_' + node.role]
    else:
        return embed_dict[node.role]


def linearize(root, embed_dict):
    """Post-order linearization of all non-root nodes.

    Returns meta = [(embed_idx, left_slot, right_slot)] and the slots of the
    root's two children.  Slot 0 is the zero sentinel (the "missing child" of a
    leaf, PyTorch's init_hidden()); the i-th processed node lands in slot i+1,
    so children always precede parents.
    """
    meta = []

    def rec(node):
        if node.left_child is None:
            l_slot, r_slot = 0, 0
        else:
            l_slot = rec(node.left_child)
            r_slot = rec(node.right_child)
        meta.append((embed_index(node, embed_dict), l_slot, r_slot))
        return len(meta)

    l_slot = rec(root.left_child)
    r_slot = rec(root.right_child)
    return meta, (l_slot, r_slot)


def build_batch(trees, embed_dict):
    """Pad per-tree post-order metadata to a common max_nodes.

    Padding entries are (embed_idx=0, l=0, r=0) "dummy leaves" that write into
    unused scratch slots, keeping the in-kernel node loop trip count static
    (hence unrollable) without affecting any real tree's result.
    """
    metas, roots = [], []
    for t in trees:
        m, rc = linearize(t, embed_dict)
        metas.append(m)
        roots.append(rc)
    max_nodes = max(len(m) for m in metas)
    meta_arr = np.zeros((len(trees), 3 * max_nodes), np.int32)
    root_arr = np.zeros((len(trees), 2), np.int32)
    for i, (m, rc) in enumerate(zip(metas, roots)):
        flat = np.asarray(m, np.int32).reshape(-1)
        meta_arr[i, :flat.size] = flat
        root_arr[i] = rc
    return jnp.asarray(meta_arr), jnp.asarray(root_arr), max_nodes


# ----------------------------- Pallas kernel ------------------------------ #
def make_tree_lstm_kernel(hidden, max_nodes, n_trees, slots, mrows, unroll):
    H = hidden
    B = n_trees

    def kernel(meta_ref, rootc_ref,            # SMEM (scalar prefetch)
               xw_ref, u_ref,                  # VMEM: Wx+b table, packed U
               rooth_ref,                      # output block (1, B, 2H)
               x_buf, lhs_buf, hc_buf):        # VMEM scratch
        s = pl.program_id(0)

        # Zero the MXU lhs staging tile once per step (rows B..mrows-1 are only
        # MXU padding) and each tree's "missing child" sentinel row.  No full
        # hc-buffer memset: every other slot is written before it is read.
        lhs_buf[...] = jnp.zeros((mrows, 4 * H), jnp.float32)
        for b in range(B):
            hc_buf[b * slots:b * slots + 1, :] = jnp.zeros((1, 2 * H), jnp.float32)

        def body(i, carry):
            base = 3 * i
            # Gather node i of every tree in this step into lane-dense tiles:
            # lhs row b = [h_l, c_l, h_r, c_r], x row b = (W x + b) for node i.
            for b in range(B):
                t = s * B + b
                e_idx = meta_ref[t, base]
                l_slot = meta_ref[t, base + 1]
                r_slot = meta_ref[t, base + 2]
                x_buf[b:b + 1, :] = xw_ref[pl.ds(e_idx, 1), :]                 # (1,5H)
                lhs_buf[b:b + 1, 0:2 * H] = hc_buf[pl.ds(b * slots + l_slot, 1), :]
                lhs_buf[b:b + 1, 2 * H:4 * H] = hc_buf[pl.ds(b * slots + r_slot, 1), :]

            lhs = lhs_buf[...]                                                 # (mrows, 4H)
            # One fused recurrent matmul for all B trees (rows of U that line
            # up with the child cell lanes are zero, so only h_l/h_r contribute).
            rec = jnp.dot(lhs, u_ref[...],
                          preferred_element_type=jnp.float32)                 # (mrows, 5H)
            pre = x_buf[...] + rec[0:B, :]                                     # (B, 5H)

            # One sigmoid over the packed [f_l, f_r, i, o] block (single EUP
            # push over 4H lanes), tanh only on the update block and the cell.
            gates = 1.0 / (1.0 + jnp.exp(-pre[:, 0:4 * H]))
            fl = gates[:, 0 * H:1 * H]
            fr = gates[:, 1 * H:2 * H]
            ig = gates[:, 2 * H:3 * H]
            og = gates[:, 3 * H:4 * H]
            ug = jnp.tanh(pre[:, 4 * H:5 * H])

            c_l = lhs[0:B, H:2 * H]
            c_r = lhs[0:B, 3 * H:4 * H]
            cell = ig * ug + fl * c_l + fr * c_r
            hid = og * jnp.tanh(cell)

            new_hc = jnp.concatenate([hid, cell], axis=1)                      # (B, 2H)
            for b in range(B):
                hc_buf[pl.ds(b * slots + i + 1, 1), :] = new_hc[b:b + 1, :]
            return carry

        lax.fori_loop(0, max_nodes, body, 0, unroll=unroll)

        # Root readout: concatenate the hidden halves of each root's two children.
        for b in range(B):
            t = s * B + b
            rl = rootc_ref[t, 0]
            rr = rootc_ref[t, 1]
            hl = hc_buf[pl.ds(b * slots + rl, 1), :]
            hr = hc_buf[pl.ds(b * slots + rr, 1), :]
            rooth_ref[0, b:b + 1, :] = jnp.concatenate([hl[:, 0:H], hr[:, 0:H]], axis=1)

    return kernel


def tree_recursive_nn_forward(meta, rootc, packed, max_nodes, trees_per_step=2):
    emb_p, w_p, b_p, u_p, wsc, bsc = packed
    H = u_p.shape[0] // 4
    T = int(meta.shape[0])
    B = int(trees_per_step)
    T_pad = ((T + B - 1) // B) * B
    if T_pad != T:   # pad with dummy trees (all-zero meta -> all-zero root_h)
        meta = jnp.concatenate(
            [meta, jnp.zeros((T_pad - T, meta.shape[1]), meta.dtype)], axis=0)
        rootc = jnp.concatenate(
            [rootc, jnp.zeros((T_pad - T, 2), rootc.dtype)], axis=0)
    num_steps = T_pad // B
    slots = ((max_nodes + 1 + 7) // 8) * 8          # node slots per tree, 8-aligned
    mrows = max(8, ((B + 7) // 8) * 8)              # MXU lhs staging rows
    unroll = True if max_nodes <= 64 else 16        # full unroll for small trees

    # Hoisted input path: W x + b for every vocab entry, computed ONCE per call
    # in XLA (exact f32), not once per grid step inside the kernel.
    xw_tbl = (jnp.dot(emb_p, w_p, precision=jax.lax.Precision.HIGHEST,
                      preferred_element_type=jnp.float32) + b_p)   # (vocab_pad, 5H)

    kernel = make_tree_lstm_kernel(H, max_nodes, B, slots, mrows, unroll)

    def full_spec(shape):                           # whole array, VMEM-resident
        return pl.BlockSpec(shape, lambda s, m, r: (0,) * len(shape))

    grid_spec = pltpu.PrefetchScalarGridSpec(
        num_scalar_prefetch=2,                      # meta, rootc -> SMEM
        grid=(num_steps,),                          # one grid step per B trees
        in_specs=[full_spec(xw_tbl.shape), full_spec(u_p.shape)],
        out_specs=pl.BlockSpec((1, B, 2 * H), lambda s, m, r: (s, 0, 0)),
        scratch_shapes=[pltpu.VMEM((B, 5 * H), jnp.float32),        # gathered x preacts
                        pltpu.VMEM((mrows, 4 * H), jnp.float32),    # MXU lhs staging
                        pltpu.VMEM((B * slots, 2 * H), jnp.float32)],  # [h, c] per slot
    )
    root_h = pl.pallas_call(
        kernel,
        out_shape=jax.ShapeDtypeStruct((num_steps, B, 2 * H), jnp.float32),
        grid_spec=grid_spec,
        compiler_params=pltpu.CompilerParams(
            dimension_semantics=("parallel",)),     # v7x: steps across both TCs
    )(meta, rootc, xw_tbl, u_p)

    root_h = root_h.reshape(T_pad, 2 * H)[:T]
    # Score head hoisted out of the kernel: one batched (T, 2H)@(2H, 3) matmul.
    scores = (jnp.dot(root_h, wsc, precision=jax.lax.Precision.HIGHEST,
                      preferred_element_type=jnp.float32) + bsc)
    # Per tree this mirrors PyTorch: (tree2scores(root_hidden)[0] -> (1, 3),
    #                                 root_hidden -> (1, 1, 2H)).
    return scores.reshape(T, 1, 3), root_h.reshape(T, 1, 1, 2 * H)


# ------------------------------ parameters -------------------------------- #
def init_params(key, vocab, E, H):
    ks = jax.random.split(key, 21)

    def u(k, shape, s=0.1):
        return jax.random.uniform(k, shape, jnp.float32, -s, s)

    return dict(
        emb=jax.random.normal(ks[0], (vocab, E), jnp.float32),
        Wf=u(ks[1], (E, H)), bf=u(ks[2], (1, H)),
        Wi=u(ks[3], (E, H)), bi=u(ks[4], (1, H)),
        Wo=u(ks[5], (E, H)), bo=u(ks[6], (1, H)),
        Wu=u(ks[7], (E, H)), bu=u(ks[8], (1, H)),
        Ufll=u(ks[9], (H, H)), Uflr=u(ks[10], (H, H)),
        Ufrl=u(ks[11], (H, H)), Ufrr=u(ks[12], (H, H)),
        Uil=u(ks[13], (H, H)), Uir=u(ks[14], (H, H)),
        Uol=u(ks[15], (H, H)), Uor=u(ks[16], (H, H)),
        Uul=u(ks[17], (H, H)), Uur=u(ks[18], (H, H)),
        Wsc=u(ks[19], (2 * H, 3)), bsc=u(ks[20], (1, 3)),
    )


def pack_params(p):
    """Pack per-gate weights for the fused kernel.

    Gate (column-block) order: [forget_left, forget_right, input, output, update]
    so the four sigmoid gates fill the first 128-lane output vreg and the tanh
    candidate sits in the second.  Both forget gates share the same input-path
    Linear (Wforget + bias), exactly as in the PyTorch module.
    """
    E, H = p['Wf'].shape
    vocab = p['emb'].shape[0]
    vocab_pad = ((vocab + 7) // 8) * 8
    emb_p = jnp.zeros((vocab_pad, E), jnp.float32).at[:vocab].set(p['emb'])
    w_p = jnp.concatenate([p['Wf'], p['Wf'], p['Wi'], p['Wo'], p['Wu']], axis=1)
    b_p = jnp.concatenate([p['bf'], p['bf'], p['bi'], p['bo'], p['bu']], axis=1)
    ul = jnp.concatenate([p['Ufll'], p['Ufrl'], p['Uil'], p['Uol'], p['Uul']], axis=1)
    ur = jnp.concatenate([p['Uflr'], p['Ufrr'], p['Uir'], p['Uor'], p['Uur']], axis=1)
    z = jnp.zeros((H, 5 * H), jnp.float32)
    # Rows line up with the packed child row [h_l (UL), c_l (0), h_r (UR), c_r (0)].
    u_p = jnp.concatenate([ul, z, ur, z], axis=0)                   # (4H, 5H)
    return emb_p, w_p, b_p, u_p, p['Wsc'], p['bsc']


# --------------------------- numpy reference ------------------------------ #
def reference_forward(root, embed_dict, p):
    q = {k: np.asarray(v, np.float64) for k, v in p.items()}
    H = q['Wf'].shape[1]
    sigmoid = lambda x: 1.0 / (1.0 + np.exp(-x))

    def rec(node):
        if node.left_child is None:
            z = np.zeros((1, H))
            h_l = c_l = h_r = c_r = z
        else:
            h_l, c_l = rec(node.left_child)
            h_r, c_r = rec(node.right_child)
        if node.role == 'Root':
            return np.concatenate([h_l, h_r], axis=1)
        x = q['emb'][embed_index(node, embed_dict)][None, :]
        fl = sigmoid(x @ q['Wf'] + q['bf'] + h_l @ q['Ufll'] + h_r @ q['Uflr'])
        fr = sigmoid(x @ q['Wf'] + q['bf'] + h_l @ q['Ufrl'] + h_r @ q['Ufrr'])
        ig = sigmoid(x @ q['Wi'] + q['bi'] + h_l @ q['Uil'] + h_r @ q['Uir'])
        og = sigmoid(x @ q['Wo'] + q['bo'] + h_l @ q['Uol'] + h_r @ q['Uor'])
        ug = np.tanh(x @ q['Wu'] + q['bu'] + h_l @ q['Uul'] + h_r @ q['Uur'])
        c = ig * ug + fl * c_l + fr * c_r
        h = og * np.tanh(c)
        return h, c

    root_h = rec(root)
    return root_h @ q['Wsc'] + q['bsc'], root_h


if __name__ == "__main__":
    embed_dict = {
        'Joint': 0, 'Contrast': 1, 'TextualOrganization': 2, 'Same-Unit': 3,
        'Elaboration_Nucleus': 4, 'Elaboration_Satellite': 5,
        'Attribution_Nucleus': 6, 'Attribution_Satellite': 7,
        'Background_Nucleus': 8, 'Background_Satellite': 9,
    }

    # Tree A: 7 non-root nodes (4 leaves).
    tree_a = TreeNode(
        'Root', None,
        left=TreeNode(
            'Nucleus', 'Elaboration',
            left=TreeNode('Nucleus', 'Attribution'),
            right=TreeNode('Satellite', 'Elaboration')),
        right=TreeNode(
            'Satellite', 'Background',
            left=TreeNode(
                'Nucleus', 'Joint',
                left=TreeNode('Nucleus', 'Background'),
                right=TreeNode('Satellite', 'Attribution')),
            right=TreeNode('Nucleus', 'Contrast')))

    # Tree B: 4 non-root nodes (metadata gets padded with dummy leaves).
    tree_b = TreeNode(
        'Root', None,
        left=TreeNode(
            'Nucleus', 'Joint',
            left=TreeNode('Nucleus', 'Elaboration'),
            right=TreeNode('Satellite', 'Background')),
        right=TreeNode('Satellite', 'Attribution'))

    # Tree C: 6 non-root nodes.
    tree_c = TreeNode(
        'Root', None,
        left=TreeNode(
            'Nucleus', 'Attribution',
            left=TreeNode('Nucleus', 'Same-Unit'),
            right=TreeNode(
                'Satellite', 'Elaboration',
                left=TreeNode('Nucleus', 'Contrast'),
                right=TreeNode('Satellite', 'Background'))),
        right=TreeNode('Satellite', 'Elaboration'))

    # Tree D: 2 non-root nodes (both leaves).
    tree_d = TreeNode(
        'Root', None,
        left=TreeNode('Nucleus', 'Joint'),
        right=TreeNode('Satellite', 'Background'))

    trees = [tree_a, tree_b, tree_c, tree_d]
    meta, rootc, max_nodes = build_batch(trees, embed_dict)

    params = init_params(jax.random.PRNGKey(0), len(embed_dict),
                         EMBED_SIZE, HIDDEN_SIZE)
    packed = pack_params(params)

    # 2 trees per grid step -> grid=(2,): batched MXU rows per node step and
    # still >= 2 parallel grid steps for the two v7x TensorCores.
    scores, root_hidden = tree_recursive_nn_forward(
        meta, rootc, packed, max_nodes, trees_per_step=2)
    jax.block_until_ready((scores, root_hidden))

    # Tolerance covers a possible single-pass bf16 MXU contraction of the
    # in-kernel recurrent dot under default precision (the table and score
    # matmuls run at HIGHEST precision in XLA); measured error is far smaller.
    rtol, atol = 1e-2, 1e-3
    for i, tree in enumerate(trees):
        ref_scores, ref_root_h = reference_forward(tree, embed_dict, params)
        np.testing.assert_allclose(np.asarray(scores[i]), ref_scores,
                                   rtol=rtol, atol=atol)
        np.testing.assert_allclose(np.asarray(root_hidden[i]).reshape(1, -1),
                                   ref_root_h, rtol=rtol, atol=atol)
    print("KERNEL_OK")
</pallas_src>

<mosaic_0001>
module attributes {stable_mosaic.version = 11 : i64} {
  func.func @kernel(%arg0: i32, %arg1: memref<4x24xi32, #tpu.memory_space<smem>>, %arg2: memref<4x2xi32, #tpu.memory_space<smem>>, %arg3: memref<16x160xf32, #tpu.memory_space<vmem>>, %arg4: memref<128x160xf32, #tpu.memory_space<vmem>>, %arg5: memref<1x2x64xf32, #tpu.memory_space<vmem>>, %arg6: memref<2x160xf32, #tpu.memory_space<vmem>>, %arg7: memref<8x128xf32, #tpu.memory_space<vmem>>, %arg8: memref<32x64xf32, #tpu.memory_space<vmem>>) attributes {dimension_semantics = [#tpu.dimension_semantics<parallel>], iteration_bounds = array<i64: 2>, scalar_prefetch = 2 : i64, scratch_operands = 3 : i64, tpu.core_type = #tpu.core_type<tc>, window_params = [{pipeline_mode = #tpu.pipeline_mode<synchronous>, transform_indices = @transform_0, window_bounds = array<i64: 16, 160>}, {pipeline_mode = #tpu.pipeline_mode<synchronous>, transform_indices = @transform_1, window_bounds = array<i64: 128, 160>}, {transform_indices = @transform_2, window_bounds = array<i64: 1, 2, 64>}]} {
    %cst = arith.constant 0.000000e+00 : f32
    %0 = vector.broadcast %cst : f32 to vector<8x128xf32>
    %c0 = arith.constant 0 : index
    %c0_0 = arith.constant 0 : index
    %1 = vector.load %arg7[%c0, %c0_0] : memref<8x128xf32, #tpu.memory_space<vmem>>, vector<8x128xf32>
    tpu.vector_store %arg7[%c0, %c0_0], %0 {strides = array<i32>} : memref<8x128xf32, #tpu.memory_space<vmem>>, vector<8x128xf32>,
    %cst_1 = arith.constant 0.000000e+00 : f32
    %2 = vector.broadcast %cst_1 : f32 to vector<1x64xf32>
    %c0_2 = arith.constant 0 : index
    %c0_3 = arith.constant 0 : index
    %3 = vector.load %arg8[%c0_2, %c0_3] : memref<32x64xf32, #tpu.memory_space<vmem>>, vector<1x64xf32>
    tpu.vector_store %arg8[%c0_2, %c0_3], %2 {strides = array<i32>} : memref<32x64xf32, #tpu.memory_space<vmem>>, vector<1x64xf32>,
    %cst_4 = arith.constant 0.000000e+00 : f32
    %4 = vector.broadcast %cst_4 : f32 to vector<1x64xf32>
    %c16 = arith.constant 16 : index
    %c0_5 = arith.constant 0 : index
    %5 = vector.load %arg8[%c16, %c0_5] : memref<32x64xf32, #tpu.memory_space<vmem>>, vector<1x64xf32>
    tpu.vector_store %arg8[%c16, %c0_5], %4 {strides = array<i32>} : memref<32x64xf32, #tpu.memory_space<vmem>>, vector<1x64xf32>,
    %c0_i32 = arith.constant 0 : i32
    %c3_i32 = arith.constant 3 : i32
    %6 = arith.muli %c3_i32, %c0_i32 : i32
    %c2_i32 = arith.constant 2 : i32
    %7 = arith.muli %arg0, %c2_i32 : i32
    %c0_i32_6 = arith.constant 0 : i32
    %8 = arith.addi %7, %c0_i32_6 : i32
    %9 = arith.index_cast %8 : i32 to index
    %10 = arith.index_cast %6 : i32 to index
    %11 = memref.load %arg1[%9, %10] : memref<4x24xi32, #tpu.memory_space<smem>>
    %c1_i32 = arith.constant 1 : i32
    %12 = arith.addi %6, %c1_i32 : i32
    %13 = arith.index_cast %8 : i32 to index
    %14 = arith.index_cast %12 : i32 to index
    %15 = memref.load %arg1[%13, %14] : memref<4x24xi32, #tpu.memory_space<smem>>
    %c2_i32_7 = arith.constant 2 : i32
    %16 = arith.addi %6, %c2_i32_7 : i32
    %17 = arith.index_cast %8 : i32 to index
    %18 = arith.index_cast %16 : i32 to index
    %19 = memref.load %arg1[%17, %18] : memref<4x24xi32, #tpu.memory_space<smem>>
    %20 = arith.index_cast %11 : i32 to index
    %c0_8 = arith.constant 0 : index
    %21 = vector.load %arg3[%20, %c0_8] : memref<16x160xf32, #tpu.memory_space<vmem>>, vector<1x160xf32>
    %c0_9 = arith.constant 0 : index
    %c0_10 = arith.constant 0 : index
    %22 = vector.load %arg6[%c0_9, %c0_10] : memref<2x160xf32, #tpu.memory_space<vmem>>, vector<1x160xf32>
    tpu.vector_store %arg6[%c0_9, %c0_10], %21 {strides = array<i32>} : memref<2x160xf32, #tpu.memory_space<vmem>>, vector<1x160xf32>,
    %c0_i32_11 = arith.constant 0 : i32
    %23 = arith.addi %c0_i32_11, %15 : i32
    %24 = arith.index_cast %23 : i32 to index
    %c0_12 = arith.constant 0 : index
    %25 = vector.load %arg8[%24, %c0_12] : memref<32x64xf32, #tpu.memory_space<vmem>>, vector<1x64xf32>
    %c0_13 = arith.constant 0 : index
    %c0_14 = arith.constant 0 : index
    %26 = vector.load %arg7[%c0_13, %c0_14] : memref<8x128xf32, #tpu.memory_space<vmem>>, vector<1x64xf32>
    tpu.vector_store %arg7[%c0_13, %c0_14], %25 {strides = array<i32>} : memref<8x128xf32, #tpu.memory_space<vmem>>, vector<1x64xf32>,
    %c0_i32_15 = arith.constant 0 : i32
    %27 = arith.addi %c0_i32_15, %19 : i32
    %28 = arith.index_cast %27 : i32 to index
    %c0_16 = arith.constant 0 : index
    %29 = vector.load %arg8[%28, %c0_16] : memref<32x64xf32, #tpu.memory_space<vmem>>, vector<1x64xf32>
    %c0_17 = arith.constant 0 : index
    %c64 = arith.constant 64 : index
    %30 = vector.load %arg7[%c0_17, %c64] : memref<8x128xf32, #tpu.memory_space<vmem>>, vector<1x64xf32>
    tpu.vector_store %arg7[%c0_17, %c64], %29 {strides = array<i32>} : memref<8x128xf32, #tpu.memory_space<vmem>>, vector<1x64xf32>,
    %c2_i32_18 = arith.constant 2 : i32
    %31 = arith.muli %arg0, %c2_i32_18 : i32
    %c1_i32_19 = arith.constant 1 : i32
    %32 = arith.addi %31, %c1_i32_19 : i32
    %33 = arith.index_cast %32 : i32 to index
    %34 = arith.index_cast %6 : i32 to index
    %35 = memref.load %arg1[%33, %34] : memref<4x24xi32, #tpu.memory_space<smem>>
    %c1_i32_20 = arith.constant 1 : i32
    %36 = arith.addi %6, %c1_i32_20 : i32
    %37 = arith.index_cast %32 : i32 to index
    %38 = arith.index_cast %36 : i32 to index
    %39 = memref.load %arg1[%37, %38] : memref<4x24xi32, #tpu.memory_space<smem>>
    %c2_i32_21 = arith.constant 2 : i32
    %40 = arith.addi %6, %c2_i32_21 : i32
    %41 = arith.index_cast %32 : i32 to index
    %42 = arith.index_cast %40 : i32 to index
    %43 = memref.load %arg1[%41, %42] : memref<4x24xi32, #tpu.memory_space<smem>>
    %44 = arith.index_cast %35 : i32 to index
    %c0_22 = arith.constant 0 : index
    %45 = vector.load %arg3[%44, %c0_22] : memref<16x160xf32, #tpu.memory_space<vmem>>, vector<1x160xf32>
    %c1 = arith.constant 1 : index
    %c0_23 = arith.constant 0 : index
    %46 = vector.load %arg6[%c1, %c0_23] : memref<2x160xf32, #tpu.memory_space<vmem>>, vector<1x160xf32>
    tpu.vector_store %arg6[%c1, %c0_23], %45 {strides = array<i32>} : memref<2x160xf32, #tpu.memory_space<vmem>>, vector<1x160xf32>,
    %c16_i32 = arith.constant 16 : i32
    %47 = arith.addi %c16_i32, %39 : i32
    %48 = arith.index_cast %47 : i32 to index
    %c0_24 = arith.constant 0 : index
    %49 = vector.load %arg8[%48, %c0_24] : memref<32x64xf32, #tpu.memory_space<vmem>>, vector<1x64xf32>
    %c1_25 = arith.constant 1 : index
    %c0_26 = arith.constant 0 : index
    %50 = vector.load %arg7[%c1_25, %c0_26] : memref<8x128xf32, #tpu.memory_space<vmem>>, vector<1x64xf32>
    tpu.vector_store %arg7[%c1_25, %c0_26], %49 {strides = array<i32>} : memref<8x128xf32, #tpu.memory_space<vmem>>, vector<1x64xf32>,
    %c16_i32_27 = arith.constant 16 : i32
    %51 = arith.addi %c16_i32_27, %43 : i32
    %52 = arith.index_cast %51 : i32 to index
    %c0_28 = arith.constant 0 : index
    %53 = vector.load %arg8[%52, %c0_28] : memref<32x64xf32, #tpu.memory_space<vmem>>, vector<1x64xf32>
    %c1_29 = arith.constant 1 : index
    %c64_30 = arith.constant 64 : index
    %54 = vector.load %arg7[%c1_29, %c64_30] : memref<8x128xf32, #tpu.memory_space<vmem>>, vector<1x64xf32>
    tpu.vector_store %arg7[%c1_29, %c64_30], %53 {strides = array<i32>} : memref<8x128xf32, #tpu.memory_space<vmem>>, vector<1x64xf32>,
    %c0_31 = arith.constant 0 : index
    %c0_32 = arith.constant 0 : index
    %55 = vector.load %arg7[%c0_31, %c0_32] : memref<8x128xf32, #tpu.memory_space<vmem>>, vector<8x128xf32>
    %c0_33 = arith.constant 0 : index
    %c0_34 = arith.constant 0 : index
    %56 = vector.load %arg4[%c0_33, %c0_34] : memref<128x160xf32, #tpu.memory_space<vmem>>, vector<128x160xf32>
    %cst_35 = arith.constant dense<0.000000e+00> : vector<8x160xf32>
    %57 = tpu.matmul %55, %56, %cst_35 {dimension_numbers = #tpu.dot_dimension_numbers<[1], [0], [0], [1], [0, 0, 1, 1], [], []>} : vector<8x128xf32>, vector<128x160xf32>, vector<8x160xf32> -> vector<8x160xf32>
    %c0_36 = arith.constant 0 : index
    %c0_37 = arith.constant 0 : index
    %58 = vector.load %arg6[%c0_36, %c0_37] : memref<2x160xf32, #tpu.memory_space<vmem>>, vector<2x160xf32>
    %59 = vector.extract_strided_slice %57 {offsets = [0, 0], sizes = [2, 160], strides = [1, 1]} : vector<8x160xf32> to vector<2x160xf32>
    %60 = arith.addf %58, %59 : vector<2x160xf32>
    %61 = vector.extract_strided_slice %60 {offsets = [0, 0], sizes = [2, 128], strides = [1, 1]} : vector<2x160xf32> to vector<2x128xf32>
    %cst_38 = arith.constant 0.000000e+00 : f32
    %62 = vector.broadcast %cst_38 : f32 to vector<2x128xf32>
    %63 = arith.subf %62, %61 : vector<2x128xf32>
    %64 = math.exp %63 : vector<2x128xf32>
    %cst_39 = arith.constant 1.000000e+00 : f32
    %65 = vector.broadcast %cst_39 : f32 to vector<2x128xf32>
    %66 = arith.addf %65, %64 : vector<2x128xf32>
    %cst_40 = arith.constant 1.000000e+00 : f32
    %67 = vector.broadcast %cst_40 : f32 to vector<2x128xf32>
    %68 = arith.divf %67, %66 : vector<2x128xf32>
    %69 = vector.extract_strided_slice %68 {offsets = [0, 0], sizes = [2, 32], strides = [1, 1]} : vector<2x128xf32> to vector<2x32xf32>
    %70 = vector.extract_strided_slice %68 {offsets = [0, 32], sizes = [2, 32], strides = [1, 1]} : vector<2x128xf32> to vector<2x32xf32>
    %71 = vector.extract_strided_slice %68 {offsets = [0, 64], sizes = [2, 32], strides = [1, 1]} : vector<2x128xf32> to vector<2x32xf32>
    %72 = vector.extract_strided_slice %68 {offsets = [0, 96], sizes = [2, 32], strides = [1, 1]} : vector<2x128xf32> to vector<2x32xf32>
    %73 = vector.extract_strided_slice %60 {offsets = [0, 128], sizes = [2, 32], strides = [1, 1]} : vector<2x160xf32> to vector<2x32xf32>
    %74 = math.tanh %73 : vector<2x32xf32>
    %75 = vector.extract_strided_slice %55 {offsets = [0, 32], sizes = [2, 32], strides = [1, 1]} : vector<8x128xf32> to vector<2x32xf32>
    %76 = vector.extract_strided_slice %55 {offsets = [0, 96], sizes = [2, 32], strides = [1, 1]} : vector<8x128xf32> to vector<2x32xf32>
    %77 = arith.mulf %71, %74 : vector<2x32xf32>
    %78 = arith.mulf %69, %75 : vector<2x32xf32>
    %79 = arith.addf %77, %78 : vector<2x32xf32>
    %80 = arith.mulf %70, %76 : vector<2x32xf32>
    %81 = arith.addf %79, %80 : vector<2x32xf32>
    %82 = math.tanh %81 : vector<2x32xf32>
    %83 = arith.mulf %72, %82 : vector<2x32xf32>
    %84 = tpu.concatenate %83, %81 in 1 : vector<2x32xf32>, vector<2x32xf32> -> vector<2x64xf32>
    %85 = vector.extract_strided_slice %84 {offsets = [0, 0], sizes = [1, 64], strides = [1, 1]} : vector<2x64xf32> to vector<1x64xf32>
    %c0_i32_41 = arith.constant 0 : i32
    %86 = arith.addi %c0_i32_41, %c0_i32 : i32
    %c1_i32_42 = arith.constant 1 : i32
    %87 = arith.addi %86, %c1_i32_42 : i32
    %88 = arith.index_cast %87 : i32 to index
    %c0_43 = arith.constant 0 : index
    %89 = vector.load %arg8[%88, %c0_43] : memref<32x64xf32, #tpu.memory_space<vmem>>, vector<1x64xf32>
    tpu.vector_store %arg8[%88, %c0_43], %85 {strides = array<i32>} : memref<32x64xf32, #tpu.memory_space<vmem>>, vector<1x64xf32>,
    %90 = vector.extract_strided_slice %84 {offsets = [1, 0], sizes = [1, 64], strides = [1, 1]} : vector<2x64xf32> to vector<1x64xf32>
    %c16_i32_44 = arith.constant 16 : i32
    %91 = arith.addi %c16_i32_44, %c0_i32 : i32
    %c1_i32_45 = arith.constant 1 : i32
    %92 = arith.addi %91, %c1_i32_45 : i32
    %93 = arith.index_cast %92 : i32 to index
    %c0_46 = arith.constant 0 : index
    %94 = vector.load %arg8[%93, %c0_46] : memref<32x64xf32, #tpu.memory_space<vmem>>, vector<1x64xf32>
    tpu.vector_store %arg8[%93, %c0_46], %90 {strides = array<i32>} : memref<32x64xf32, #tpu.memory_space<vmem>>, vector<1x64xf32>,
    %c1_i32_47 = arith.constant 1 : i32
    %c3_i32_48 = arith.constant 3 : i32
    %95 = arith.muli %c3_i32_48, %c1_i32_47 : i32
    %c2_i32_49 = arith.constant 2 : i32
    %96 = arith.muli %arg0, %c2_i32_49 : i32
    %c0_i32_50 = arith.constant 0 : i32
    %97 = arith.addi %96, %c0_i32_50 : i32
    %98 = arith.index_cast %97 : i32 to index
    %99 = arith.index_cast %95 : i32 to index
    %100 = memref.load %arg1[%98, %99] : memref<4x24xi32, #tpu.memory_space<smem>>
    %c1_i32_51 = arith.constant 1 : i32
    %101 = arith.addi %95, %c1_i32_51 : i32
    %102 = arith.index_cast %97 : i32 to index
    %103 = arith.index_cast %101 : i32 to index
    %104 = memref.load %arg1[%102, %103] : memref<4x24xi32, #tpu.memory_space<smem>>
    %c2_i32_52 = arith.constant 2 : i32
    %105 = arith.addi %95, %c2_i32_52 : i32
    %106 = arith.index_cast %97 : i32 to index
    %107 = arith.index_cast %105 : i32 to index
    %108 = memref.load %arg1[%106, %107] : memref<4x24xi32, #tpu.memory_space<smem>>
    %109 = arith.index_cast %100 : i32 to index
    %c0_53 = arith.constant 0 : index
    %110 = vector.load %arg3[%109, %c0_53] : memref<16x160xf32, #tpu.memory_space<vmem>>, vector<1x160xf32>
    %c0_54 = arith.constant 0 : index
    %c0_55 = arith.constant 0 : index
    %111 = vector.load %arg6[%c0_54, %c0_55] : memref<2x160xf32, #tpu.memory_space<vmem>>, vector<1x160xf32>
    tpu.vector_store %arg6[%c0_54, %c0_55], %110 {strides = array<i32>} : memref<2x160xf32, #tpu.memory_space<vmem>>, vector<1x160xf32>,
    %c0_i32_56 = arith.constant 0 : i32
    %112 = arith.addi %c0_i32_56, %104 : i32
    %113 = arith.index_cast %112 : i32 to index
    %c0_57 = arith.constant 0 : index
    %114 = vector.load %arg8[%113, %c0_57] : memref<32x64xf32, #tpu.memory_space<vmem>>, vector<1x64xf32>
    %c0_58 = arith.constant 0 : index
    %c0_59 = arith.constant 0 : index
    %115 = vector.load %arg7[%c0_58, %c0_59] : memref<8x128xf32, #tpu.memory_space<vmem>>, vector<1x64xf32>
    tpu.vector_store %arg7[%c0_58, %c0_59], %114 {strides = array<i32>} : memref<8x128xf32, #tpu.memory_space<vmem>>, vector<1x64xf32>,
    %c0_i32_60 = arith.constant 0 : i32
    %116 = arith.addi %c0_i32_60, %108 : i32
    %117 = arith.index_cast %116 : i32 to index
    %c0_61 = arith.constant 0 : index
    %118 = vector.load %arg8[%117, %c0_61] : memref<32x64xf32, #tpu.memory_space<vmem>>, vector<1x64xf32>
    %c0_62 = arith.constant 0 : index
    %c64_63 = arith.constant 64 : index
    %119 = vector.load %arg7[%c0_62, %c64_63] : memref<8x128xf32, #tpu.memory_space<vmem>>, vector<1x64xf32>
    tpu.vector_store %arg7[%c0_62, %c64_63], %118 {strides = array<i32>} : memref<8x128xf32, #tpu.memory_space<vmem>>, vector<1x64xf32>,
    %c2_i32_64 = arith.constant 2 : i32
    %120 = arith.muli %arg0, %c2_i32_64 : i32
    %c1_i32_65 = arith.constant 1 : i32
    %121 = arith.addi %120, %c1_i32_65 : i32
    %122 = arith.index_cast %121 : i32 to index
    %123 = arith.index_cast %95 : i32 to index
    %124 = memref.load %arg1[%122, %123] : memref<4x24xi32, #tpu.memory_space<smem>>
    %c1_i32_66 = arith.constant 1 : i32
    %125 = arith.addi %95, %c1_i32_66 : i32
    %126 = arith.index_cast %121 : i32 to index
    %127 = arith.index_cast %125 : i32 to index
    %128 = memref.load %arg1[%126, %127] : memref<4x24xi32, #tpu.memory_space<smem>>
    %c2_i32_67 = arith.constant 2 : i32
    %129 = arith.addi %95, %c2_i32_67 : i32
    %130 = arith.index_cast %121 : i32 to index
    %131 = arith.index_cast %129 : i32 to index
    %132 = memref.load %arg1[%130, %131] : memref<4x24xi32, #tpu.memory_space<smem>>
    %133 = arith.index_cast %124 : i32 to index
    %c0_68 = arith.constant 0 : index
    %134 = vector.load %arg3[%133, %c0_68] : memref<16x160xf32, #tpu.memory_space<vmem>>, vector<1x160xf32>
    %c1_69 = arith.constant 1 : index
    %c0_70 = arith.constant 0 : index
    %135 = vector.load %arg6[%c1_69, %c0_70] : memref<2x160xf32, #tpu.memory_space<vmem>>, vector<1x160xf32>
    tpu.vector_store %arg6[%c1_69, %c0_70], %134 {strides = array<i32>} : memref<2x160xf32, #tpu.memory_space<vmem>>, vector<1x160xf32>,
    %c16_i32_71 = arith.constant 16 : i32
    %136 = arith.addi %c16_i32_71, %128 : i32
    %137 = arith.index_cast %136 : i32 to index
    %c0_72 = arith.constant 0 : index
    %138 = vector.load %arg8[%137, %c0_72] : memref<32x64xf32, #tpu.memory_space<vmem>>, vector<1x64xf32>
    %c1_73 = arith.constant 1 : index
    %c0_74 = arith.constant 0 : index
    %139 = vector.load %arg7[%c1_73, %c0_74] : memref<8x128xf32, #tpu.memory_space<vmem>>, vector<1x64xf32>
    tpu.vector_store %arg7[%c1_73, %c0_74], %138 {strides = array<i32>} : memref<8x128xf32, #tpu.memory_space<vmem>>, vector<1x64xf32>,
    %c16_i32_75 = arith.constant 16 : i32
    %140 = arith.addi %c16_i32_75, %132 : i32
    %141 = arith.index_cast %140 : i32 to index
    %c0_76 = arith.constant 0 : index
    %142 = vector.load %arg8[%141, %c0_76] : memref<32x64xf32, #tpu.memory_space<vmem>>, vector<1x64xf32>
    %c1_77 = arith.constant 1 : index
    %c64_78 = arith.constant 64 : index
    %143 = vector.load %arg7[%c1_77, %c64_78] : memref<8x128xf32, #tpu.memory_space<vmem>>, vector<1x64xf32>
    tpu.vector_store %arg7[%c1_77, %c64_78], %142 {strides = array<i32>} : memref<8x128xf32, #tpu.memory_space<vmem>>, vector<1x64xf32>,
    %c0_79 = arith.constant 0 : index
    %c0_80 = arith.constant 0 : index
    %144 = vector.load %arg7[%c0_79, %c0_80] : memref<8x128xf32, #tpu.memory_space<vmem>>, vector<8x128xf32>
    %c0_81 = arith.constant 0 : index
    %c0_82 = arith.constant 0 : index
    %145 = vector.load %arg4[%c0_81, %c0_82] : memref<128x160xf32, #tpu.memory_space<vmem>>, vector<128x160xf32>
    %cst_83 = arith.constant dense<0.000000e+00> : vector<8x160xf32>
    %146 = tpu.matmul %144, %145, %cst_83 {dimension_numbers = #tpu.dot_dimension_numbers<[1], [0], [0], [1], [0, 0, 1, 1], [], []>} : vector<8x128xf32>, vector<128x160xf32>, vector<8x160xf32> -> vector<8x160xf32>
    %c0_84 = arith.constant 0 : index
    %c0_85 = arith.constant 0 : index
    %147 = vector.load %arg6[%c0_84, %c0_85] : memref<2x160xf32, #tpu.memory_space<vmem>>, vector<2x160xf32>
    %148 = vector.extract_strided_slice %146 {offsets = [0, 0], sizes = [2, 160], strides = [1, 1]} : vector<8x160xf32> to vector<2x160xf32>
    %149 = arith.addf %147, %148 : vector<2x160xf32>
    %150 = vector.extract_strided_slice %149 {offsets = [0, 0], sizes = [2, 128], strides = [1, 1]} : vector<2x160xf32> to vector<2x128xf32>
    %cst_86 = arith.constant 0.000000e+00 : f32
    %151 = vector.broadcast %cst_86 : f32 to vector<2x128xf32>
    %152 = arith.subf %151, %150 : vector<2x128xf32>
    %153 = math.exp %152 : vector<2x128xf32>
    %cst_87 = arith.constant 1.000000e+00 : f32
    %154 = vector.broadcast %cst_87 : f32 to vector<2x128xf32>
    %155 = arith.addf %154, %153 : vector<2x128xf32>
    %cst_88 = arith.constant 1.000000e+00 : f32
    %156 = vector.broadcast %cst_88 : f32 to vector<2x128xf32>
    %157 = arith.divf %156, %155 : vector<2x128xf32>
    %158 = vector.extract_strided_slice %157 {offsets = [0, 0], sizes = [2, 32], strides = [1, 1]} : vector<2x128xf32> to vector<2x32xf32>
    %159 = vector.extract_strided_slice %157 {offsets = [0, 32], sizes = [2, 32], strides = [1, 1]} : vector<2x128xf32> to vector<2x32xf32>
    %160 = vector.extract_strided_slice %157 {offsets = [0, 64], sizes = [2, 32], strides = [1, 1]} : vector<2x128xf32> to vector<2x32xf32>
    %161 = vector.extract_strided_slice %157 {offsets = [0, 96], sizes = [2, 32], strides = [1, 1]} : vector<2x128xf32> to vector<2x32xf32>
    %162 = vector.extract_strided_slice %149 {offsets = [0, 128], sizes = [2, 32], strides = [1, 1]} : vector<2x160xf32> to vector<2x32xf32>
    %163 = math.tanh %162 : vector<2x32xf32>
    %164 = vector.extract_strided_slice %144 {offsets = [0, 32], sizes = [2, 32], strides = [1, 1]} : vector<8x128xf32> to vector<2x32xf32>
    %165 = vector.extract_strided_slice %144 {offsets = [0, 96], sizes = [2, 32], strides = [1, 1]} : vector<8x128xf32> to vector<2x32xf32>
    %166 = arith.mulf %160, %163 : vector<2x32xf32>
    %167 = arith.mulf %158, %164 : vector<2x32xf32>
    %168 = arith.addf %166, %167 : vector<2x32xf32>
    %169 = arith.mulf %159, %165 : vector<2x32xf32>
    %170 = arith.addf %168, %169 : vector<2x32xf32>
    %171 = math.tanh %170 : vector<2x32xf32>
    %172 = arith.mulf %161, %171 : vector<2x32xf32>
    %173 = tpu.concatenate %172, %170 in 1 : vector<2x32xf32>, vector<2x32xf32> -> vector<2x64xf32>
    %174 = vector.extract_strided_slice %173 {offsets = [0, 0], sizes = [1, 64], strides = [1, 1]} : vector<2x64xf32> to vector<1x64xf32>
    %c0_i32_89 = arith.constant 0 : i32
    %175 = arith.addi %c0_i32_89, %c1_i32_47 : i32
    %c1_i32_90 = arith.constant 1 : i32
    %176 = arith.addi %175, %c1_i32_90 : i32
    %177 = arith.index_cast %176 : i32 to index
    %c0_91 = arith.constant 0 : index
    %178 = vector.load %arg8[%177, %c0_91] : memref<32x64xf32, #tpu.memory_space<vmem>>, vector<1x64xf32>
    tpu.vector_store %arg8[%177, %c0_91], %174 {strides = array<i32>} : memref<32x64xf32, #tpu.memory_space<vmem>>, vector<1x64xf32>,
    %179 = vector.extract_strided_slice %173 {offsets = [1, 0], sizes = [1, 64], strides = [1, 1]} : vector<2x64xf32> to vector<1x64xf32>
    %c16_i32_92 = arith.constant 16 : i32
    %180 = arith.addi %c16_i32_92, %c1_i32_47 : i32
    %c1_i32_93 = arith.constant 1 : i32
    %181 = arith.addi %180, %c1_i32_93 : i32
    %182 = arith.index_cast %181 : i32 to index
    %c0_94 = arith.constant 0 : index
    %183 = vector.load %arg8[%182, %c0_94] : memref<32x64xf32, #tpu.memory_space<vmem>>, vector<1x64xf32>
    tpu.vector_store %arg8[%182, %c0_94], %179 {strides = array<i32>} : memref<32x64xf32, #tpu.memory_space<vmem>>, vector<1x64xf32>,
    %c2_i32_95 = arith.constant 2 : i32
    %c3_i32_96 = arith.constant 3 : i32
    %184 = arith.muli %c3_i32_96, %c2_i32_95 : i32
    %c2_i32_97 = arith.constant 2 : i32
    %185 = arith.muli %arg0, %c2_i32_97 : i32
    %c0_i32_98 = arith.constant 0 : i32
    %186 = arith.addi %185, %c0_i32_98 : i32
    %187 = arith.index_cast %186 : i32 to index
    %188 = arith.index_cast %184 : i32 to index
    %189 = memref.load %arg1[%187, %188] : memref<4x24xi32, #tpu.memory_space<smem>>
    %c1_i32_99 = arith.constant 1 : i32
    %190 = arith.addi %184, %c1_i32_99 : i32
    %191 = arith.index_cast %186 : i32 to index
    %192 = arith.index_cast %190 : i32 to index
    %193 = memref.load %arg1[%191, %192] : memref<4x24xi32, #tpu.memory_space<smem>>
    %c2_i32_100 = arith.constant 2 : i32
    %194 = arith.addi %184, %c2_i32_100 : i32
    %195 = arith.index_cast %186 : i32 to index
    %196 = arith.index_cast %194 : i32 to index
    %197 = memref.load %arg1[%195, %196] : memref<4x24xi32, #tpu.memory_space<smem>>
    %198 = arith.index_cast %189 : i32 to index
    %c0_101 = arith.constant 0 : index
    %199 = vector.load %arg3[%198, %c0_101] : memref<16x160xf32, #tpu.memory_space<vmem>>, vector<1x160xf32>
    %c0_102 = arith.constant 0 : index
    %c0_103 = arith.constant 0 : index
    %200 = vector.load %arg6[%c0_102, %c0_103] : memref<2x160xf32, #tpu.memory_space<vmem>>, vector<1x160xf32>
    tpu.vector_store %arg6[%c0_102, %c0_103], %199 {strides = array<i32>} : memref<2x160xf32, #tpu.memory_space<vmem>>, vector<1x160xf32>,
    %c0_i32_104 = arith.constant 0 : i32
    %201 = arith.addi %c0_i32_104, %193 : i32
    %202 = arith.index_cast %201 : i32 to index
    %c0_105 = arith.constant 0 : index
    %203 = vector.load %arg8[%202, %c0_105] : memref<32x64xf32, #tpu.memory_space<vmem>>, vector<1x64xf32>
    %c0_106 = arith.constant 0 : index
    %c0_107 = arith.constant 0 : index
    %204 = vector.load %arg7[%c0_106, %c0_107] : memref<8x128xf32, #tpu.memory_space<vmem>>, vector<1x64xf32>
    tpu.vector_store %arg7[%c0_106, %c0_107], %203 {strides = array<i32>} : memref<8x128xf32, #tpu.memory_space<vmem>>, vector<1x64xf32>,
    %c0_i32_108 = arith.constant 0 : i32
    %205 = arith.addi %c0_i32_108, %197 : i32
    %206 = arith.index_cast %205 : i32 to index
    %c0_109 = arith.constant 0 : index
    %207 = vector.load %arg8[%206, %c0_109] : memref<32x64xf32, #tpu.memory_space<vmem>>, vector<1x64xf32>
    %c0_110 = arith.constant 0 : index
    %c64_111 = arith.constant 64 : index
    %208 = vector.load %arg7[%c0_110, %c64_111] : memref<8x128xf32, #tpu.memory_space<vmem>>, vector<1x64xf32>
    tpu.vector_store %arg7[%c0_110, %c64_111], %207 {strides = array<i32>} : memref<8x128xf32, #tpu.memory_space<vmem>>, vector<1x64xf32>,
    %c2_i32_112 = arith.constant 2 : i32
    %209 = arith.muli %arg0, %c2_i32_112 : i32
    %c1_i32_113 = arith.constant 1 : i32
    %210 = arith.addi %209, %c1_i32_113 : i32
    %211 = arith.index_cast %210 : i32 to index
    %212 = arith.index_cast %184 : i32 to index
    %213 = memref.load %arg1[%211, %212] : memref<4x24xi32, #tpu.memory_space<smem>>
    %c1_i32_114 = arith.constant 1 : i32
    %214 = arith.addi %184, %c1_i32_114 : i32
    %215 = arith.index_cast %210 : i32 to index
    %216 = arith.index_cast %214 : i32 to index
    %217 = memref.load %arg1[%215, %216] : memref<4x24xi32, #tpu.memory_space<smem>>
    %c2_i32_115 = arith.constant 2 : i32
    %218 = arith.addi %184, %c2_i32_115 : i32
    %219 = arith.index_cast %210 : i32 to index
    %220 = arith.index_cast %218 : i32 to index
    %221 = memref.load %arg1[%219, %220] : memref<4x24xi32, #tpu.memory_space<smem>>
    %222 = arith.index_cast %213 : i32 to index
    %c0_116 = arith.constant 0 : index
    %223 = vector.load %arg3[%222, %c0_116] : memref<16x160xf32, #tpu.memory_space<vmem>>, vector<1x160xf32>
    %c1_117 = arith.constant 1 : index
    %c0_118 = arith.constant 0 : index
    %224 = vector.load %arg6[%c1_117, %c0_118] : memref<2x160xf32, #tpu.memory_space<vmem>>, vector<1x160xf32>
    tpu.vector_store %arg6[%c1_117, %c0_118], %223 {strides = array<i32>} : memref<2x160xf32, #tpu.memory_space<vmem>>, vector<1x160xf32>,
    %c16_i32_119 = arith.constant 16 : i32
    %225 = arith.addi %c16_i32_119, %217 : i32
    %226 = arith.index_cast %225 : i32 to index
    %c0_120 = arith.constant 0 : index
    %227 = vector.load %arg8[%226, %c0_120] : memref<32x64xf32, #tpu.memory_space<vmem>>, vector<1x64xf32>
    %c1_121 = arith.constant 1 : index
    %c0_122 = arith.constant 0 : index
    %228 = vector.load %arg7[%c1_121, %c0_122] : memref<8x128xf32, #tpu.memory_space<vmem>>, vector<1x64xf32>
    tpu.vector_store %arg7[%c1_121, %c0_122], %227 {strides = array<i32>} : memref<8x128xf32, #tpu.memory_space<vmem>>, vector<1x64xf32>,
    %c16_i32_123 = arith.constant 16 : i32
    %229 = arith.addi %c16_i32_123, %221 : i32
    %230 = arith.index_cast %229 : i32 to index
    %c0_124 = arith.constant 0 : index
    %231 = vector.load %arg8[%230, %c0_124] : memref<32x64xf32, #tpu.memory_space<vmem>>, vector<1x64xf32>
    %c1_125 = arith.constant 1 : index
    %c64_126 = arith.constant 64 : index
    %232 = vector.load %arg7[%c1_125, %c64_126] : memref<8x128xf32, #tpu.memory_space<vmem>>, vector<1x64xf32>
    tpu.vector_store %arg7[%c1_125, %c64_126], %231 {strides = array<i32>} : memref<8x128xf32, #tpu.memory_space<vmem>>, vector<1x64xf32>,
    %c0_127 = arith.constant 0 : index
    %c0_128 = arith.constant 0 : index
    %233 = vector.load %arg7[%c0_127, %c0_128] : memref<8x128xf32, #tpu.memory_space<vmem>>, vector<8x128xf32>
    %c0_129 = arith.constant 0 : index
    %c0_130 = arith.constant 0 : index
    %234 = vector.load %arg4[%c0_129, %c0_130] : memref<128x160xf32, #tpu.memory_space<vmem>>, vector<128x160xf32>
    %cst_131 = arith.constant dense<0.000000e+00> : vector<8x160xf32>
    %235 = tpu.matmul %233, %234, %cst_131 {dimension_numbers = #tpu.dot_dimension_numbers<[1], [0], [0], [1], [0, 0, 1, 1], [], []>} : vector<8x128xf32>, vector<128x160xf32>, vector<8x160xf32> -> vector<8x160xf32>
    %c0_132 = arith.constant 0 : index
    %c0_133 = arith.constant 0 : index
    %236 = vector.load %arg6[%c0_132, %c0_133] : memref<2x160xf32, #tpu.memory_space<vmem>>, vector<2x160xf32>
    %237 = vector.extract_strided_slice %235 {offsets = [0, 0], sizes = [2, 160], strides = [1, 1]} : vector<8x160xf32> to vector<2x160xf32>
    %238 = arith.addf %236, %237 : vector<2x160xf32>
    %239 = vector.extract_strided_slice %238 {offsets = [0, 0], sizes = [2, 128], strides = [1, 1]} : vector<2x160xf32> to vector<2x128xf32>
    %cst_134 = arith.constant 0.000000e+00 : f32
    %240 = vector.broadcast %cst_134 : f32 to vector<2x128xf32>
    %241 = arith.subf %240, %239 : vector<2x128xf32>
    %242 = math.exp %241 : vector<2x128xf32>
    %cst_135 = arith.constant 1.000000e+00 : f32
    %243 = vector.broadcast %cst_135 : f32 to vector<2x128xf32>
    %244 = arith.addf %243, %242 : vector<2x128xf32>
    %cst_136 = arith.constant 1.000000e+00 : f32
    %245 = vector.broadcast %cst_136 : f32 to vector<2x128xf32>
    %246 = arith.divf %245, %244 : vector<2x128xf32>
    %247 = vector.extract_strided_slice %246 {offsets = [0, 0], sizes = [2, 32], strides = [1, 1]} : vector<2x128xf32> to vector<2x32xf32>
    %248 = vector.extract_strided_slice %246 {offsets = [0, 32], sizes = [2, 32], strides = [1, 1]} : vector<2x128xf32> to vector<2x32xf32>
    %249 = vector.extract_strided_slice %246 {offsets = [0, 64], sizes = [2, 32], strides = [1, 1]} : vector<2x128xf32> to vector<2x32xf32>
    %250 = vector.extract_strided_slice %246 {offsets = [0, 96], sizes = [2, 32], strides = [1, 1]} : vector<2x128xf32> to vector<2x32xf32>
    %251 = vector.extract_strided_slice %238 {offsets = [0, 128], sizes = [2, 32], strides = [1, 1]} : vector<2x160xf32> to vector<2x32xf32>
    %252 = math.tanh %251 : vector<2x32xf32>
    %253 = vector.extract_strided_slice %233 {offsets = [0, 32], sizes = [2, 32], strides = [1, 1]} : vector<8x128xf32> to vector<2x32xf32>
    %254 = vector.extract_strided_slice %233 {offsets = [0, 96], sizes = [2, 32], strides = [1, 1]} : vector<8x128xf32> to vector<2x32xf32>
    %255 = arith.mulf %249, %252 : vector<2x32xf32>
    %256 = arith.mulf %247, %253 : vector<2x32xf32>
    %257 = arith.addf %255, %256 : vector<2x32xf32>
    %258 = arith.mulf %248, %254 : vector<2x32xf32>
    %259 = arith.addf %257, %258 : vector<2x32xf32>
    %260 = math.tanh %259 : vector<2x32xf32>
    %261 = arith.mulf %250, %260 : vector<2x32xf32>
    %262 = tpu.concatenate %261, %259 in 1 : vector<2x32xf32>, vector<2x32xf32> -> vector<2x64xf32>
    %263 = vector.extract_strided_slice %262 {offsets = [0, 0], sizes = [1, 64], strides = [1, 1]} : vector<2x64xf32> to vector<1x64xf32>
    %c0_i32_137 = arith.constant 0 : i32
    %264 = arith.addi %c0_i32_137, %c2_i32_95 : i32
    %c1_i32_138 = arith.constant 1 : i32
    %265 = arith.addi %264, %c1_i32_138 : i32
    %266 = arith.index_cast %265 : i32 to index
    %c0_139 = arith.constant 0 : index
    %267 = vector.load %arg8[%266, %c0_139] : memref<32x64xf32, #tpu.memory_space<vmem>>, vector<1x64xf32>
    tpu.vector_store %arg8[%266, %c0_139], %263 {strides = array<i32>} : memref<32x64xf32, #tpu.memory_space<vmem>>, vector<1x64xf32>,
    %268 = vector.extract_strided_slice %262 {offsets = [1, 0], sizes = [1, 64], strides = [1, 1]} : vector<2x64xf32> to vector<1x64xf32>
    %c16_i32_140 = arith.constant 16 : i32
    %269 = arith.addi %c16_i32_140, %c2_i32_95 : i32
    %c1_i32_141 = arith.constant 1 : i32
    %270 = arith.addi %269, %c1_i32_141 : i32
    %271 = arith.index_cast %270 : i32 to index
    %c0_142 = arith.constant 0 : index
    %272 = vector.load %arg8[%271, %c0_142] : memref<32x64xf32, #tpu.memory_space<vmem>>, vector<1x64xf32>
    tpu.vector_store %arg8[%271, %c0_142], %268 {strides = array<i32>} : memref<32x64xf32, #tpu.memory_space<vmem>>, vector<1x64xf32>,
    %c3_i32_143 = arith.constant 3 : i32
    %c3_i32_144 = arith.constant 3 : i32
    %273 = arith.muli %c3_i32_144, %c3_i32_143 : i32
    %c2_i32_145 = arith.constant 2 : i32
    %274 = arith.muli %arg0, %c2_i32_145 : i32
    %c0_i32_146 = arith.constant 0 : i32
    %275 = arith.addi %274, %c0_i32_146 : i32
    %276 = arith.index_cast %275 : i32 to index
    %277 = arith.index_cast %273 : i32 to index
    %278 = memref.load %arg1[%276, %277] : memref<4x24xi32, #tpu.memory_space<smem>>
    %c1_i32_147 = arith.constant 1 : i32
    %279 = arith.addi %273, %c1_i32_147 : i32
    %280 = arith.index_cast %275 : i32 to index
    %281 = arith.index_cast %279 : i32 to index
    %282 = memref.load %arg1[%280, %281] : memref<4x24xi32, #tpu.memory_space<smem>>
    %c2_i32_148 = arith.constant 2 : i32
    %283 = arith.addi %273, %c2_i32_148 : i32
    %284 = arith.index_cast %275 : i32 to index
    %285 = arith.index_cast %283 : i32 to index
    %286 = memref.load %arg1[%284, %285] : memref<4x24xi32, #tpu.memory_space<smem>>
    %287 = arith.index_cast %278 : i32 to index
    %c0_149 = arith.constant 0 : index
    %288 = vector.load %arg3[%287, %c0_149] : memref<16x160xf32, #tpu.memory_space<vmem>>, vector<1x160xf32>
    %c0_150 = arith.constant 0 : index
    %c0_151 = arith.constant 0 : index
    %289 = vector.load %arg6[%c0_150, %c0_151] : memref<2x160xf32, #tpu.memory_space<vmem>>, vector<1x160xf32>
    tpu.vector_store %arg6[%c0_150, %c0_151], %288 {strides = array<i32>} : memref<2x160xf32, #tpu.memory_space<vmem>>, vector<1x160xf32>,
    %c0_i32_152 = arith.constant 0 : i32
    %290 = arith.addi %c0_i32_152, %282 : i32
    %291 = arith.index_cast %290 : i32 to index
    %c0_153 = arith.constant 0 : index
    %292 = vector.load %arg8[%291, %c0_153] : memref<32x64xf32, #tpu.memory_space<vmem>>, vector<1x64xf32>
    %c0_154 = arith.constant 0 : index
    %c0_155 = arith.constant 0 : index
    %293 = vector.load %arg7[%c0_154, %c0_155] : memref<8x128xf32, #tpu.memory_space<vmem>>, vector<1x64xf32>
    tpu.vector_store %arg7[%c0_154, %c0_155], %292 {strides = array<i32>} : memref<8x128xf32, #tpu.memory_space<vmem>>, vector<1x64xf32>,
    %c0_i32_156 = arith.constant 0 : i32
    %294 = arith.addi %c0_i32_156, %286 : i32
    %295 = arith.index_cast %294 : i32 to index
    %c0_157 = arith.constant 0 : index
    %296 = vector.load %arg8[%295, %c0_157] : memref<32x64xf32, #tpu.memory_space<vmem>>, vector<1x64xf32>
    %c0_158 = arith.constant 0 : index
    %c64_159 = arith.constant 64 : index
    %297 = vector.load %arg7[%c0_158, %c64_159] : memref<8x128xf32, #tpu.memory_space<vmem>>, vector<1x64xf32>
    tpu.vector_store %arg7[%c0_158, %c64_159], %296 {strides = array<i32>} : memref<8x128xf32, #tpu.memory_space<vmem>>, vector<1x64xf32>,
    %c2_i32_160 = arith.constant 2 : i32
    %298 = arith.muli %arg0, %c2_i32_160 : i32
    %c1_i32_161 = arith.constant 1 : i32
    %299 = arith.addi %298, %c1_i32_161 : i32
    %300 = arith.index_cast %299 : i32 to index
    %301 = arith.index_cast %273 : i32 to index
    %302 = memref.load %arg1[%300, %301] : memref<4x24xi32, #tpu.memory_space<smem>>
    %c1_i32_162 = arith.constant 1 : i32
    %303 = arith.addi %273, %c1_i32_162 : i32
    %304 = arith.index_cast %299 : i32 to index
    %305 = arith.index_cast %303 : i32 to index
    %306 = memref.load %arg1[%304, %305] : memref<4x24xi32, #tpu.memory_space<smem>>
    %c2_i32_163 = arith.constant 2 : i32
    %307 = arith.addi %273, %c2_i32_163 : i32
    %308 = arith.index_cast %299 : i32 to index
    %309 = arith.index_cast %307 : i32 to index
    %310 = memref.load %arg1[%308, %309] : memref<4x24xi32, #tpu.memory_space<smem>>
    %311 = arith.index_cast %302 : i32 to index
    %c0_164 = arith.constant 0 : index
    %312 = vector.load %arg3[%311, %c0_164] : memref<16x160xf32, #tpu.memory_space<vmem>>, vector<1x160xf32>
    %c1_165 = arith.constant 1 : index
    %c0_166 = arith.constant 0 : index
    %313 = vector.load %arg6[%c1_165, %c0_166] : memref<2x160xf32, #tpu.memory_space<vmem>>, vector<1x160xf32>
    tpu.vector_store %arg6[%c1_165, %c0_166], %312 {strides = array<i32>} : memref<2x160xf32, #tpu.memory_space<vmem>>, vector<1x160xf32>,
    %c16_i32_167 = arith.constant 16 : i32
    %314 = arith.addi %c16_i32_167, %306 : i32
    %315 = arith.index_cast %314 : i32 to index
    %c0_168 = arith.constant 0 : index
    %316 = vector.load %arg8[%315, %c0_168] : memref<32x64xf32, #tpu.memory_space<vmem>>, vector<1x64xf32>
    %c1_169 = arith.constant 1 : index
    %c0_170 = arith.constant 0 : index
    %317 = vector.load %arg7[%c1_169, %c0_170] : memref<8x128xf32, #tpu.memory_space<vmem>>, vector<1x64xf32>
    tpu.vector_store %arg7[%c1_169, %c0_170], %316 {strides = array<i32>} : memref<8x128xf32, #tpu.memory_space<vmem>>, vector<1x64xf32>,
    %c16_i32_171 = arith.constant 16 : i32
    %318 = arith.addi %c16_i32_171, %310 : i32
    %319 = arith.index_cast %318 : i32 to index
    %c0_172 = arith.constant 0 : index
    %320 = vector.load %arg8[%319, %c0_172] : memref<32x64xf32, #tpu.memory_space<vmem>>, vector<1x64xf32>
    %c1_173 = arith.constant 1 : index
    %c64_174 = arith.constant 64 : index
    %321 = vector.load %arg7[%c1_173, %c64_174] : memref<8x128xf32, #tpu.memory_space<vmem>>, vector<1x64xf32>
    tpu.vector_store %arg7[%c1_173, %c64_174], %320 {strides = array<i32>} : memref<8x128xf32, #tpu.memory_space<vmem>>, vector<1x64xf32>,
    %c0_175 = arith.constant 0 : index
    %c0_176 = arith.constant 0 : index
    %322 = vector.load %arg7[%c0_175, %c0_176] : memref<8x128xf32, #tpu.memory_space<vmem>>, vector<8x128xf32>
    %c0_177 = arith.constant 0 : index
    %c0_178 = arith.constant 0 : index
    %323 = vector.load %arg4[%c0_177, %c0_178] : memref<128x160xf32, #tpu.memory_space<vmem>>, vector<128x160xf32>
    %cst_179 = arith.constant dense<0.000000e+00> : vector<8x160xf32>
    %324 = tpu.matmul %322, %323, %cst_179 {dimension_numbers = #tpu.dot_dimension_numbers<[1], [0], [0], [1], [0, 0, 1, 1], [], []>} : vector<8x128xf32>, vector<128x160xf32>, vector<8x160xf32> -> vector<8x160xf32>
    %c0_180 = arith.constant 0 : index
    %c0_181 = arith.constant 0 : index
    %325 = vector.load %arg6[%c0_180, %c0_181] : memref<2x160xf32, #tpu.memory_space<vmem>>, vector<2x160xf32>
    %326 = vector.extract_strided_slice %324 {offsets = [0, 0], sizes = [2, 160], strides = [1, 1]} : vector<8x160xf32> to vector<2x160xf32>
    %327 = arith.addf %325, %326 : vector<2x160xf32>
    %328 = vector.extract_strided_slice %327 {offsets = [0, 0], sizes = [2, 128], strides = [1, 1]} : vector<2x160xf32> to vector<2x128xf32>
    %cst_182 = arith.constant 0.000000e+00 : f32
    %329 = vector.broadcast %cst_182 : f32 to vector<2x128xf32>
    %330 = arith.subf %329, %328 : vector<2x128xf32>
    %331 = math.exp %330 : vector<2x128xf32>
    %cst_183 = arith.constant 1.000000e+00 : f32
    %332 = vector.broadcast %cst_183 : f32 to vector<2x128xf32>
    %333 = arith.addf %332, %331 : vector<2x128xf32>
    %cst_184 = arith.constant 1.000000e+00 : f32
    %334 = vector.broadcast %cst_184 : f32 to vector<2x128xf32>
    %335 = arith.divf %334, %333 : vector<2x128xf32>
    %336 = vector.extract_strided_slice %335 {offsets = [0, 0], sizes = [2, 32], strides = [1, 1]} : vector<2x128xf32> to vector<2x32xf32>
    %337 = vector.extract_strided_slice %335 {offsets = [0, 32], sizes = [2, 32], strides = [1, 1]} : vector<2x128xf32> to vector<2x32xf32>
    %338 = vector.extract_strided_slice %335 {offsets = [0, 64], sizes = [2, 32], strides = [1, 1]} : vector<2x128xf32> to vector<2x32xf32>
    %339 = vector.extract_strided_slice %335 {offsets = [0, 96], sizes = [2, 32], strides = [1, 1]} : vector<2x128xf32> to vector<2x32xf32>
    %340 = vector.extract_strided_slice %327 {offsets = [0, 128], sizes = [2, 32], strides = [1, 1]} : vector<2x160xf32> to vector<2x32xf32>
    %341 = math.tanh %340 : vector<2x32xf32>
    %342 = vector.extract_strided_slice %322 {offsets = [0, 32], sizes = [2, 32], strides = [1, 1]} : vector<8x128xf32> to vector<2x32xf32>
    %343 = vector.extract_strided_slice %322 {offsets = [0, 96], sizes = [2, 32], strides = [1, 1]} : vector<8x128xf32> to vector<2x32xf32>
    %344 = arith.mulf %338, %341 : vector<2x32xf32>
    %345 = arith.mulf %336, %342 : vector<2x32xf32>
    %346 = arith.addf %344, %345 : vector<2x32xf32>
    %347 = arith.mulf %337, %343 : vector<2x32xf32>
    %348 = arith.addf %346, %347 : vector<2x32xf32>
    %349 = math.tanh %348 : vector<2x32xf32>
    %350 = arith.mulf %339, %349 : vector<2x32xf32>
    %351 = tpu.concatenate %350, %348 in 1 : vector<2x32xf32>, vector<2x32xf32> -> vector<2x64xf32>
    %352 = vector.extract_strided_slice %351 {offsets = [0, 0], sizes = [1, 64], strides = [1, 1]} : vector<2x64xf32> to vector<1x64xf32>
    %c0_i32_185 = arith.constant 0 : i32
    %353 = arith.addi %c0_i32_185, %c3_i32_143 : i32
    %c1_i32_186 = arith.constant 1 : i32
    %354 = arith.addi %353, %c1_i32_186 : i32
    %355 = arith.index_cast %354 : i32 to index
    %c0_187 = arith.constant 0 : index
    %356 = vector.load %arg8[%355, %c0_187] : memref<32x64xf32, #tpu.memory_space<vmem>>, vector<1x64xf32>
    tpu.vector_store %arg8[%355, %c0_187], %352 {strides = array<i32>} : memref<32x64xf32, #tpu.memory_space<vmem>>, vector<1x64xf32>,
    %357 = vector.extract_strided_slice %351 {offsets = [1, 0], sizes = [1, 64], strides = [1, 1]} : vector<2x64xf32> to vector<1x64xf32>
    %c16_i32_188 = arith.constant 16 : i32
    %358 = arith.addi %c16_i32_188, %c3_i32_143 : i32
    %c1_i32_189 = arith.constant 1 : i32
    %359 = arith.addi %358, %c1_i32_189 : i32
    %360 = arith.index_cast %359 : i32 to index
    %c0_190 = arith.constant 0 : index
    %361 = vector.load %arg8[%360, %c0_190] : memref<32x64xf32, #tpu.memory_space<vmem>>, vector<1x64xf32>
    tpu.vector_store %arg8[%360, %c0_190], %357 {strides = array<i32>} : memref<32x64xf32, #tpu.memory_space<vmem>>, vector<1x64xf32>,
    %c4_i32 = arith.constant 4 : i32
    %c3_i32_191 = arith.constant 3 : i32
    %362 = arith.muli %c3_i32_191, %c4_i32 : i32
    %c2_i32_192 = arith.constant 2 : i32
    %363 = arith.muli %arg0, %c2_i32_192 : i32
    %c0_i32_193 = arith.constant 0 : i32
    %364 = arith.addi %363, %c0_i32_193 : i32
    %365 = arith.index_cast %364 : i32 to index
    %366 = arith.index_cast %362 : i32 to index
    %367 = memref.load %arg1[%365, %366] : memref<4x24xi32, #tpu.memory_space<smem>>
    %c1_i32_194 = arith.constant 1 : i32
    %368 = arith.addi %362, %c1_i32_194 : i32
    %369 = arith.index_cast %364 : i32 to index
    %370 = arith.index_cast %368 : i32 to index
    %371 = memref.load %arg1[%369, %370] : memref<4x24xi32, #tpu.memory_space<smem>>
    %c2_i32_195 = arith.constant 2 : i32
    %372 = arith.addi %362, %c2_i32_195 : i32
    %373 = arith.index_cast %364 : i32 to index
    %374 = arith.index_cast %372 : i32 to index
    %375 = memref.load %arg1[%373, %374] : memref<4x24xi32, #tpu.memory_space<smem>>
    %376 = arith.index_cast %367 : i32 to index
    %c0_196 = arith.constant 0 : index
    %377 = vector.load %arg3[%376, %c0_196] : memref<16x160xf32, #tpu.memory_space<vmem>>, vector<1x160xf32>
    %c0_197 = arith.constant 0 : index
    %c0_198 = arith.constant 0 : index
    %378 = vector.load %arg6[%c0_197, %c0_198] : memref<2x160xf32, #tpu.memory_space<vmem>>, vector<1x160xf32>
    tpu.vector_store %arg6[%c0_197, %c0_198], %377 {strides = array<i32>} : memref<2x160xf32, #tpu.memory_space<vmem>>, vector<1x160xf32>,
    %c0_i32_199 = arith.constant 0 : i32
    %379 = arith.addi %c0_i32_199, %371 : i32
    %380 = arith.index_cast %379 : i32 to index
    %c0_200 = arith.constant 0 : index
    %381 = vector.load %arg8[%380, %c0_200] : memref<32x64xf32, #tpu.memory_space<vmem>>, vector<1x64xf32>
    %c0_201 = arith.constant 0 : index
    %c0_202 = arith.constant 0 : index
    %382 = vector.load %arg7[%c0_201, %c0_202] : memref<8x128xf32, #tpu.memory_space<vmem>>, vector<1x64xf32>
    tpu.vector_store %arg7[%c0_201, %c0_202], %381 {strides = array<i32>} : memref<8x128xf32, #tpu.memory_space<vmem>>, vector<1x64xf32>,
    %c0_i32_203 = arith.constant 0 : i32
    %383 = arith.addi %c0_i32_203, %375 : i32
    %384 = arith.index_cast %383 : i32 to index
    %c0_204 = arith.constant 0 : index
    %385 = vector.load %arg8[%384, %c0_204] : memref<32x64xf32, #tpu.memory_space<vmem>>, vector<1x64xf32>
    %c0_205 = arith.constant 0 : index
    %c64_206 = arith.constant 64 : index
    %386 = vector.load %arg7[%c0_205, %c64_206] : memref<8x128xf32, #tpu.memory_space<vmem>>, vector<1x64xf32>
    tpu.vector_store %arg7[%c0_205, %c64_206], %385 {strides = array<i32>} : memref<8x128xf32, #tpu.memory_space<vmem>>, vector<1x64xf32>,
    %c2_i32_207 = arith.constant 2 : i32
    %387 = arith.muli %arg0, %c2_i32_207 : i32
    %c1_i32_208 = arith.constant 1 : i32
    %388 = arith.addi %387, %c1_i32_208 : i32
    %389 = arith.index_cast %388 : i32 to index
    %390 = arith.index_cast %362 : i32 to index
    %391 = memref.load %arg1[%389, %390] : memref<4x24xi32, #tpu.memory_space<smem>>
    %c1_i32_209 = arith.constant 1 : i32
    %392 = arith.addi %362, %c1_i32_209 : i32
    %393 = arith.index_cast %388 : i32 to index
    %394 = arith.index_cast %392 : i32 to index
    %395 = memref.load %arg1[%393, %394] : memref<4x24xi32, #tpu.memory_space<smem>>
    %c2_i32_210 = arith.constant 2 : i32
    %396 = arith.addi %362, %c2_i32_210 : i32
    %397 = arith.index_cast %388 : i32 to index
    %398 = arith.index_cast %396 : i32 to index
    %399 = memref.load %arg1[%397, %398] : memref<4x24xi32, #tpu.memory_space<smem>>
    %400 = arith.index_cast %391 : i32 to index
    %c0_211 = arith.constant 0 : index
    %401 = vector.load %arg3[%400, %c0_211] : memref<16x160xf32, #tpu.memory_space<vmem>>, vector<1x160xf32>
    %c1_212 = arith.constant 1 : index
    %c0_213 = arith.constant 0 : index
    %402 = vector.load %arg6[%c1_212, %c0_213] : memref<2x160xf32, #tpu.memory_space<vmem>>, vector<1x160xf32>
    tpu.vector_store %arg6[%c1_212, %c0_213], %401 {strides = array<i32>} : memref<2x160xf32, #tpu.memory_space<vmem>>, vector<1x160xf32>,
    %c16_i32_214 = arith.constant 16 : i32
    %403 = arith.addi %c16_i32_214, %395 : i32
    %404 = arith.index_cast %403 : i32 to index
    %c0_215 = arith.constant 0 : index
    %405 = vector.load %arg8[%404, %c0_215] : memref<32x64xf32, #tpu.memory_space<vmem>>, vector<1x64xf32>
    %c1_216 = arith.constant 1 : index
    %c0_217 = arith.constant 0 : index
    %406 = vector.load %arg7[%c1_216, %c0_217] : memref<8x128xf32, #tpu.memory_space<vmem>>, vector<1x64xf32>
    tpu.vector_store %arg7[%c1_216, %c0_217], %405 {strides = array<i32>} : memref<8x128xf32, #tpu.memory_space<vmem>>, vector<1x64xf32>,
    %c16_i32_218 = arith.constant 16 : i32
    %407 = arith.addi %c16_i32_218, %399 : i32
    %408 = arith.index_cast %407 : i32 to index
    %c0_219 = arith.constant 0 : index
    %409 = vector.load %arg8[%408, %c0_219] : memref<32x64xf32, #tpu.memory_space<vmem>>, vector<1x64xf32>
    %c1_220 = arith.constant 1 : index
    %c64_221 = arith.constant 64 : index
    %410 = vector.load %arg7[%c1_220, %c64_221] : memref<8x128xf32, #tpu.memory_space<vmem>>, vector<1x64xf32>
    tpu.vector_store %arg7[%c1_220, %c64_221], %409 {strides = array<i32>} : memref<8x128xf32, #tpu.memory_space<vmem>>, vector<1x64xf32>,
    %c0_222 = arith.constant 0 : index
    %c0_223 = arith.constant 0 : index
    %411 = vector.load %arg7[%c0_222, %c0_223] : memref<8x128xf32, #tpu.memory_space<vmem>>, vector<8x128xf32>
    %c0_224 = arith.constant 0 : index
    %c0_225 = arith.constant 0 : index
    %412 = vector.load %arg4[%c0_224, %c0_225] : memref<128x160xf32, #tpu.memory_space<vmem>>, vector<128x160xf32>
    %cst_226 = arith.constant dense<0.000000e+00> : vector<8x160xf32>
    %413 = tpu.matmul %411, %412, %cst_226 {dimension_numbers = #tpu.dot_dimension_numbers<[1], [0], [0], [1], [0, 0, 1, 1], [], []>} : vector<8x128xf32>, vector<128x160xf32>, vector<8x160xf32> -> vector<8x160xf32>
    %c0_227 = arith.constant 0 : index
    %c0_228 = arith.constant 0 : index
    %414 = vector.load %arg6[%c0_227, %c0_228] : memref<2x160xf32, #tpu.memory_space<vmem>>, vector<2x160xf32>
    %415 = vector.extract_strided_slice %413 {offsets = [0, 0], sizes = [2, 160], strides = [1, 1]} : vector<8x160xf32> to vector<2x160xf32>
    %416 = arith.addf %414, %415 : vector<2x160xf32>
    %417 = vector.extract_strided_slice %416 {offsets = [0, 0], sizes = [2, 128], strides = [1, 1]} : vector<2x160xf32> to vector<2x128xf32>
    %cst_229 = arith.constant 0.000000e+00 : f32
    %418 = vector.broadcast %cst_229 : f32 to vector<2x128xf32>
    %419 = arith.subf %418, %417 : vector<2x128xf32>
    %420 = math.exp %419 : vector<2x128xf32>
    %cst_230 = arith.constant 1.000000e+00 : f32
    %421 = vector.broadcast %cst_230 : f32 to vector<2x128xf32>
    %422 = arith.addf %421, %420 : vector<2x128xf32>
    %cst_231 = arith.constant 1.000000e+00 : f32
    %423 = vector.broadcast %cst_231 : f32 to vector<2x128xf32>
    %424 = arith.divf %423, %422 : vector<2x128xf32>
    %425 = vector.extract_strided_slice %424 {offsets = [0, 0], sizes = [2, 32], strides = [1, 1]} : vector<2x128xf32> to vector<2x32xf32>
    %426 = vector.extract_strided_slice %424 {offsets = [0, 32], sizes = [2, 32], strides = [1, 1]} : vector<2x128xf32> to vector<2x32xf32>
    %427 = vector.extract_strided_slice %424 {offsets = [0, 64], sizes = [2, 32], strides = [1, 1]} : vector<2x128xf32> to vector<2x32xf32>
    %428 = vector.extract_strided_slice %424 {offsets = [0, 96], sizes = [2, 32], strides = [1, 1]} : vector<2x128xf32> to vector<2x32xf32>
    %429 = vector.extract_strided_slice %416 {offsets = [0, 128], sizes = [2, 32], strides = [1, 1]} : vector<2x160xf32> to vector<2x32xf32>
    %430 = math.tanh %429 : vector<2x32xf32>
    %431 = vector.extract_strided_slice %411 {offsets = [0, 32], sizes = [2, 32], strides = [1, 1]} : vector<8x128xf32> to vector<2x32xf32>
    %432 = vector.extract_strided_slice %411 {offsets = [0, 96], sizes = [2, 32], strides = [1, 1]} : vector<8x128xf32> to vector<2x32xf32>
    %433 = arith.mulf %427, %430 : vector<2x32xf32>
    %434 = arith.mulf %425, %431 : vector<2x32xf32>
    %435 = arith.addf %433, %434 : vector<2x32xf32>
    %436 = arith.mulf %426, %432 : vector<2x32xf32>
    %437 = arith.addf %435, %436 : vector<2x32xf32>
    %438 = math.tanh %437 : vector<2x32xf32>
    %439 = arith.mulf %428, %438 : vector<2x32xf32>
    %440 = tpu.concatenate %439, %437 in 1 : vector<2x32xf32>, vector<2x32xf32> -> vector<2x64xf32>
    %441 = vector.extract_strided_slice %440 {offsets = [0, 0], sizes = [1, 64], strides = [1, 1]} : vector<2x64xf32> to vector<1x64xf32>
    %c0_i32_232 = arith.constant 0 : i32
    %442 = arith.addi %c0_i32_232, %c4_i32 : i32
    %c1_i32_233 = arith.constant 1 : i32
    %443 = arith.addi %442, %c1_i32_233 : i32
    %444 = arith.index_cast %443 : i32 to index
    %c0_234 = arith.constant 0 : index
    %445 = vector.load %arg8[%444, %c0_234] : memref<32x64xf32, #tpu.memory_space<vmem>>, vector<1x64xf32>
    tpu.vector_store %arg8[%444, %c0_234], %441 {strides = array<i32>} : memref<32x64xf32, #tpu.memory_space<vmem>>, vector<1x64xf32>,
    %446 = vector.extract_strided_slice %440 {offsets = [1, 0], sizes = [1, 64], strides = [1, 1]} : vector<2x64xf32> to vector<1x64xf32>
    %c16_i32_235 = arith.constant 16 : i32
    %447 = arith.addi %c16_i32_235, %c4_i32 : i32
    %c1_i32_236 = arith.constant 1 : i32
    %448 = arith.addi %447, %c1_i32_236 : i32
    %449 = arith.index_cast %448 : i32 to index
    %c0_237 = arith.constant 0 : index
    %450 = vector.load %arg8[%449, %c0_237] : memref<32x64xf32, #tpu.memory_space<vmem>>, vector<1x64xf32>
    tpu.vector_store %arg8[%449, %c0_237], %446 {strides = array<i32>} : memref<32x64xf32, #tpu.memory_space<vmem>>, vector<1x64xf32>,
    %c5_i32 = arith.constant 5 : i32
    %c3_i32_238 = arith.constant 3 : i32
    %451 = arith.muli %c3_i32_238, %c5_i32 : i32
    %c2_i32_239 = arith.constant 2 : i32
    %452 = arith.muli %arg0, %c2_i32_239 : i32
    %c0_i32_240 = arith.constant 0 : i32
    %453 = arith.addi %452, %c0_i32_240 : i32
    %454 = arith.index_cast %453 : i32 to index
    %455 = arith.index_cast %451 : i32 to index
    %456 = memref.load %arg1[%454, %455] : memref<4x24xi32, #tpu.memory_space<smem>>
    %c1_i32_241 = arith.constant 1 : i32
    %457 = arith.addi %451, %c1_i32_241 : i32
    %458 = arith.index_cast %453 : i32 to index
    %459 = arith.index_cast %457 : i32 to index
    %460 = memref.load %arg1[%458, %459] : memref<4x24xi32, #tpu.memory_space<smem>>
    %c2_i32_242 = arith.constant 2 : i32
    %461 = arith.addi %451, %c2_i32_242 : i32
    %462 = arith.index_cast %453 : i32 to index
    %463 = arith.index_cast %461 : i32 to index
    %464 = memref.load %arg1[%462, %463] : memref<4x24xi32, #tpu.memory_space<smem>>
    %465 = arith.index_cast %456 : i32 to index
    %c0_243 = arith.constant 0 : index
    %466 = vector.load %arg3[%465, %c0_243] : memref<16x160xf32, #tpu.memory_space<vmem>>, vector<1x160xf32>
    %c0_244 = arith.constant 0 : index
    %c0_245 = arith.constant 0 : index
    %467 = vector.load %arg6[%c0_244, %c0_245] : memref<2x160xf32, #tpu.memory_space<vmem>>, vector<1x160xf32>
    tpu.vector_store %arg6[%c0_244, %c0_245], %466 {strides = array<i32>} : memref<2x160xf32, #tpu.memory_space<vmem>>, vector<1x160xf32>,
    %c0_i32_246 = arith.constant 0 : i32
    %468 = arith.addi %c0_i32_246, %460 : i32
    %469 = arith.index_cast %468 : i32 to index
    %c0_247 = arith.constant 0 : index
    %470 = vector.load %arg8[%469, %c0_247] : memref<32x64xf32, #tpu.memory_space<vmem>>, vector<1x64xf32>
    %c0_248 = arith.constant 0 : index
    %c0_249 = arith.constant 0 : index
    %471 = vector.load %arg7[%c0_248, %c0_249] : memref<8x128xf32, #tpu.memory_space<vmem>>, vector<1x64xf32>
    tpu.vector_store %arg7[%c0_248, %c0_249], %470 {strides = array<i32>} : memref<8x128xf32, #tpu.memory_space<vmem>>, vector<1x64xf32>,
    %c0_i32_250 = arith.constant 0 : i32
    %472 = arith.addi %c0_i32_250, %464 : i32
    %473 = arith.index_cast %472 : i32 to index
    %c0_251 = arith.constant 0 : index
    %474 = vector.load %arg8[%473, %c0_251] : memref<32x64xf32, #tpu.memory_space<vmem>>, vector<1x64xf32>
    %c0_252 = arith.constant 0 : index
    %c64_253 = arith.constant 64 : index
    %475 = vector.load %arg7[%c0_252, %c64_253] : memref<8x128xf32, #tpu.memory_space<vmem>>, vector<1x64xf32>
    tpu.vector_store %arg7[%c0_252, %c64_253], %474 {strides = array<i32>} : memref<8x128xf32, #tpu.memory_space<vmem>>, vector<1x64xf32>,
    %c2_i32_254 = arith.constant 2 : i32
    %476 = arith.muli %arg0, %c2_i32_254 : i32
    %c1_i32_255 = arith.constant 1 : i32
    %477 = arith.addi %476, %c1_i32_255 : i32
    %478 = arith.index_cast %477 : i32 to index
    %479 = arith.index_cast %451 : i32 to index
    %480 = memref.load %arg1[%478, %479] : memref<4x24xi32, #tpu.memory_space<smem>>
    %c1_i32_256 = arith.constant 1 : i32
    %481 = arith.addi %451, %c1_i32_256 : i32
    %482 = arith.index_cast %477 : i32 to index
    %483 = arith.index_cast %481 : i32 to index
    %484 = memref.load %arg1[%482, %483] : memref<4x24xi32, #tpu.memory_space<smem>>
    %c2_i32_257 = arith.constant 2 : i32
    %485 = arith.addi %451, %c2_i32_257 : i32
    %486 = arith.index_cast %477 : i32 to index
    %487 = arith.index_cast %485 : i32 to index
    %488 = memref.load %arg1[%486, %487] : memref<4x24xi32, #tpu.memory_space<smem>>
    %489 = arith.index_cast %480 : i32 to index
    %c0_258 = arith.constant 0 : index
    %490 = vector.load %arg3[%489, %c0_258] : memref<16x160xf32, #tpu.memory_space<vmem>>, vector<1x160xf32>
    %c1_259 = arith.constant 1 : index
    %c0_260 = arith.constant 0 : index
    %491 = vector.load %arg6[%c1_259, %c0_260] : memref<2x160xf32, #tpu.memory_space<vmem>>, vector<1x160xf32>
    tpu.vector_store %arg6[%c1_259, %c0_260], %490 {strides = array<i32>} : memref<2x160xf32, #tpu.memory_space<vmem>>, vector<1x160xf32>,
    %c16_i32_261 = arith.constant 16 : i32
    %492 = arith.addi %c16_i32_261, %484 : i32
    %493 = arith.index_cast %492 : i32 to index
    %c0_262 = arith.constant 0 : index
    %494 = vector.load %arg8[%493, %c0_262] : memref<32x64xf32, #tpu.memory_space<vmem>>, vector<1x64xf32>
    %c1_263 = arith.constant 1 : index
    %c0_264 = arith.constant 0 : index
    %495 = vector.load %arg7[%c1_263, %c0_264] : memref<8x128xf32, #tpu.memory_space<vmem>>, vector<1x64xf32>
    tpu.vector_store %arg7[%c1_263, %c0_264], %494 {strides = array<i32>} : memref<8x128xf32, #tpu.memory_space<vmem>>, vector<1x64xf32>,
    %c16_i32_265 = arith.constant 16 : i32
    %496 = arith.addi %c16_i32_265, %488 : i32
    %497 = arith.index_cast %496 : i32 to index
    %c0_266 = arith.constant 0 : index
    %498 = vector.load %arg8[%497, %c0_266] : memref<32x64xf32, #tpu.memory_space<vmem>>, vector<1x64xf32>
    %c1_267 = arith.constant 1 : index
    %c64_268 = arith.constant 64 : index
    %499 = vector.load %arg7[%c1_267, %c64_268] : memref<8x128xf32, #tpu.memory_space<vmem>>, vector<1x64xf32>
    tpu.vector_store %arg7[%c1_267, %c64_268], %498 {strides = array<i32>} : memref<8x128xf32, #tpu.memory_space<vmem>>, vector<1x64xf32>,
    %c0_269 = arith.constant 0 : index
    %c0_270 = arith.constant 0 : index
    %500 = vector.load %arg7[%c0_269, %c0_270] : memref<8x128xf32, #tpu.memory_space<vmem>>, vector<8x128xf32>
    %c0_271 = arith.constant 0 : index
    %c0_272 = arith.constant 0 : index
    %501 = vector.load %arg4[%c0_271, %c0_272] : memref<128x160xf32, #tpu.memory_space<vmem>>, vector<128x160xf32>
    %cst_273 = arith.constant dense<0.000000e+00> : vector<8x160xf32>
    %502 = tpu.matmul %500, %501, %cst_273 {dimension_numbers = #tpu.dot_dimension_numbers<[1], [0], [0], [1], [0, 0, 1, 1], [], []>} : vector<8x128xf32>, vector<128x160xf32>, vector<8x160xf32> -> vector<8x160xf32>
    %c0_274 = arith.constant 0 : index
    %c0_275 = arith.constant 0 : index
    %503 = vector.load %arg6[%c0_274, %c0_275] : memref<2x160xf32, #tpu.memory_space<vmem>>, vector<2x160xf32>
    %504 = vector.extract_strided_slice %502 {offsets = [0, 0], sizes = [2, 160], strides = [1, 1]} : vector<8x160xf32> to vector<2x160xf32>
    %505 = arith.addf %503, %504 : vector<2x160xf32>
    %506 = vector.extract_strided_slice %505 {offsets = [0, 0], sizes = [2, 128], strides = [1, 1]} : vector<2x160xf32> to vector<2x128xf32>
    %cst_276 = arith.constant 0.000000e+00 : f32
    %507 = vector.broadcast %cst_276 : f32 to vector<2x128xf32>
    %508 = arith.subf %507, %506 : vector<2x128xf32>
    %509 = math.exp %508 : vector<2x128xf32>
    %cst_277 = arith.constant 1.000000e+00 : f32
    %510 = vector.broadcast %cst_277 : f32 to vector<2x128xf32>
    %511 = arith.addf %510, %509 : vector<2x128xf32>
    %cst_278 = arith.constant 1.000000e+00 : f32
    %512 = vector.broadcast %cst_278 : f32 to vector<2x128xf32>
    %513 = arith.divf %512, %511 : vector<2x128xf32>
    %514 = vector.extract_strided_slice %513 {offsets = [0, 0], sizes = [2, 32], strides = [1, 1]} : vector<2x128xf32> to vector<2x32xf32>
    %515 = vector.extract_strided_slice %513 {offsets = [0, 32], sizes = [2, 32], strides = [1, 1]} : vector<2x128xf32> to vector<2x32xf32>
    %516 = vector.extract_strided_slice %513 {offsets = [0, 64], sizes = [2, 32], strides = [1, 1]} : vector<2x128xf32> to vector<2x32xf32>
    %517 = vector.extract_strided_slice %513 {offsets = [0, 96], sizes = [2, 32], strides = [1, 1]} : vector<2x128xf32> to vector<2x32xf32>
    %518 = vector.extract_strided_slice %505 {offsets = [0, 128], sizes = [2, 32], strides = [1, 1]} : vector<2x160xf32> to vector<2x32xf32>
    %519 = math.tanh %518 : vector<2x32xf32>
    %520 = vector.extract_strided_slice %500 {offsets = [0, 32], sizes = [2, 32], strides = [1, 1]} : vector<8x128xf32> to vector<2x32xf32>
    %521 = vector.extract_strided_slice %500 {offsets = [0, 96], sizes = [2, 32], strides = [1, 1]} : vector<8x128xf32> to vector<2x32xf32>
    %522 = arith.mulf %516, %519 : vector<2x32xf32>
    %523 = arith.mulf %514, %520 : vector<2x32xf32>
    %524 = arith.addf %522, %523 : vector<2x32xf32>
    %525 = arith.mulf %515, %521 : vector<2x32xf32>
    %526 = arith.addf %524, %525 : vector<2x32xf32>
    %527 = math.tanh %526 : vector<2x32xf32>
    %528 = arith.mulf %517, %527 : vector<2x32xf32>
    %529 = tpu.concatenate %528, %526 in 1 : vector<2x32xf32>, vector<2x32xf32> -> vector<2x64xf32>
    %530 = vector.extract_strided_slice %529 {offsets = [0, 0], sizes = [1, 64], strides = [1, 1]} : vector<2x64xf32> to vector<1x64xf32>
    %c0_i32_279 = arith.constant 0 : i32
    %531 = arith.addi %c0_i32_279, %c5_i32 : i32
    %c1_i32_280 = arith.constant 1 : i32
    %532 = arith.addi %531, %c1_i32_280 : i32
    %533 = arith.index_cast %532 : i32 to index
    %c0_281 = arith.constant 0 : index
    %534 = vector.load %arg8[%533, %c0_281] : memref<32x64xf32, #tpu.memory_space<vmem>>, vector<1x64xf32>
    tpu.vector_store %arg8[%533, %c0_281], %530 {strides = array<i32>} : memref<32x64xf32, #tpu.memory_space<vmem>>, vector<1x64xf32>,
    %535 = vector.extract_strided_slice %529 {offsets = [1, 0], sizes = [1, 64], strides = [1, 1]} : vector<2x64xf32> to vector<1x64xf32>
    %c16_i32_282 = arith.constant 16 : i32
    %536 = arith.addi %c16_i32_282, %c5_i32 : i32
    %c1_i32_283 = arith.constant 1 : i32
    %537 = arith.addi %536, %c1_i32_283 : i32
    %538 = arith.index_cast %537 : i32 to index
    %c0_284 = arith.constant 0 : index
    %539 = vector.load %arg8[%538, %c0_284] : memref<32x64xf32, #tpu.memory_space<vmem>>, vector<1x64xf32>
    tpu.vector_store %arg8[%538, %c0_284], %535 {strides = array<i32>} : memref<32x64xf32, #tpu.memory_space<vmem>>, vector<1x64xf32>,
    %c6_i32 = arith.constant 6 : i32
    %c3_i32_285 = arith.constant 3 : i32
    %540 = arith.muli %c3_i32_285, %c6_i32 : i32
    %c2_i32_286 = arith.constant 2 : i32
    %541 = arith.muli %arg0, %c2_i32_286 : i32
    %c0_i32_287 = arith.constant 0 : i32
    %542 = arith.addi %541, %c0_i32_287 : i32
    %543 = arith.index_cast %542 : i32 to index
    %544 = arith.index_cast %540 : i32 to index
    %545 = memref.load %arg1[%543, %544] : memref<4x24xi32, #tpu.memory_space<smem>>
    %c1_i32_288 = arith.constant 1 : i32
    %546 = arith.addi %540, %c1_i32_288 : i32
    %547 = arith.index_cast %542 : i32 to index
    %548 = arith.index_cast %546 : i32 to index
    %549 = memref.load %arg1[%547, %548] : memref<4x24xi32, #tpu.memory_space<smem>>
    %c2_i32_289 = arith.constant 2 : i32
    %550 = arith.addi %540, %c2_i32_289 : i32
    %551 = arith.index_cast %542 : i32 to index
    %552 = arith.index_cast %550 : i32 to index
    %553 = memref.load %arg1[%551, %552] : memref<4x24xi32, #tpu.memory_space<smem>>
    %554 = arith.index_cast %545 : i32 to index
    %c0_290 = arith.constant 0 : index
    %555 = vector.load %arg3[%554, %c0_290] : memref<16x160xf32, #tpu.memory_space<vmem>>, vector<1x160xf32>
    %c0_291 = arith.constant 0 : index
    %c0_292 = arith.constant 0 : index
    %556 = vector.load %arg6[%c0_291, %c0_292] : memref<2x160xf32, #tpu.memory_space<vmem>>, vector<1x160xf32>
    tpu.vector_store %arg6[%c0_291, %c0_292], %555 {strides = array<i32>} : memref<2x160xf32, #tpu.memory_space<vmem>>, vector<1x160xf32>,
    %c0_i32_293 = arith.constant 0 : i32
    %557 = arith.addi %c0_i32_293, %549 : i32
    %558 = arith.index_cast %557 : i32 to index
    %c0_294 = arith.constant 0 : index
    %559 = vector.load %arg8[%558, %c0_294] : memref<32x64xf32, #tpu.memory_space<vmem>>, vector<1x64xf32>
    %c0_295 = arith.constant 0 : index
    %c0_296 = arith.constant 0 : index
    %560 = vector.load %arg7[%c0_295, %c0_296] : memref<8x128xf32, #tpu.memory_space<vmem>>, vector<1x64xf32>
    tpu.vector_store %arg7[%c0_295, %c0_296], %559 {strides = array<i32>} : memref<8x128xf32, #tpu.memory_space<vmem>>, vector<1x64xf32>,
    %c0_i32_297 = arith.constant 0 : i32
    %561 = arith.addi %c0_i32_297, %553 : i32
    %562 = arith.index_cast %561 : i32 to index
    %c0_298 = arith.constant 0 : index
    %563 = vector.load %arg8[%562, %c0_298] : memref<32x64xf32, #tpu.memory_space<vmem>>, vector<1x64xf32>
    %c0_299 = arith.constant 0 : index
    %c64_300 = arith.constant 64 : index
    %564 = vector.load %arg7[%c0_299, %c64_300] : memref<8x128xf32, #tpu.memory_space<vmem>>, vector<1x64xf32>
    tpu.vector_store %arg7[%c0_299, %c64_300], %563 {strides = array<i32>} : memref<8x128xf32, #tpu.memory_space<vmem>>, vector<1x64xf32>,
    %c2_i32_301 = arith.constant 2 : i32
    %565 = arith.muli %arg0, %c2_i32_301 : i32
    %c1_i32_302 = arith.constant 1 : i32
    %566 = arith.addi %565, %c1_i32_302 : i32
    %567 = arith.index_cast %566 : i32 to index
    %568 = arith.index_cast %540 : i32 to index
    %569 = memref.load %arg1[%567, %568] : memref<4x24xi32, #tpu.memory_space<smem>>
    %c1_i32_303 = arith.constant 1 : i32
    %570 = arith.addi %540, %c1_i32_303 : i32
    %571 = arith.index_cast %566 : i32 to index
    %572 = arith.index_cast %570 : i32 to index
    %573 = memref.load %arg1[%571, %572] : memref<4x24xi32, #tpu.memory_space<smem>>
    %c2_i32_304 = arith.constant 2 : i32
    %574 = arith.addi %540, %c2_i32_304 : i32
    %575 = arith.index_cast %566 : i32 to index
    %576 = arith.index_cast %574 : i32 to index
    %577 = memref.load %arg1[%575, %576] : memref<4x24xi32, #tpu.memory_space<smem>>
    %578 = arith.index_cast %569 : i32 to index
    %c0_305 = arith.constant 0 : index
    %579 = vector.load %arg3[%578, %c0_305] : memref<16x160xf32, #tpu.memory_space<vmem>>, vector<1x160xf32>
    %c1_306 = arith.constant 1 : index
    %c0_307 = arith.constant 0 : index
    %580 = vector.load %arg6[%c1_306, %c0_307] : memref<2x160xf32, #tpu.memory_space<vmem>>, vector<1x160xf32>
    tpu.vector_store %arg6[%c1_306, %c0_307], %579 {strides = array<i32>} : memref<2x160xf32, #tpu.memory_space<vmem>>, vector<1x160xf32>,
    %c16_i32_308 = arith.constant 16 : i32
    %581 = arith.addi %c16_i32_308, %573 : i32
    %582 = arith.index_cast %581 : i32 to index
    %c0_309 = arith.constant 0 : index
    %583 = vector.load %arg8[%582, %c0_309] : memref<32x64xf32, #tpu.memory_space<vmem>>, vector<1x64xf32>
    %c1_310 = arith.constant 1 : index
    %c0_311 = arith.constant 0 : index
    %584 = vector.load %arg7[%c1_310, %c0_311] : memref<8x128xf32, #tpu.memory_space<vmem>>, vector<1x64xf32>
    tpu.vector_store %arg7[%c1_310, %c0_311], %583 {strides = array<i32>} : memref<8x128xf32, #tpu.memory_space<vmem>>, vector<1x64xf32>,
    %c16_i32_312 = arith.constant 16 : i32
    %585 = arith.addi %c16_i32_312, %577 : i32
    %586 = arith.index_cast %585 : i32 to index
    %c0_313 = arith.constant 0 : index
    %587 = vector.load %arg8[%586, %c0_313] : memref<32x64xf32, #tpu.memory_space<vmem>>, vector<1x64xf32>
    %c1_314 = arith.constant 1 : index
    %c64_315 = arith.constant 64 : index
    %588 = vector.load %arg7[%c1_314, %c64_315] : memref<8x128xf32, #tpu.memory_space<vmem>>, vector<1x64xf32>
    tpu.vector_store %arg7[%c1_314, %c64_315], %587 {strides = array<i32>} : memref<8x128xf32, #tpu.memory_space<vmem>>, vector<1x64xf32>,
    %c0_316 = arith.constant 0 : index
    %c0_317 = arith.constant 0 : index
    %589 = vector.load %arg7[%c0_316, %c0_317] : memref<8x128xf32, #tpu.memory_space<vmem>>, vector<8x128xf32>
    %c0_318 = arith.constant 0 : index
    %c0_319 = arith.constant 0 : index
    %590 = vector.load %arg4[%c0_318, %c0_319] : memref<128x160xf32, #tpu.memory_space<vmem>>, vector<128x160xf32>
    %cst_320 = arith.constant dense<0.000000e+00> : vector<8x160xf32>
    %591 = tpu.matmul %589, %590, %cst_320 {dimension_numbers = #tpu.dot_dimension_numbers<[1], [0], [0], [1], [0, 0, 1, 1], [], []>} : vector<8x128xf32>, vector<128x160xf32>, vector<8x160xf32> -> vector<8x160xf32>
    %c0_321 = arith.constant 0 : index
    %c0_322 = arith.constant 0 : index
    %592 = vector.load %arg6[%c0_321, %c0_322] : memref<2x160xf32, #tpu.memory_space<vmem>>, vector<2x160xf32>
    %593 = vector.extract_strided_slice %591 {offsets = [0, 0], sizes = [2, 160], strides = [1, 1]} : vector<8x160xf32> to vector<2x160xf32>
    %594 = arith.addf %592, %593 : vector<2x160xf32>
    %595 = vector.extract_strided_slice %594 {offsets = [0, 0], sizes = [2, 128], strides = [1, 1]} : vector<2x160xf32> to vector<2x128xf32>
    %cst_323 = arith.constant 0.000000e+00 : f32
    %596 = vector.broadcast %cst_323 : f32 to vector<2x128xf32>
    %597 = arith.subf %596, %595 : vector<2x128xf32>
    %598 = math.exp %597 : vector<2x128xf32>
    %cst_324 = arith.constant 1.000000e+00 : f32
    %599 = vector.broadcast %cst_324 : f32 to vector<2x128xf32>
    %600 = arith.addf %599, %598 : vector<2x128xf32>
    %cst_325 = arith.constant 1.000000e+00 : f32
    %601 = vector.broadcast %cst_325 : f32 to vector<2x128xf32>
    %602 = arith.divf %601, %600 : vector<2x128xf32>
    %603 = vector.extract_strided_slice %602 {offsets = [0, 0], sizes = [2, 32], strides = [1, 1]} : vector<2x128xf32> to vector<2x32xf32>
    %604 = vector.extract_strided_slice %602 {offsets = [0, 32], sizes = [2, 32], strides = [1, 1]} : vector<2x128xf32> to vector<2x32xf32>
    %605 = vector.extract_strided_slice %602 {offsets = [0, 64], sizes = [2, 32], strides = [1, 1]} : vector<2x128xf32> to vector<2x32xf32>
    %606 = vector.extract_strided_slice %602 {offsets = [0, 96], sizes = [2, 32], strides = [1, 1]} : vector<2x128xf32> to vector<2x32xf32>
    %607 = vector.extract_strided_slice %594 {offsets = [0, 128], sizes = [2, 32], strides = [1, 1]} : vector<2x160xf32> to vector<2x32xf32>
    %608 = math.tanh %607 : vector<2x32xf32>
    %609 = vector.extract_strided_slice %589 {offsets = [0, 32], sizes = [2, 32], strides = [1, 1]} : vector<8x128xf32> to vector<2x32xf32>
    %610 = vector.extract_strided_slice %589 {offsets = [0, 96], sizes = [2, 32], strides = [1, 1]} : vector<8x128xf32> to vector<2x32xf32>
    %611 = arith.mulf %605, %608 : vector<2x32xf32>
    %612 = arith.mulf %603, %609 : vector<2x32xf32>
    %613 = arith.addf %611, %612 : vector<2x32xf32>
    %614 = arith.mulf %604, %610 : vector<2x32xf32>
    %615 = arith.addf %613, %614 : vector<2x32xf32>
    %616 = math.tanh %615 : vector<2x32xf32>
    %617 = arith.mulf %606, %616 : vector<2x32xf32>
    %618 = tpu.concatenate %617, %615 in 1 : vector<2x32xf32>, vector<2x32xf32> -> vector<2x64xf32>
    %619 = vector.extract_strided_slice %618 {offsets = [0, 0], sizes = [1, 64], strides = [1, 1]} : vector<2x64xf32> to vector<1x64xf32>
    %c0_i32_326 = arith.constant 0 : i32
    %620 = arith.addi %c0_i32_326, %c6_i32 : i32
    %c1_i32_327 = arith.constant 1 : i32
    %621 = arith.addi %620, %c1_i32_327 : i32
    %622 = arith.index_cast %621 : i32 to index
    %c0_328 = arith.constant 0 : index
    %623 = vector.load %arg8[%622, %c0_328] : memref<32x64xf32, #tpu.memory_space<vmem>>, vector<1x64xf32>
    tpu.vector_store %arg8[%622, %c0_328], %619 {strides = array<i32>} : memref<32x64xf32, #tpu.memory_space<vmem>>, vector<1x64xf32>,
    %624 = vector.extract_strided_slice %618 {offsets = [1, 0], sizes = [1, 64], strides = [1, 1]} : vector<2x64xf32> to vector<1x64xf32>
    %c16_i32_329 = arith.constant 16 : i32
    %625 = arith.addi %c16_i32_329, %c6_i32 : i32
    %c1_i32_330 = arith.constant 1 : i32
    %626 = arith.addi %625, %c1_i32_330 : i32
    %627 = arith.index_cast %626 : i32 to index
    %c0_331 = arith.constant 0 : index
    %628 = vector.load %arg8[%627, %c0_331] : memref<32x64xf32, #tpu.memory_space<vmem>>, vector<1x64xf32>
    tpu.vector_store %arg8[%627, %c0_331], %624 {strides = array<i32>} : memref<32x64xf32, #tpu.memory_space<vmem>>, vector<1x64xf32>,
    %c7_i32 = arith.constant 7 : i32
    %c3_i32_332 = arith.constant 3 : i32
    %629 = arith.muli %c3_i32_332, %c7_i32 : i32
    %c2_i32_333 = arith.constant 2 : i32
    %630 = arith.muli %arg0, %c2_i32_333 : i32
    %c0_i32_334 = arith.constant 0 : i32
    %631 = arith.addi %630, %c0_i32_334 : i32
    %632 = arith.index_cast %631 : i32 to index
    %633 = arith.index_cast %629 : i32 to index
    %634 = memref.load %arg1[%632, %633] : memref<4x24xi32, #tpu.memory_space<smem>>
    %c1_i32_335 = arith.constant 1 : i32
    %635 = arith.addi %629, %c1_i32_335 : i32
    %636 = arith.index_cast %631 : i32 to index
    %637 = arith.index_cast %635 : i32 to index
    %638 = memref.load %arg1[%636, %637] : memref<4x24xi32, #tpu.memory_space<smem>>
    %c2_i32_336 = arith.constant 2 : i32
    %639 = arith.addi %629, %c2_i32_336 : i32
    %640 = arith.index_cast %631 : i32 to index
    %641 = arith.index_cast %639 : i32 to index
    %642 = memref.load %arg1[%640, %641] : memref<4x24xi32, #tpu.memory_space<smem>>
    %643 = arith.index_cast %634 : i32 to index
    %c0_337 = arith.constant 0 : index
    %644 = vector.load %arg3[%643, %c0_337] : memref<16x160xf32, #tpu.memory_space<vmem>>, vector<1x160xf32>
    %c0_338 = arith.constant 0 : index
    %c0_339 = arith.constant 0 : index
    %645 = vector.load %arg6[%c0_338, %c0_339] : memref<2x160xf32, #tpu.memory_space<vmem>>, vector<1x160xf32>
    tpu.vector_store %arg6[%c0_338, %c0_339], %644 {strides = array<i32>} : memref<2x160xf32, #tpu.memory_space<vmem>>, vector<1x160xf32>,
    %c0_i32_340 = arith.constant 0 : i32
    %646 = arith.addi %c0_i32_340, %638 : i32
    %647 = arith.index_cast %646 : i32 to index
    %c0_341 = arith.constant 0 : index
    %648 = vector.load %arg8[%647, %c0_341] : memref<32x64xf32, #tpu.memory_space<vmem>>, vector<1x64xf32>
    %c0_342 = arith.constant 0 : index
    %c0_343 = arith.constant 0 : index
    %649 = vector.load %arg7[%c0_342, %c0_343] : memref<8x128xf32, #tpu.memory_space<vmem>>, vector<1x64xf32>
    tpu.vector_store %arg7[%c0_342, %c0_343], %648 {strides = array<i32>} : memref<8x128xf32, #tpu.memory_space<vmem>>, vector<1x64xf32>,
    %c0_i32_344 = arith.constant 0 : i32
    %650 = arith.addi %c0_i32_344, %642 : i32
    %651 = arith.index_cast %650 : i32 to index
    %c0_345 = arith.constant 0 : index
    %652 = vector.load %arg8[%651, %c0_345] : memref<32x64xf32, #tpu.memory_space<vmem>>, vector<1x64xf32>
    %c0_346 = arith.constant 0 : index
    %c64_347 = arith.constant 64 : index
    %653 = vector.load %arg7[%c0_346, %c64_347] : memref<8x128xf32, #tpu.memory_space<vmem>>, vector<1x64xf32>
    tpu.vector_store %arg7[%c0_346, %c64_347], %652 {strides = array<i32>} : memref<8x128xf32, #tpu.memory_space<vmem>>, vector<1x64xf32>,
    %c2_i32_348 = arith.constant 2 : i32
    %654 = arith.muli %arg0, %c2_i32_348 : i32
    %c1_i32_349 = arith.constant 1 : i32
    %655 = arith.addi %654, %c1_i32_349 : i32
    %656 = arith.index_cast %655 : i32 to index
    %657 = arith.index_cast %629 : i32 to index
    %658 = memref.load %arg1[%656, %657] : memref<4x24xi32, #tpu.memory_space<smem>>
    %c1_i32_350 = arith.constant 1 : i32
    %659 = arith.addi %629, %c1_i32_350 : i32
    %660 = arith.index_cast %655 : i32 to index
    %661 = arith.index_cast %659 : i32 to index
    %662 = memref.load %arg1[%660, %661] : memref<4x24xi32, #tpu.memory_space<smem>>
    %c2_i32_351 = arith.constant 2 : i32
    %663 = arith.addi %629, %c2_i32_351 : i32
    %664 = arith.index_cast %655 : i32 to index
    %665 = arith.index_cast %663 : i32 to index
    %666 = memref.load %arg1[%664, %665] : memref<4x24xi32, #tpu.memory_space<smem>>
    %667 = arith.index_cast %658 : i32 to index
    %c0_352 = arith.constant 0 : index
    %668 = vector.load %arg3[%667, %c0_352] : memref<16x160xf32, #tpu.memory_space<vmem>>, vector<1x160xf32>
    %c1_353 = arith.constant 1 : index
    %c0_354 = arith.constant 0 : index
    %669 = vector.load %arg6[%c1_353, %c0_354] : memref<2x160xf32, #tpu.memory_space<vmem>>, vector<1x160xf32>
    tpu.vector_store %arg6[%c1_353, %c0_354], %668 {strides = array<i32>} : memref<2x160xf32, #tpu.memory_space<vmem>>, vector<1x160xf32>,
    %c16_i32_355 = arith.constant 16 : i32
    %670 = arith.addi %c16_i32_355, %662 : i32
    %671 = arith.index_cast %670 : i32 to index
    %c0_356 = arith.constant 0 : index
    %672 = vector.load %arg8[%671, %c0_356] : memref<32x64xf32, #tpu.memory_space<vmem>>, vector<1x64xf32>
    %c1_357 = arith.constant 1 : index
    %c0_358 = arith.constant 0 : index
    %673 = vector.load %arg7[%c1_357, %c0_358] : memref<8x128xf32, #tpu.memory_space<vmem>>, vector<1x64xf32>
    tpu.vector_store %arg7[%c1_357, %c0_358], %672 {strides = array<i32>} : memref<8x128xf32, #tpu.memory_space<vmem>>, vector<1x64xf32>,
    %c16_i32_359 = arith.constant 16 : i32
    %674 = arith.addi %c16_i32_359, %666 : i32
    %675 = arith.index_cast %674 : i32 to index
    %c0_360 = arith.constant 0 : index
    %676 = vector.load %arg8[%675, %c0_360] : memref<32x64xf32, #tpu.memory_space<vmem>>, vector<1x64xf32>
    %c1_361 = arith.constant 1 : index
    %c64_362 = arith.constant 64 : index
    %677 = vector.load %arg7[%c1_361, %c64_362] : memref<8x128xf32, #tpu.memory_space<vmem>>, vector<1x64xf32>
    tpu.vector_store %arg7[%c1_361, %c64_362], %676 {strides = array<i32>} : memref<8x128xf32, #tpu.memory_space<vmem>>, vector<1x64xf32>,
    %c0_363 = arith.constant 0 : index
    %c0_364 = arith.constant 0 : index
    %678 = vector.load %arg7[%c0_363, %c0_364] : memref<8x128xf32, #tpu.memory_space<vmem>>, vector<8x128xf32>
    %c0_365 = arith.constant 0 : index
    %c0_366 = arith.constant 0 : index
    %679 = vector.load %arg4[%c0_365, %c0_366] : memref<128x160xf32, #tpu.memory_space<vmem>>, vector<128x160xf32>
    %cst_367 = arith.constant dense<0.000000e+00> : vector<8x160xf32>
    %680 = tpu.matmul %678, %679, %cst_367 {dimension_numbers = #tpu.dot_dimension_numbers<[1], [0], [0], [1], [0, 0, 1, 1], [], []>} : vector<8x128xf32>, vector<128x160xf32>, vector<8x160xf32> -> vector<8x160xf32>
    %c0_368 = arith.constant 0 : index
    %c0_369 = arith.constant 0 : index
    %681 = vector.load %arg6[%c0_368, %c0_369] : memref<2x160xf32, #tpu.memory_space<vmem>>, vector<2x160xf32>
    %682 = vector.extract_strided_slice %680 {offsets = [0, 0], sizes = [2, 160], strides = [1, 1]} : vector<8x160xf32> to vector<2x160xf32>
    %683 = arith.addf %681, %682 : vector<2x160xf32>
    %684 = vector.extract_strided_slice %683 {offsets = [0, 0], sizes = [2, 128], strides = [1, 1]} : vector<2x160xf32> to vector<2x128xf32>
    %cst_370 = arith.constant 0.000000e+00 : f32
    %685 = vector.broadcast %cst_370 : f32 to vector<2x128xf32>
    %686 = arith.subf %685, %684 : vector<2x128xf32>
    %687 = math.exp %686 : vector<2x128xf32>
    %cst_371 = arith.constant 1.000000e+00 : f32
    %688 = vector.broadcast %cst_371 : f32 to vector<2x128xf32>
    %689 = arith.addf %688, %687 : vector<2x128xf32>
    %cst_372 = arith.constant 1.000000e+00 : f32
    %690 = vector.broadcast %cst_372 : f32 to vector<2x128xf32>
    %691 = arith.divf %690, %689 : vector<2x128xf32>
    %692 = vector.extract_strided_slice %691 {offsets = [0, 0], sizes = [2, 32], strides = [1, 1]} : vector<2x128xf32> to vector<2x32xf32>
    %693 = vector.extract_strided_slice %691 {offsets = [0, 32], sizes = [2, 32], strides = [1, 1]} : vector<2x128xf32> to vector<2x32xf32>
    %694 = vector.extract_strided_slice %691 {offsets = [0, 64], sizes = [2, 32], strides = [1, 1]} : vector<2x128xf32> to vector<2x32xf32>
    %695 = vector.extract_strided_slice %691 {offsets = [0, 96], sizes = [2, 32], strides = [1, 1]} : vector<2x128xf32> to vector<2x32xf32>
    %696 = vector.extract_strided_slice %683 {offsets = [0, 128], sizes = [2, 32], strides = [1, 1]} : vector<2x160xf32> to vector<2x32xf32>
    %697 = math.tanh %696 : vector<2x32xf32>
    %698 = vector.extract_strided_slice %678 {offsets = [0, 32], sizes = [2, 32], strides = [1, 1]} : vector<8x128xf32> to vector<2x32xf32>
    %699 = vector.extract_strided_slice %678 {offsets = [0, 96], sizes = [2, 32], strides = [1, 1]} : vector<8x128xf32> to vector<2x32xf32>
    %700 = arith.mulf %694, %697 : vector<2x32xf32>
    %701 = arith.mulf %692, %698 : vector<2x32xf32>
    %702 = arith.addf %700, %701 : vector<2x32xf32>
    %703 = arith.mulf %693, %699 : vector<2x32xf32>
    %704 = arith.addf %702, %703 : vector<2x32xf32>
    %705 = math.tanh %704 : vector<2x32xf32>
    %706 = arith.mulf %695, %705 : vector<2x32xf32>
    %707 = tpu.concatenate %706, %704 in 1 : vector<2x32xf32>, vector<2x32xf32> -> vector<2x64xf32>
    %708 = vector.extract_strided_slice %707 {offsets = [0, 0], sizes = [1, 64], strides = [1, 1]} : vector<2x64xf32> to vector<1x64xf32>
    %c0_i32_373 = arith.constant 0 : i32
    %709 = arith.addi %c0_i32_373, %c7_i32 : i32
    %c1_i32_374 = arith.constant 1 : i32
    %710 = arith.addi %709, %c1_i32_374 : i32
    %711 = arith.index_cast %710 : i32 to index
    %c0_375 = arith.constant 0 : index
    %712 = vector.load %arg8[%711, %c0_375] : memref<32x64xf32, #tpu.memory_space<vmem>>, vector<1x64xf32>
    tpu.vector_store %arg8[%711, %c0_375], %708 {strides = array<i32>} : memref<32x64xf32, #tpu.memory_space<vmem>>, vector<1x64xf32>,
    %713 = vector.extract_strided_slice %707 {offsets = [1, 0], sizes = [1, 64], strides = [1, 1]} : vector<2x64xf32> to vector<1x64xf32>
    %c16_i32_376 = arith.constant 16 : i32
    %714 = arith.addi %c16_i32_376, %c7_i32 : i32
    %c1_i32_377 = arith.constant 1 : i32
    %715 = arith.addi %714, %c1_i32_377 : i32
    %716 = arith.index_cast %715 : i32 to index
    %c0_378 = arith.constant 0 : index
    %717 = vector.load %arg8[%716, %c0_378] : memref<32x64xf32, #tpu.memory_space<vmem>>, vector<1x64xf32>
    tpu.vector_store %arg8[%716, %c0_378], %713 {strides = array<i32>} : memref<32x64xf32, #tpu.memory_space<vmem>>, vector<1x64xf32>,
    %c8_i32 = arith.constant 8 : i32
    %c2_i32_379 = arith.constant 2 : i32
    %718 = arith.muli %arg0, %c2_i32_379 : i32
    %c0_i32_380 = arith.constant 0 : i32
    %719 = arith.addi %718, %c0_i32_380 : i32
    %720 = arith.index_cast %719 : i32 to index
    %c0_381 = arith.constant 0 : index
    %721 = memref.load %arg2[%720, %c0_381] : memref<4x2xi32, #tpu.memory_space<smem>>
    %722 = arith.index_cast %719 : i32 to index
    %c1_382 = arith.constant 1 : index
    %723 = memref.load %arg2[%722, %c1_382] : memref<4x2xi32, #tpu.memory_space<smem>>
    %c0_i32_383 = arith.constant 0 : i32
    %724 = arith.addi %c0_i32_383, %721 : i32
    %725 = arith.index_cast %724 : i32 to index
    %c0_384 = arith.constant 0 : index
    %726 = vector.load %arg8[%725, %c0_384] : memref<32x64xf32, #tpu.memory_space<vmem>>, vector<1x64xf32>
    %c0_i32_385 = arith.constant 0 : i32
    %727 = arith.addi %c0_i32_385, %723 : i32
    %728 = arith.index_cast %727 : i32 to index
    %c0_386 = arith.constant 0 : index
    %729 = vector.load %arg8[%728, %c0_386] : memref<32x64xf32, #tpu.memory_space<vmem>>, vector<1x64xf32>
    %730 = vector.extract_strided_slice %726 {offsets = [0, 0], sizes = [1, 32], strides = [1, 1]} : vector<1x64xf32> to vector<1x32xf32>
    %731 = vector.extract_strided_slice %729 {offsets = [0, 0], sizes = [1, 32], strides = [1, 1]} : vector<1x64xf32> to vector<1x32xf32>
    %732 = tpu.concatenate %730, %731 in 1 : vector<1x32xf32>, vector<1x32xf32> -> vector<1x64xf32>
    %c0_387 = arith.constant 0 : index
    %c0_388 = arith.constant 0 : index
    %c0_389 = arith.constant 0 : index
    %733 = vector.load %arg5[%c0_387, %c0_388, %c0_389] : memref<1x2x64xf32, #tpu.memory_space<vmem>>, vector<1x1x64xf32>
    %734 = vector.shape_cast %733 : vector<1x1x64xf32> to vector<1x64xf32>
    %735 = vector.shape_cast %732 : vector<1x64xf32> to vector<1x1x64xf32>
    tpu.vector_store %arg5[%c0_387, %c0_388, %c0_389], %735 {strides = array<i32>} : memref<1x2x64xf32, #tpu.memory_space<vmem>>, vector<1x1x64xf32>,
    %c2_i32_390 = arith.constant 2 : i32
    %736 = arith.muli %arg0, %c2_i32_390 : i32
    %c1_i32_391 = arith.constant 1 : i32
    %737 = arith.addi %736, %c1_i32_391 : i32
    %738 = arith.index_cast %737 : i32 to index
    %c0_392 = arith.constant 0 : index
    %739 = memref.load %arg2[%738, %c0_392] : memref<4x2xi32, #tpu.memory_space<smem>>
    %740 = arith.index_cast %737 : i32 to index
    %c1_393 = arith.constant 1 : index
    %741 = memref.load %arg2[%740, %c1_393] : memref<4x2xi32, #tpu.memory_space<smem>>
    %c16_i32_394 = arith.constant 16 : i32
    %742 = arith.addi %c16_i32_394, %739 : i32
    %743 = arith.index_cast %742 : i32 to index
    %c0_395 = arith.constant 0 : index
    %744 = vector.load %arg8[%743, %c0_395] : memref<32x64xf32, #tpu.memory_space<vmem>>, vector<1x64xf32>
    %c16_i32_396 = arith.constant 16 : i32
    %745 = arith.addi %c16_i32_396, %741 : i32
    %746 = arith.index_cast %745 : i32 to index
    %c0_397 = arith.constant 0 : index
    %747 = vector.load %arg8[%746, %c0_397] : memref<32x64xf32, #tpu.memory_space<vmem>>, vector<1x64xf32>
    %748 = vector.extract_strided_slice %744 {offsets = [0, 0], sizes = [1, 32], strides = [1, 1]} : vector<1x64xf32> to vector<1x32xf32>
    %749 = vector.extract_strided_slice %747 {offsets = [0, 0], sizes = [1, 32], strides = [1, 1]} : vector<1x64xf32> to vector<1x32xf32>
    %750 = tpu.concatenate %748, %749 in 1 : vector<1x32xf32>, vector<1x32xf32> -> vector<1x64xf32>
    %c0_398 = arith.constant 0 : index
    %c1_399 = arith.constant 1 : index
    %c0_400 = arith.constant 0 : index
    %751 = vector.load %arg5[%c0_398, %c1_399, %c0_400] : memref<1x2x64xf32, #tpu.memory_space<vmem>>, vector<1x1x64xf32>
    %752 = vector.shape_cast %751 : vector<1x1x64xf32> to vector<1x64xf32>
    %753 = vector.shape_cast %750 : vector<1x64xf32> to vector<1x1x64xf32>
    tpu.vector_store %arg5[%c0_398, %c1_399, %c0_400], %753 {strides = array<i32>} : memref<1x2x64xf32, #tpu.memory_space<vmem>>, vector<1x1x64xf32>,
    return
  }
  func.func @transform_0(%arg0: i32, %arg1: memref<4x24xi32, #tpu.memory_space<smem>>, %arg2: memref<4x2xi32, #tpu.memory_space<smem>>) -> (i32, i32) {
    %c0_i32 = arith.constant 0 : i32
    %c0_i32_0 = arith.constant 0 : i32
    %c0_i32_1 = arith.constant 0 : i32
    return %c0_i32, %c0_i32_0 : i32, i32
  }
  func.func @transform_1(%arg0: i32, %arg1: memref<4x24xi32, #tpu.memory_space<smem>>, %arg2: memref<4x2xi32, #tpu.memory_space<smem>>) -> (i32, i32) {
    %c0_i32 = arith.constant 0 : i32
    %c0_i32_0 = arith.constant 0 : i32
    %c0_i32_1 = arith.constant 0 : i32
    return %c0_i32, %c0_i32_0 : i32, i32
  }
  func.func @transform_2(%arg0: i32, %arg1: memref<4x24xi32, #tpu.memory_space<smem>>, %arg2: memref<4x2xi32, #tpu.memory_space<smem>>) -> (i32, i32, i32) {
    %c0_i32 = arith.constant 0 : i32
    %c0_i32_0 = arith.constant 0 : i32
    %c0_i32_1 = arith.constant 0 : i32
    return %arg0, %c0_i32, %c0_i32_0 : i32, i32, i32
  }
}

</mosaic_0001>

<llo_original>
// kernel: tpu_custom_call.1
$region0: #{tpu_custom_call.1}
  #allocation0 [shape = 'u32[]', space=smem, size = 0x4, offset = 0x4, fixed_abs, tag = 'smem constant byte address 0x4 - core index']
  #allocation1 [shape = 'u32[72,128]{1,0:T(1,128)}', space=vmem, size = 0x9000, scoped, tag = 'internal scratch']
  #allocation2 [shape = 'f32[2,160]{1,0:T(2,128)}', space=vmem, size = 0x800, scoped, tag = 'scratch operand']
  #allocation3 [shape = 'f32[8,128]{1,0:T(8,128)}', space=vmem, size = 0x1000, scoped, tag = 'scratch operand']
  #allocation4 [shape = 'f32[32,64]{1,0:T(8,128)}', space=vmem, size = 0x4000, scoped, tag = 'scratch operand']
  #allocation5 [shape = 's32[1]{0}', space=sflag, size = 0x4, scoped, tag = 'scoped memory for tpu_custom_call.1']
  #allocation6 [shape = 'u8[2048]{0}', space=smem, size = 0x800, scoped, tag = 'prefetched SMEM operand 0']
  #allocation7 [shape = 'u8[2048]{0}', space=smem, size = 0x800, scoped, tag = 'prefetched SMEM operand 1']
  %s0 = inlined_call_operand.vmem [shape: s32[4,24], index: 0, kind: input, shape index: {}]
  %s1 = inlined_call_operand.vmem [shape: s32[4,2], index: 1, kind: input, shape index: {}]
  %s2 = inlined_call_operand.vmem [shape: f32[16,160], index: 2, kind: input, shape index: {}]
  %s3 = inlined_call_operand.vmem [shape: f32[128,160], index: 3, kind: input, shape index: {}]
  %s4 = inlined_call_operand.hbm [shape: f32[2,2,64], index: 4, kind: output, shape index: {}]
  %s5 = sld [smem:[#allocation0]]
  $region41: #{tpu_custom_call.1} parent=0
    _
  %s7 = ssub.s32 1, %s5
  %s8 = scalar_select 0, %s7, %s5
  %s10 = sshll.u32 %s0, 4
  %s11 = int_to_ptr.vmem [resolvable:$true] %s10
  %13 = dma.vmem_to_smem %s11, 64, [#allocation6], [#allocation5]
  %s15 = sshll.u32 %s1, 4
  %s16 = int_to_ptr.vmem [resolvable:$true] %s15
  %18 = dma.vmem_to_smem %s16, 64, [#allocation7], [#allocation5]
  %20 = dma.done [#allocation5], 128
  %21 = sfence
  $region1: #{tpu_custom_call.1} parent=0
    #allocation8 [shape = 'u8[2048]{0}', space=vmem, size = 0x800, scoped, tag = 'output window, operand 0']
    #allocation9 [shape = 's32[2]{0}', space=sflag, size = 0x8, scoped, tag = 'scoped memory for tpu_custom_call.1']
    %22 = vsyncpa [#allocation9], 0
    %s23 = scalar_lea.sflag [#allocation9], 1
    %24 = vsyncpa %s23, 0
    loop: start=0, step=1, limit=4
    $region2: #{tpu_custom_call.1} parent=1 // loop_pre_header
      _
    $region3: #{tpu_custom_call.1} parent=1 // loop_header
      %s26 = sphi 0, %s30
      %p27 = scmp.ge.s32.totalorder %s26, 4
      %s34 = sphi 0, %s34
      %s36 = sphi 0, %s34
      %s37 = sphi 0, %s36
      %s51 = sphi 0, %s37
      %s55 = sphi 0, %s55
      %s57 = sphi 0, %s55
      %s58 = sphi 0, %s57
      %s72 = sphi 0, %s58
      %s78 = sphi 0, %s80
      %s81 = sphi 0, %s78
      %s82 = sphi 0, %s81
      %s98 = sphi 0, %s82
    $region4: #{tpu_custom_call.1} parent=1 // loop_header_branch
      %29 = sbr.rel (%p27) target = $region8
    $region5: #{tpu_custom_call.1} parent=1 // loop_body
      %s31 = ssub.s32 %s26, 1
      %s32 = ssub.s32 %s26, 2
      %s33 = sadd.s32 %s26, 1
      %s35 = sadd.s32 %s34, 1
      %p38 = scmp.eq.s32.totalorder %s26, 1
      %p39 = scmp.ne.s32.totalorder %s34, %s36
      %p40 = scmp.eq.s32.totalorder %s26, 0
      %p41 = por %p39, %p40
      %p42 = scmp.ne.s32.totalorder %s34, %s36
      %p43 = scmp.eq.s32.totalorder %s31, 1
      %p44 = por %p42, %p43
      %p45 = scmp.ne.s32.totalorder %s36, %s37
      %p46 = scmp.eq.s32.totalorder %s31, 0
      %p47 = por %p45, %p46
      %p48 = scmp.ne.s32.totalorder %s36, %s37
      %p49 = scmp.eq.s32.totalorder %s32, 1
      %p50 = por %p48, %p49
      %p52 = scmp.ne.s32.totalorder %s37, %s51
      %p53 = scmp.eq.s32.totalorder %s32, 0
      %p54 = por %p52, %p53
      %s56 = sadd.s32 %s55, 1
      %p59 = scmp.eq.s32.totalorder %s26, 1
      %p60 = scmp.ne.s32.totalorder %s55, %s57
      %p61 = scmp.eq.s32.totalorder %s26, 0
      %p62 = por %p60, %p61
      %p63 = scmp.ne.s32.totalorder %s55, %s57
      %p64 = scmp.eq.s32.totalorder %s31, 1
      %p65 = por %p63, %p64
      %p66 = scmp.ne.s32.totalorder %s57, %s58
      %p67 = scmp.eq.s32.totalorder %s31, 0
      %p68 = por %p66, %p67
      %p69 = scmp.ne.s32.totalorder %s57, %s58
      %p70 = scmp.eq.s32.totalorder %s32, 1
      %p71 = por %p69, %p70
      %p73 = scmp.ne.s32.totalorder %s58, %s72
      %p74 = scmp.eq.s32.totalorder %s32, 0
      %p75 = por %p73, %p74
      %s76 = ssub.s32 %s26, %s33
      %p77 = scmp.eq.s32.totalorder %s76, 0
      %s79 = sadd.s32 %s78, 1
      %s80 = scalar_select %p77, %s78, %s79
      %p83 = pneg %p77
      %p84 = scmp.eq.s32.totalorder %s26, 1
      %p85 = por %p83, %p84
      %p86 = scmp.ne.s32.totalorder %s78, %s81
      %p87 = scmp.eq.s32.totalorder %s26, 0
      %p88 = por %p86, %p87
      %p89 = scmp.ne.s32.totalorder %s78, %s81
      %p90 = scmp.eq.s32.totalorder %s31, 1
      %p91 = por %p89, %p90
      %p92 = scmp.ne.s32.totalorder %s81, %s82
      %p93 = scmp.eq.s32.totalorder %s31, 0
      %p94 = por %p92, %p93
      %p95 = scmp.ne.s32.totalorder %s81, %s82
      %p96 = scmp.eq.s32.totalorder %s32, 1
      %p97 = por %p95, %p96
      %p99 = scmp.ne.s32.totalorder %s82, %s98
      %p100 = scmp.eq.s32.totalorder %s32, 0
      %p101 = por %p99, %p100
      %p102 = scmp.le.s32.totalorder 1, %s26
      %p103 = scmp.lt.s32.totalorder %s26, 3
      %p104 = pnand %p102, %p103
      %p105 = pneg %p104
      // Predicated region
      $region9: #{tpu_custom_call.1} parent=5 // pred_check
        _
      $region10: #{tpu_custom_call.1} parent=5 // pred_check_branch
        %107 = sbr.rel (%p104) target = $region12
      $region11: #{tpu_custom_call.1} parent=5 // pred_region
        %s108 = ssub.s32 %s26, 1
        // Predicated region
        $region13: #{tpu_custom_call.1} parent=11 // pred_check
          %p109 = pneg %p47
        $region14: #{tpu_custom_call.1} parent=11 // pred_check_branch
          %111 = sbr.rel (%p109) target = $region16
        $region15: #{tpu_custom_call.1} parent=11 // pred_region
          _
        $region16: #{tpu_custom_call.1} parent=11 // pred_fallthru
          _
        // Predicated region
        $region17: #{tpu_custom_call.1} parent=11 // pred_check
          %p112 = pneg %p68
        $region18: #{tpu_custom_call.1} parent=11 // pred_check_branch
          %114 = sbr.rel (%p112) target = $region20
        $region19: #{tpu_custom_call.1} parent=11 // pred_region
          _
        $region20: #{tpu_custom_call.1} parent=11 // pred_fallthru
          _
      $region12: #{tpu_custom_call.1} parent=5 // pred_fallthru
        _
      %p115 = scmp.lt.s32.totalorder %s26, 2
      // Predicated region
      $region21: #{tpu_custom_call.1} parent=5 // pred_check
        %p116 = pneg %p115
      $region22: #{tpu_custom_call.1} parent=5 // pred_check_branch
        %118 = sbr.rel (%p116) target = $region24
      $region23: #{tpu_custom_call.1} parent=5 // pred_region
        _
      $region24: #{tpu_custom_call.1} parent=5 // pred_fallthru
        _
      %p119 = scmp.le.s32.totalorder 1, %s26
      %p120 = scmp.lt.s32.totalorder %s26, 3
      %p121 = pnand %p119, %p120
      %p122 = pneg %p121
      // Predicated region
      $region25: #{tpu_custom_call.1} parent=5 // pred_check
        _
      $region26: #{tpu_custom_call.1} parent=5 // pred_check_branch
        %124 = sbr.rel (%p121) target = $region28
      $region27: #{tpu_custom_call.1} parent=5 // pred_region
        %s125 = ssub.s32 %s26, 1
        %p126 = pneg %p47
        %p127 = pneg %p44
        %p128 = pneg %p68
        %p129 = pneg %p65
        %p130 = pneg %p94
        %p131 = pneg %p91
        %s132 = sand.u32 %s81, 1
        %s133 = scalar_lea.sflag [#allocation9], %s132
        %s134 = sand.u32 %s81, 1
        %s135 = smul.addr %s134, 2
        %s136 = scalar_lea.vmem [#allocation8], %s135
        %137 = vst [vmem:[#allocation3] sm:$0xff] 0.0
        %vm138 = vcmask 516096
        %139 = vst.msk [vmem:[#allocation4] sm:$0x1] %vm138, 0.0
        %140 = vst.msk [vmem:[#allocation4 + $0x10] sm:$0x1] %vm138, 0.0
        %s141 = smul.u32 %s31, 2
        %s142 = smul.u32 %s141, 128
        %s143 = sld [smem:[#allocation6 + %s142]]
        %s144 = sadd.s32 %s142, 1
        %s145 = sld [smem:[#allocation6 + %s144]]
        %s146 = sadd.s32 %s142, 2
        %s147 = sld [smem:[#allocation6 + %s146]]
        %s148 = sshra.s32 %s143, 3
        %s149 = sand.u32 %s143, 7
        %s150 = sshra.s32 %s143, 3
        %s151 = sand.u32 %s143, 7
        %s152 = smul.u32 %s148, 2
        %s153 = smul.u32 %s152, 8
        %s154 = sadd.s32 %s153, %s151
        %s155 = scalar_lea.vmem %s2, %s154
        %v156 = vld [vmem:[%s155] ss:$8 sm:$0x3]
        %v157 = vlaneseq
        %vm158 = vcmp.ge.s32.totalorder %v157, 0
        %vm159 = vcmp.lt.s32.totalorder %v157, 160
        %vm160 = vmand %vm158, %vm159
        %161 = vst.msk [vmem:[#allocation2] ss:$2 sm:$0x3] %vm160, %v156
        %s162 = scalar_lea.vmem [#allocation4], %s145
        %v163 = vld [vmem:[%s162] sm:$0x1]
        %164 = vst.msk [vmem:[#allocation3] sm:$0x1] %vm138, %v163
        %s165 = scalar_lea.vmem [#allocation4], %s147
        %v166 = vld [vmem:[%s165] sm:$0x1]
        %168 = vrot.lane.b32.xlu0 %v166, 64
        %v169 = vpop.permute.xlu0 %168
        %vm171 = vcmask 1040896
        %172 = vst.msk [vmem:[#allocation3] sm:$0x1] %vm171, %v169
        %s173 = sadd.s32 %s141, 1
        %s174 = smul.u32 %s173, 128
        %s175 = sld [smem:[#allocation6 + %s174]]
        %s176 = sadd.s32 %s174, 1
        %s177 = sld [smem:[#allocation6 + %s176]]
        %s178 = sadd.s32 %s174, 2
        %s179 = sld [smem:[#allocation6 + %s178]]
        %s180 = sshra.s32 %s175, 3
        %s181 = sand.u32 %s175, 7
        %s182 = sshra.s32 %s175, 3
        %s183 = sand.u32 %s175, 7
        %s184 = smul.u32 %s180, 2
        %s185 = smul.u32 %s184, 8
        %s186 = sadd.s32 %s185, %s183
        %s187 = scalar_lea.vmem %s2, %s186
        %v188 = vld [vmem:[%s187] ss:$8 sm:$0x3]
        %s189 = scalar_lea.vmem [#allocation2], 1
        %190 = vst.msk [vmem:[%s189] ss:$2 sm:$0x3] %vm160, %v188
        %s191 = sadd.s32 %s177, 16
        %s192 = scalar_lea.vmem [#allocation4], %s191
        %v193 = vld [vmem:[%s192] sm:$0x1]
        %194 = vst.msk [vmem:[#allocation3 + $0x1] sm:$0x1] %vm138, %v193
        %s195 = sadd.s32 %s179, 16
        %s196 = scalar_lea.vmem [#allocation4], %s195
        %v197 = vld [vmem:[%s196] sm:$0x1]
        %199 = vrot.lane.b32.xlu0 %v197, 64
        %v200 = vpop.permute.xlu0 %199
        %202 = vst.msk [vmem:[#allocation3 + $0x1] sm:$0x1] %vm171, %v200
        %v203 = vld [vmem:[#allocation3] sm:$0xff]
        %v204 = vld [vmem:[%s3] sm:$0xff]
        %v205 = vld [vmem:[%s3 + $0x8] sm:$0xff]
        %v206 = vld [vmem:[%s3 + $0x10] sm:$0xff]
        %v207 = vld [vmem:[%s3 + $0x18] sm:$0xff]
        %v208 = vld [vmem:[%s3 + $0x20] sm:$0xff]
        %v209 = vld [vmem:[%s3 + $0x28] sm:$0xff]
        %v210 = vld [vmem:[%s3 + $0x30] sm:$0xff]
        %v211 = vld [vmem:[%s3 + $0x38] sm:$0xff]
        %v212 = vld [vmem:[%s3 + $0x40] sm:$0xff]
        %v213 = vld [vmem:[%s3 + $0x48] sm:$0xff]
        %v214 = vld [vmem:[%s3 + $0x50] sm:$0xff]
        %v215 = vld [vmem:[%s3 + $0x58] sm:$0xff]
        %v216 = vld [vmem:[%s3 + $0x60] sm:$0xff]
        %v217 = vld [vmem:[%s3 + $0x68] sm:$0xff]
        %v218 = vld [vmem:[%s3 + $0x70] sm:$0xff]
        %v219 = vld [vmem:[%s3 + $0x78] sm:$0xff]
        %v220 = vld [vmem:[%s3 + $0x80] sm:$0xff]
        %v221 = vld [vmem:[%s3 + $0x88] sm:$0xff]
        %v222 = vld [vmem:[%s3 + $0x90] sm:$0xff]
        %v223 = vld [vmem:[%s3 + $0x98] sm:$0xff]
        %v224 = vld [vmem:[%s3 + $0xa0] sm:$0xff]
        %v225 = vld [vmem:[%s3 + $0xa8] sm:$0xff]
        %v226 = vld [vmem:[%s3 + $0xb0] sm:$0xff]
        %v227 = vld [vmem:[%s3 + $0xb8] sm:$0xff]
        %v228 = vld [vmem:[%s3 + $0xc0] sm:$0xff]
        %v229 = vld [vmem:[%s3 + $0xc8] sm:$0xff]
        %v230 = vld [vmem:[%s3 + $0xd0] sm:$0xff]
        %v231 = vld [vmem:[%s3 + $0xd8] sm:$0xff]
        %v232 = vld [vmem:[%s3 + $0xe0] sm:$0xff]
        %v233 = vld [vmem:[%s3 + $0xe8] sm:$0xff]
        %v234 = vld [vmem:[%s3 + $0xf0] sm:$0xff]
        %v235 = vld [vmem:[%s3 + $0xf8] sm:$0xff]
        %236 = vmatpush.msra.mxu0 %v234
        %237 = vmatpush.msra.mxu0 %v232
        %238 = vmatpush.msra.mxu0 %v230
        %239 = vmatpush.msra.mxu0 %v228
        %240 = vmatpush.msra.mxu0 %v226
        %241 = vmatpush.msra.mxu0 %v224
        %242 = vmatpush.msra.mxu0 %v222
        %243 = vmatpush.msra.mxu0 %v220
        %244 = vmatpush.msra.mxu0 %v218
        %245 = vmatpush.msra.mxu0 %v216
        %246 = vmatpush.msra.mxu0 %v214
        %247 = vmatpush.msra.mxu0 %v212
        %248 = vmatpush.msra.mxu0 %v210
        %249 = vmatpush.msra.mxu0 %v208
        %250 = vmatpush.msra.mxu0 %v206
        %251 = vmatpush.msra.mxu0 %v204
        %252 = vmatmul.f32.gmra.mxu0 %v203
        %v253 = vpop.f32.mrf.mxu0
        %v254 = vadd.f32 0.0, %v253
        %255 = vdwg.mxu0
        %256 = vmatpush.msra.mxu0 %v235
        %257 = vmatpush.msra.mxu0 %v233
        %258 = vmatpush.msra.mxu0 %v231
        %259 = vmatpush.msra.mxu0 %v229
        %260 = vmatpush.msra.mxu0 %v227
        %261 = vmatpush.msra.mxu0 %v225
        %262 = vmatpush.msra.mxu0 %v223
        %263 = vmatpush.msra.mxu0 %v221
        %264 = vmatpush.msra.mxu0 %v219
        %265 = vmatpush.msra.mxu0 %v217
        %266 = vmatpush.msra.mxu0 %v215
        %267 = vmatpush.msra.mxu0 %v213
        %268 = vmatpush.msra.mxu0 %v211
        %269 = vmatpush.msra.mxu0 %v209
        %270 = vmatpush.msra.mxu0 %v207
        %271 = vmatpush.msra.mxu0 %v205
        %272 = vmatmul.f32.gmra.mxu0 %v203
        %v273 = vpop.f32.mrf.mxu0
        %v274 = vadd.f32 0.0, %v273
        %275 = vdwg.mxu0
        %v276 = vld [vmem:[#allocation2] sm:$0xf]
        %v279 = vrot.slane %v274, 6
        %vm280 = vcmask 1041408
        %v281 = vsel %vm280, %v254, %v279
        %v283 = vadd.f32 %v276, %v281
        %v284 = vsub.f32 0.0, %v283
        %v285 = vmul.f32 %v284, 1.442695
        %v286 = vpow.pop %v285
        %v287 = vadd.f32 %v286, 1.0
        %v288 = vrcp.pop %v287
        %v289 = vmul.f32 %v287, %v288
        %v290 = vsub.f32 1.0, %v289
        %v291 = vmul.f32 %v288, %v290
        %v292 = vadd.f32 %v288, %v291
        %vm293 = vweird.f32 %v287
        %vm294 = vweird.f32 %v288
        %vm295 = vmor %vm293, %vm294
        %v296 = vsel %vm295, %v288, %v292
        %v297 = vand.u32 2147483647, %v287
        %vm298 = vcmp.eq.f32.partialorder %v297, 8.507059e+37
        %v299 = vand.u32 %v287, 2147483648
        %v300 = vor.u32 1.1754944e-38, %v299
        %v301 = vsel %vm298, %v300, %v296
        %v302 = vmul.f32 1.0, %v301
        %v304 = vrot.slane %v283, 2
        %v306 = vtanh.pop %v304
        %308 = vrot.lane.b32.xlu0 %v306, 64
        %v309 = vpop.permute.xlu0 %308
        %v311 = vmul.f32 %v302, %v309
        %313 = vrot.lane.b32.xlu0 %v203, 96
        %v314 = vpop.permute.xlu0 %313
        %v316 = vmul.f32 %v302, %v314
        %318 = vrot.lane.b32.xlu0 %v316, 64
        %v319 = vpop.permute.xlu0 %318
        %v321 = vadd.f32 %v311, %v319
        %322 = vrot.lane.b32.xlu0 %v203, 64
        %v323 = vpop.permute.xlu0 %322
        %v325 = vmul.f32 %v302, %v323
        %327 = vrot.lane.b32.xlu0 %v325, 32
        %v328 = vpop.permute.xlu0 %327
        %v330 = vadd.f32 %v321, %v328
        %v331 = vtanh.pop %v330
        %333 = vrot.lane.b32.xlu0 %v331, 32
        %v334 = vpop.permute.xlu0 %333
        %v336 = vmul.f32 %v302, %v334
        %338 = vst [vmem:[#allocation1] ss:$4 sm:$0xff] %v336
        %v339 = vld.sshfl [vmem:[#allocation1] sm:$0xff pattern:$0x73625140]
        %340 = vrot.lane.b32.xlu0 %v339, 32
        %v341 = vpop.permute.xlu0 %340
        %344 = vst [vmem:[#allocation1] ss:$4 sm:$0xff] %v330
        %v345 = vld.sshfl [vmem:[#allocation1] sm:$0xff pattern:$0x73625140]
        %346 = vrot.lane.b32.xlu0 %v345, 96
        %v347 = vpop.permute.xlu0 %346
        %vm349 = vcmask 261120
        %v350 = vsel %vm349, %v341, %v347
        %351 = vst.msk [vmem:[#allocation4 + $0x1] sm:$0x1] %vm138, %v350
        %vm352 = vcmask 517121
        %353 = vst.msk [vmem:[#allocation4 + $0x10] sm:$0x2] %vm352, %v350
        %s354 = sadd.s32 %s142, 3
        %s355 = sld [smem:[#allocation6 + %s354]]
        %s356 = sadd.s32 %s142, 4
        %s357 = sld [smem:[#allocation6 + %s356]]
        %s358 = sadd.s32 %s142, 5
        %s359 = sld [smem:[#allocation6 + %s358]]
        %s360 = sshra.s32 %s355, 3
        %s361 = sand.u32 %s355, 7
        %s362 = sshra.s32 %s355, 3
        %s363 = sand.u32 %s355, 7
        %s364 = smul.u32 %s360, 2
        %s365 = smul.u32 %s364, 8
        %s366 = sadd.s32 %s365, %s363
        %s367 = scalar_lea.vmem %s2, %s366
        %v368 = vld [vmem:[%s367] ss:$8 sm:$0x3]
        %369 = vst.msk [vmem:[#allocation2] ss:$2 sm:$0x3] %vm160, %v368
        %s370 = scalar_lea.vmem [#allocation4], %s357
        %v371 = vld [vmem:[%s370] sm:$0x1]
        %372 = vst.msk [vmem:[#allocation3] sm:$0x1] %vm138, %v371
        %s373 = scalar_lea.vmem [#allocation4], %s359
        %v374 = vld [vmem:[%s373] sm:$0x1]
        %376 = vrot.lane.b32.xlu0 %v374, 64
        %v377 = vpop.permute.xlu0 %376
        %379 = vst.msk [vmem:[#allocation3] sm:$0x1] %vm171, %v377
        %s380 = sadd.s32 %s174, 3
        %s381 = sld [smem:[#allocation6 + %s380]]
        %s382 = sadd.s32 %s174, 4
        %s383 = sld [smem:[#allocation6 + %s382]]
        %s384 = sadd.s32 %s174, 5
        %s385 = sld [smem:[#allocation6 + %s384]]
        %s386 = sshra.s32 %s381, 3
        %s387 = sand.u32 %s381, 7
        %s388 = sshra.s32 %s381, 3
        %s389 = sand.u32 %s381, 7
        %s390 = smul.u32 %s386, 2
        %s391 = smul.u32 %s390, 8
        %s392 = sadd.s32 %s391, %s389
        %s393 = scalar_lea.vmem %s2, %s392
        %v394 = vld [vmem:[%s393] ss:$8 sm:$0x3]
        %395 = vst.msk [vmem:[%s189] ss:$2 sm:$0x3] %vm160, %v394
        %s396 = sadd.s32 %s383, 16
        %s397 = scalar_lea.vmem [#allocation4], %s396
        %v398 = vld [vmem:[%s397] sm:$0x1]
        %399 = vst.msk [vmem:[#allocation3 + $0x1] sm:$0x1] %vm138, %v398
        %s400 = sadd.s32 %s385, 16
        %s401 = scalar_lea.vmem [#allocation4], %s400
        %v402 = vld [vmem:[%s401] sm:$0x1]
        %404 = vrot.lane.b32.xlu0 %v402, 64
        %v405 = vpop.permute.xlu0 %404
        %407 = vst.msk [vmem:[#allocation3 + $0x1] sm:$0x1] %vm171, %v405
        %v408 = vld [vmem:[#allocation3] sm:$0xff]
        %v409 = vld [vmem:[%s3] sm:$0xff]
        %v410 = vld [vmem:[%s3 + $0x8] sm:$0xff]
        %v411 = vld [vmem:[%s3 + $0x10] sm:$0xff]
        %v412 = vld [vmem:[%s3 + $0x18] sm:$0xff]
        %v413 = vld [vmem:[%s3 + $0x20] sm:$0xff]
        %v414 = vld [vmem:[%s3 + $0x28] sm:$0xff]
        %v415 = vld [vmem:[%s3 + $0x30] sm:$0xff]
        %v416 = vld [vmem:[%s3 + $0x38] sm:$0xff]
        %v417 = vld [vmem:[%s3 + $0x40] sm:$0xff]
        %v418 = vld [vmem:[%s3 + $0x48] sm:$0xff]
        %v419 = vld [vmem:[%s3 + $0x50] sm:$0xff]
        %v420 = vld [vmem:[%s3 + $0x58] sm:$0xff]
        %v421 = vld [vmem:[%s3 + $0x60] sm:$0xff]
        %v422 = vld [vmem:[%s3 + $0x68] sm:$0xff]
        %v423 = vld [vmem:[%s3 + $0x70] sm:$0xff]
        %v424 = vld [vmem:[%s3 + $0x78] sm:$0xff]
        %v425 = vld [vmem:[%s3 + $0x80] sm:$0xff]
        %v426 = vld [vmem:[%s3 + $0x88] sm:$0xff]
        %v427 = vld [vmem:[%s3 + $0x90] sm:$0xff]
        %v428 = vld [vmem:[%s3 + $0x98] sm:$0xff]
        %v429 = vld [vmem:[%s3 + $0xa0] sm:$0xff]
        %v430 = vld [vmem:[%s3 + $0xa8] sm:$0xff]
        %v431 = vld [vmem:[%s3 + $0xb0] sm:$0xff]
        %v432 = vld [vmem:[%s3 + $0xb8] sm:$0xff]
        %v433 = vld [vmem:[%s3 + $0xc0] sm:$0xff]
        %v434 = vld [vmem:[%s3 + $0xc8] sm:$0xff]
        %v435 = vld [vmem:[%s3 + $0xd0] sm:$0xff]
        %v436 = vld [vmem:[%s3 + $0xd8] sm:$0xff]
        %v437 = vld [vmem:[%s3 + $0xe0] sm:$0xff]
        %v438 = vld [vmem:[%s3 + $0xe8] sm:$0xff]
        %v439 = vld [vmem:[%s3 + $0xf0] sm:$0xff]
        %v440 = vld [vmem:[%s3 + $0xf8] sm:$0xff]
        %441 = vmatpush.msra.mxu0 %v439
        %442 = vmatpush.msra.mxu0 %v437
        %443 = vmatpush.msra.mxu0 %v435
        %444 = vmatpush.msra.mxu0 %v433
        %445 = vmatpush.msra.mxu0 %v431
        %446 = vmatpush.msra.mxu0 %v429
        %447 = vmatpush.msra.mxu0 %v427
        %448 = vmatpush.msra.mxu0 %v425
        %449 = vmatpush.msra.mxu0 %v423
        %450 = vmatpush.msra.mxu0 %v421
        %451 = vmatpush.msra.mxu0 %v419
        %452 = vmatpush.msra.mxu0 %v417
        %453 = vmatpush.msra.mxu0 %v415
        %454 = vmatpush.msra.mxu0 %v413
        %455 = vmatpush.msra.mxu0 %v411
        %456 = vmatpush.msra.mxu0 %v409
        %457 = vmatmul.f32.gmra.mxu0 %v408
        %v458 = vpop.f32.mrf.mxu0
        %v459 = vadd.f32 0.0, %v458
        %460 = vdwg.mxu0
        %461 = vmatpush.msra.mxu0 %v440
        %462 = vmatpush.msra.mxu0 %v438
        %463 = vmatpush.msra.mxu0 %v436
        %464 = vmatpush.msra.mxu0 %v434
        %465 = vmatpush.msra.mxu0 %v432
        %466 = vmatpush.msra.mxu0 %v430
        %467 = vmatpush.msra.mxu0 %v428
        %468 = vmatpush.msra.mxu0 %v426
        %469 = vmatpush.msra.mxu0 %v424
        %470 = vmatpush.msra.mxu0 %v422
        %471 = vmatpush.msra.mxu0 %v420
        %472 = vmatpush.msra.mxu0 %v418
        %473 = vmatpush.msra.mxu0 %v416
        %474 = vmatpush.msra.mxu0 %v414
        %475 = vmatpush.msra.mxu0 %v412
        %476 = vmatpush.msra.mxu0 %v410
        %477 = vmatmul.f32.gmra.mxu0 %v408
        %v478 = vpop.f32.mrf.mxu0
        %v479 = vadd.f32 0.0, %v478
        %480 = vdwg.mxu0
        %v481 = vld [vmem:[#allocation2] sm:$0xf]
        %v484 = vrot.slane %v479, 6
        %v485 = vsel %vm280, %v459, %v484
        %v487 = vadd.f32 %v481, %v485
        %v488 = vsub.f32 0.0, %v487
        %v489 = vmul.f32 %v488, 1.442695
        %v490 = vpow.pop %v489
        %v491 = vadd.f32 %v490, 1.0
        %v492 = vrcp.pop %v491
        %v493 = vmul.f32 %v491, %v492
        %v494 = vsub.f32 1.0, %v493
        %v495 = vmul.f32 %v492, %v494
        %v496 = vadd.f32 %v492, %v495
        %vm497 = vweird.f32 %v491
        %vm498 = vweird.f32 %v492
        %vm499 = vmor %vm497, %vm498
        %v500 = vsel %vm499, %v492, %v496
        %v501 = vand.u32 2147483647, %v491
        %vm502 = vcmp.eq.f32.partialorder %v501, 8.507059e+37
        %v503 = vand.u32 %v491, 2147483648
        %v504 = vor.u32 1.1754944e-38, %v503
        %v505 = vsel %vm502, %v504, %v500
        %v506 = vmul.f32 1.0, %v505
        %v508 = vrot.slane %v487, 2
        %v510 = vtanh.pop %v508
        %512 = vrot.lane.b32.xlu0 %v510, 64
        %v513 = vpop.permute.xlu0 %512
        %v515 = vmul.f32 %v506, %v513
        %517 = vrot.lane.b32.xlu0 %v408, 96
        %v518 = vpop.permute.xlu0 %517
        %v520 = vmul.f32 %v506, %v518
        %522 = vrot.lane.b32.xlu0 %v520, 64
        %v523 = vpop.permute.xlu0 %522
        %v525 = vadd.f32 %v515, %v523
        %526 = vrot.lane.b32.xlu0 %v408, 64
        %v527 = vpop.permute.xlu0 %526
        %v529 = vmul.f32 %v506, %v527
        %531 = vrot.lane.b32.xlu0 %v529, 32
        %v532 = vpop.permute.xlu0 %531
        %v534 = vadd.f32 %v525, %v532
        %v535 = vtanh.pop %v534
        %537 = vrot.lane.b32.xlu0 %v535, 32
        %v538 = vpop.permute.xlu0 %537
        %v540 = vmul.f32 %v506, %v538
        %542 = vst [vmem:[#allocation1] ss:$4 sm:$0xff] %v540
        %v543 = vld.sshfl [vmem:[#allocation1] sm:$0xff pattern:$0x73625140]
        %544 = vrot.lane.b32.xlu0 %v543, 32
        %v545 = vpop.permute.xlu0 %544
        %548 = vst [vmem:[#allocation1] ss:$4 sm:$0xff] %v534
        %v549 = vld.sshfl [vmem:[#allocation1] sm:$0xff pattern:$0x73625140]
        %550 = vrot.lane.b32.xlu0 %v549, 96
        %v551 = vpop.permute.xlu0 %550
        %v553 = vsel %vm349, %v545, %v551
        %554 = vst.msk [vmem:[#allocation4 + $0x2] sm:$0x1] %vm138, %v553
        %555 = vst.msk [vmem:[#allocation4 + $0x11] sm:$0x2] %vm352, %v553
        %s556 = sadd.s32 %s142, 6
        %s557 = sld [smem:[#allocation6 + %s556]]
        %s558 = sadd.s32 %s142, 7
        %s559 = sld [smem:[#allocation6 + %s558]]
        %s560 = sadd.s32 %s142, 8
        %s561 = sld [smem:[#allocation6 + %s560]]
        %s562 = sshra.s32 %s557, 3
        %s563 = sand.u32 %s557, 7
        %s564 = sshra.s32 %s557, 3
        %s565 = sand.u32 %s557, 7
        %s566 = smul.u32 %s562, 2
        %s567 = smul.u32 %s566, 8
        %s568 = sadd.s32 %s567, %s565
        %s569 = scalar_lea.vmem %s2, %s568
        %v570 = vld [vmem:[%s569] ss:$8 sm:$0x3]
        %571 = vst.msk [vmem:[#allocation2] ss:$2 sm:$0x3] %vm160, %v570
        %s572 = scalar_lea.vmem [#allocation4], %s559
        %v573 = vld [vmem:[%s572] sm:$0x1]
        %574 = vst.msk [vmem:[#allocation3] sm:$0x1] %vm138, %v573
        %s575 = scalar_lea.vmem [#allocation4], %s561
        %v576 = vld [vmem:[%s575] sm:$0x1]
        %578 = vrot.lane.b32.xlu0 %v576, 64
        %v579 = vpop.permute.xlu0 %578
        %581 = vst.msk [vmem:[#allocation3] sm:$0x1] %vm171, %v579
        %s582 = sadd.s32 %s174, 6
        %s583 = sld [smem:[#allocation6 + %s582]]
        %s584 = sadd.s32 %s174, 7
        %s585 = sld [smem:[#allocation6 + %s584]]
        %s586 = sadd.s32 %s174, 8
        %s587 = sld [smem:[#allocation6 + %s586]]
        %s588 = sshra.s32 %s583, 3
        %s589 = sand.u32 %s583, 7
        %s590 = sshra.s32 %s583, 3
        %s591 = sand.u32 %s583, 7
        %s592 = smul.u32 %s588, 2
        %s593 = smul.u32 %s592, 8
        %s594 = sadd.s32 %s593, %s591
        %s595 = scalar_lea.vmem %s2, %s594
        %v596 = vld [vmem:[%s595] ss:$8 sm:$0x3]
        %597 = vst.msk [vmem:[%s189] ss:$2 sm:$0x3] %vm160, %v596
        %s598 = sadd.s32 %s585, 16
        %s599 = scalar_lea.vmem [#allocation4], %s598
        %v600 = vld [vmem:[%s599] sm:$0x1]
        %601 = vst.msk [vmem:[#allocation3 + $0x1] sm:$0x1] %vm138, %v600
        %s602 = sadd.s32 %s587, 16
        %s603 = scalar_lea.vmem [#allocation4], %s602
        %v604 = vld [vmem:[%s603] sm:$0x1]
        %606 = vrot.lane.b32.xlu0 %v604, 64
        %v607 = vpop.permute.xlu0 %606
        %609 = vst.msk [vmem:[#allocation3 + $0x1] sm:$0x1] %vm171, %v607
        %v610 = vld [vmem:[#allocation3] sm:$0xff]
        %v611 = vld [vmem:[%s3] sm:$0xff]
        %v612 = vld [vmem:[%s3 + $0x8] sm:$0xff]
        %v613 = vld [vmem:[%s3 + $0x10] sm:$0xff]
        %v614 = vld [vmem:[%s3 + $0x18] sm:$0xff]
        %v615 = vld [vmem:[%s3 + $0x20] sm:$0xff]
        %v616 = vld [vmem:[%s3 + $0x28] sm:$0xff]
        %v617 = vld [vmem:[%s3 + $0x30] sm:$0xff]
        %v618 = vld [vmem:[%s3 + $0x38] sm:$0xff]
        %v619 = vld [vmem:[%s3 + $0x40] sm:$0xff]
        %v620 = vld [vmem:[%s3 + $0x48] sm:$0xff]
        %v621 = vld [vmem:[%s3 + $0x50] sm:$0xff]
        %v622 = vld [vmem:[%s3 + $0x58] sm:$0xff]
        %v623 = vld [vmem:[%s3 + $0x60] sm:$0xff]
        %v624 = vld [vmem:[%s3 + $0x68] sm:$0xff]
        %v625 = vld [vmem:[%s3 + $0x70] sm:$0xff]
        %v626 = vld [vmem:[%s3 + $0x78] sm:$0xff]
        %v627 = vld [vmem:[%s3 + $0x80] sm:$0xff]
        %v628 = vld [vmem:[%s3 + $0x88] sm:$0xff]
        %v629 = vld [vmem:[%s3 + $0x90] sm:$0xff]
        %v630 = vld [vmem:[%s3 + $0x98] sm:$0xff]
        %v631 = vld [vmem:[%s3 + $0xa0] sm:$0xff]
        %v632 = vld [vmem:[%s3 + $0xa8] sm:$0xff]
        %v633 = vld [vmem:[%s3 + $0xb0] sm:$0xff]
        %v634 = vld [vmem:[%s3 + $0xb8] sm:$0xff]
        %v635 = vld [vmem:[%s3 + $0xc0] sm:$0xff]
        %v636 = vld [vmem:[%s3 + $0xc8] sm:$0xff]
        %v637 = vld [vmem:[%s3 + $0xd0] sm:$0xff]
        %v638 = vld [vmem:[%s3 + $0xd8] sm:$0xff]
        %v639 = vld [vmem:[%s3 + $0xe0] sm:$0xff]
        %v640 = vld [vmem:[%s3 + $0xe8] sm:$0xff]
        %v641 = vld [vmem:[%s3 + $0xf0] sm:$0xff]
        %v642 = vld [vmem:[%s3 + $0xf8] sm:$0xff]
        %643 = vmatpush.msra.mxu0 %v641
        %644 = vmatpush.msra.mxu0 %v639
        %645 = vmatpush.msra.mxu0 %v637
        %646 = vmatpush.msra.mxu0 %v635
        %647 = vmatpush.msra.mxu0 %v633
        %648 = vmatpush.msra.mxu0 %v631
        %649 = vmatpush.msra.mxu0 %v629
        %650 = vmatpush.msra.mxu0 %v627
        %651 = vmatpush.msra.mxu0 %v625
        %652 = vmatpush.msra.mxu0 %v623
        %653 = vmatpush.msra.mxu0 %v621
        %654 = vmatpush.msra.mxu0 %v619
        %655 = vmatpush.msra.mxu0 %v617
        %656 = vmatpush.msra.mxu0 %v615
        %657 = vmatpush.msra.mxu0 %v613
        %658 = vmatpush.msra.mxu0 %v611
        %659 = vmatmul.f32.gmra.mxu0 %v610
        %v660 = vpop.f32.mrf.mxu0
        %v661 = vadd.f32 0.0, %v660
        %662 = vdwg.mxu0
        %663 = vmatpush.msra.mxu0 %v642
        %664 = vmatpush.msra.mxu0 %v640
        %665 = vmatpush.msra.mxu0 %v638
        %666 = vmatpush.msra.mxu0 %v636
        %667 = vmatpush.msra.mxu0 %v634
        %668 = vmatpush.msra.mxu0 %v632
        %669 = vmatpush.msra.mxu0 %v630
        %670 = vmatpush.msra.mxu0 %v628
        %671 = vmatpush.msra.mxu0 %v626
        %672 = vmatpush.msra.mxu0 %v624
        %673 = vmatpush.msra.mxu0 %v622
        %674 = vmatpush.msra.mxu0 %v620
        %675 = vmatpush.msra.mxu0 %v618
        %676 = vmatpush.msra.mxu0 %v616
        %677 = vmatpush.msra.mxu0 %v614
        %678 = vmatpush.msra.mxu0 %v612
        %679 = vmatmul.f32.gmra.mxu0 %v610
        %v680 = vpop.f32.mrf.mxu0
        %v681 = vadd.f32 0.0, %v680
        %682 = vdwg.mxu0
        %v683 = vld [vmem:[#allocation2] sm:$0xf]
        %v686 = vrot.slane %v681, 6
        %v687 = vsel %vm280, %v661, %v686
        %v689 = vadd.f32 %v683, %v687
        %v690 = vsub.f32 0.0, %v689
        %v691 = vmul.f32 %v690, 1.442695
        %v692 = vpow.pop %v691
        %v693 = vadd.f32 %v692, 1.0
        %v694 = vrcp.pop %v693
        %v695 = vmul.f32 %v693, %v694
        %v696 = vsub.f32 1.0, %v695
        %v697 = vmul.f32 %v694, %v696
        %v698 = vadd.f32 %v694, %v697
        %vm699 = vweird.f32 %v693
        %vm700 = vweird.f32 %v694
        %vm701 = vmor %vm699, %vm700
        %v702 = vsel %vm701, %v694, %v698
        %v703 = vand.u32 2147483647, %v693
        %vm704 = vcmp.eq.f32.partialorder %v703, 8.507059e+37
        %v705 = vand.u32 %v693, 2147483648
        %v706 = vor.u32 1.1754944e-38, %v705
        %v707 = vsel %vm704, %v706, %v702
        %v708 = vmul.f32 1.0, %v707
        %v710 = vrot.slane %v689, 2
        %v712 = vtanh.pop %v710
        %714 = vrot.lane.b32.xlu0 %v712, 64
        %v715 = vpop.permute.xlu0 %714
        %v717 = vmul.f32 %v708, %v715
        %719 = vrot.lane.b32.xlu0 %v610, 96
        %v720 = vpop.permute.xlu0 %719
        %v722 = vmul.f32 %v708, %v720
        %724 = vrot.lane.b32.xlu0 %v722, 64
        %v725 = vpop.permute.xlu0 %724
        %v727 = vadd.f32 %v717, %v725
        %728 = vrot.lane.b32.xlu0 %v610, 64
        %v729 = vpop.permute.xlu0 %728
        %v731 = vmul.f32 %v708, %v729
        %733 = vrot.lane.b32.xlu0 %v731, 32
        %v734 = vpop.permute.xlu0 %733
        %v736 = vadd.f32 %v727, %v734
        %v737 = vtanh.pop %v736
        %739 = vrot.lane.b32.xlu0 %v737, 32
        %v740 = vpop.permute.xlu0 %739
        %v742 = vmul.f32 %v708, %v740
        %744 = vst [vmem:[#allocation1] ss:$4 sm:$0xff] %v742
        %v745 = vld.sshfl [vmem:[#allocation1] sm:$0xff pattern:$0x73625140]
        %746 = vrot.lane.b32.xlu0 %v745, 32
        %v747 = vpop.permute.xlu0 %746
        %750 = vst [vmem:[#allocation1] ss:$4 sm:$0xff] %v736
        %v751 = vld.sshfl [vmem:[#allocation1] sm:$0xff pattern:$0x73625140]
        %752 = vrot.lane.b32.xlu0 %v751, 96
        %v753 = vpop.permute.xlu0 %752
        %v755 = vsel %vm349, %v747, %v753
        %756 = vst.msk [vmem:[#allocation4 + $0x3] sm:$0x1] %vm138, %v755
        %757 = vst.msk [vmem:[#allocation4 + $0x12] sm:$0x2] %vm352, %v755
        %s758 = sadd.s32 %s142, 9
        %s759 = sld [smem:[#allocation6 + %s758]]
        %s760 = sadd.s32 %s142, 10
        %s761 = sld [smem:[#allocation6 + %s760]]
        %s762 = sadd.s32 %s142, 11
        %s763 = sld [smem:[#allocation6 + %s762]]
        %s764 = sshra.s32 %s759, 3
        %s765 = sand.u32 %s759, 7
        %s766 = sshra.s32 %s759, 3
        %s767 = sand.u32 %s759, 7
        %s768 = smul.u32 %s764, 2
        %s769 = smul.u32 %s768, 8
        %s770 = sadd.s32 %s769, %s767
        %s771 = scalar_lea.vmem %s2, %s770
        %v772 = vld [vmem:[%s771] ss:$8 sm:$0x3]
        %773 = vst.msk [vmem:[#allocation2] ss:$2 sm:$0x3] %vm160, %v772
        %s774 = scalar_lea.vmem [#allocation4], %s761
        %v775 = vld [vmem:[%s774] sm:$0x1]
        %776 = vst.msk [vmem:[#allocation3] sm:$0x1] %vm138, %v775
        %s777 = scalar_lea.vmem [#allocation4], %s763
        %v778 = vld [vmem:[%s777] sm:$0x1]
        %780 = vrot.lane.b32.xlu0 %v778, 64
        %v781 = vpop.permute.xlu0 %780
        %783 = vst.msk [vmem:[#allocation3] sm:$0x1] %vm171, %v781
        %s784 = sadd.s32 %s174, 9
        %s785 = sld [smem:[#allocation6 + %s784]]
        %s786 = sadd.s32 %s174, 10
        %s787 = sld [smem:[#allocation6 + %s786]]
        %s788 = sadd.s32 %s174, 11
        %s789 = sld [smem:[#allocation6 + %s788]]
        %s790 = sshra.s32 %s785, 3
        %s791 = sand.u32 %s785, 7
        %s792 = sshra.s32 %s785, 3
        %s793 = sand.u32 %s785, 7
        %s794 = smul.u32 %s790, 2
        %s795 = smul.u32 %s794, 8
        %s796 = sadd.s32 %s795, %s793
        %s797 = scalar_lea.vmem %s2, %s796
        %v798 = vld [vmem:[%s797] ss:$8 sm:$0x3]
        %799 = vst.msk [vmem:[%s189] ss:$2 sm:$0x3] %vm160, %v798
        %s800 = sadd.s32 %s787, 16
        %s801 = scalar_lea.vmem [#allocation4], %s800
        %v802 = vld [vmem:[%s801] sm:$0x1]
        %803 = vst.msk [vmem:[#allocation3 + $0x1] sm:$0x1] %vm138, %v802
        %s804 = sadd.s32 %s789, 16
        %s805 = scalar_lea.vmem [#allocation4], %s804
        %v806 = vld [vmem:[%s805] sm:$0x1]
        %808 = vrot.lane.b32.xlu0 %v806, 64
        %v809 = vpop.permute.xlu0 %808
        %811 = vst.msk [vmem:[#allocation3 + $0x1] sm:$0x1] %vm171, %v809
        %v812 = vld [vmem:[#allocation3] sm:$0xff]
        %v813 = vld [vmem:[%s3] sm:$0xff]
        %v814 = vld [vmem:[%s3 + $0x8] sm:$0xff]
        %v815 = vld [vmem:[%s3 + $0x10] sm:$0xff]
        %v816 = vld [vmem:[%s3 + $0x18] sm:$0xff]
        %v817 = vld [vmem:[%s3 + $0x20] sm:$0xff]
        %v818 = vld [vmem:[%s3 + $0x28] sm:$0xff]
        %v819 = vld [vmem:[%s3 + $0x30] sm:$0xff]
        %v820 = vld [vmem:[%s3 + $0x38] sm:$0xff]
        %v821 = vld [vmem:[%s3 + $0x40] sm:$0xff]
        %v822 = vld [vmem:[%s3 + $0x48] sm:$0xff]
        %v823 = vld [vmem:[%s3 + $0x50] sm:$0xff]
        %v824 = vld [vmem:[%s3 + $0x58] sm:$0xff]
        %v825 = vld [vmem:[%s3 + $0x60] sm:$0xff]
        %v826 = vld [vmem:[%s3 + $0x68] sm:$0xff]
        %v827 = vld [vmem:[%s3 + $0x70] sm:$0xff]
        %v828 = vld [vmem:[%s3 + $0x78] sm:$0xff]
        %v829 = vld [vmem:[%s3 + $0x80] sm:$0xff]
        %v830 = vld [vmem:[%s3 + $0x88] sm:$0xff]
        %v831 = vld [vmem:[%s3 + $0x90] sm:$0xff]
        %v832 = vld [vmem:[%s3 + $0x98] sm:$0xff]
        %v833 = vld [vmem:[%s3 + $0xa0] sm:$0xff]
        %v834 = vld [vmem:[%s3 + $0xa8] sm:$0xff]
        %v835 = vld [vmem:[%s3 + $0xb0] sm:$0xff]
        %v836 = vld [vmem:[%s3 + $0xb8] sm:$0xff]
        %v837 = vld [vmem:[%s3 + $0xc0] sm:$0xff]
        %v838 = vld [vmem:[%s3 + $0xc8] sm:$0xff]
        %v839 = vld [vmem:[%s3 + $0xd0] sm:$0xff]
        %v840 = vld [vmem:[%s3 + $0xd8] sm:$0xff]
        %v841 = vld [vmem:[%s3 + $0xe0] sm:$0xff]
        %v842 = vld [vmem:[%s3 + $0xe8] sm:$0xff]
        %v843 = vld [vmem:[%s3 + $0xf0] sm:$0xff]
        %v844 = vld [vmem:[%s3 + $0xf8] sm:$0xff]
        %845 = vmatpush.msra.mxu0 %v843
        %846 = vmatpush.msra.mxu0 %v841
        %847 = vmatpush.msra.mxu0 %v839
        %848 = vmatpush.msra.mxu0 %v837
        %849 = vmatpush.msra.mxu0 %v835
        %850 = vmatpush.msra.mxu0 %v833
        %851 = vmatpush.msra.mxu0 %v831
        %852 = vmatpush.msra.mxu0 %v829
        %853 = vmatpush.msra.mxu0 %v827
        %854 = vmatpush.msra.mxu0 %v825
        %855 = vmatpush.msra.mxu0 %v823
        %856 = vmatpush.msra.mxu0 %v821
        %857 = vmatpush.msra.mxu0 %v819
        %858 = vmatpush.msra.mxu0 %v817
        %859 = vmatpush.msra.mxu0 %v815
        %860 = vmatpush.msra.mxu0 %v813
        %861 = vmatmul.f32.gmra.mxu0 %v812
        %v862 = vpop.f32.mrf.mxu0
        %v863 = vadd.f32 0.0, %v862
        %864 = vdwg.mxu0
        %865 = vmatpush.msra.mxu0 %v844
        %866 = vmatpush.msra.mxu0 %v842
        %867 = vmatpush.msra.mxu0 %v840
        %868 = vmatpush.msra.mxu0 %v838
        %869 = vmatpush.msra.mxu0 %v836
        %870 = vmatpush.msra.mxu0 %v834
        %871 = vmatpush.msra.mxu0 %v832
        %872 = vmatpush.msra.mxu0 %v830
        %873 = vmatpush.msra.mxu0 %v828
        %874 = vmatpush.msra.mxu0 %v826
        %875 = vmatpush.msra.mxu0 %v824
        %876 = vmatpush.msra.mxu0 %v822
        %877 = vmatpush.msra.mxu0 %v820
        %878 = vmatpush.msra.mxu0 %v818
        %879 = vmatpush.msra.mxu0 %v816
        %880 = vmatpush.msra.mxu0 %v814
        %881 = vmatmul.f32.gmra.mxu0 %v812
        %v882 = vpop.f32.mrf.mxu0
        %v883 = vadd.f32 0.0, %v882
        %884 = vdwg.mxu0
        %v885 = vld [vmem:[#allocation2] sm:$0xf]
        %v888 = vrot.slane %v883, 6
        %v889 = vsel %vm280, %v863, %v888
        %v891 = vadd.f32 %v885, %v889
        %v892 = vsub.f32 0.0, %v891
        %v893 = vmul.f32 %v892, 1.442695
        %v894 = vpow.pop %v893
        %v895 = vadd.f32 %v894, 1.0
        %v896 = vrcp.pop %v895
        %v897 = vmul.f32 %v895, %v896
        %v898 = vsub.f32 1.0, %v897
        %v899 = vmul.f32 %v896, %v898
        %v900 = vadd.f32 %v896, %v899
        %vm901 = vweird.f32 %v895
        %vm902 = vweird.f32 %v896
        %vm903 = vmor %vm901, %vm902
        %v904 = vsel %vm903, %v896, %v900
        %v905 = vand.u32 2147483647, %v895
        %vm906 = vcmp.eq.f32.partialorder %v905, 8.507059e+37
        %v907 = vand.u32 %v895, 2147483648
        %v908 = vor.u32 1.1754944e-38, %v907
        %v909 = vsel %vm906, %v908, %v904
        %v910 = vmul.f32 1.0, %v909
        %v912 = vrot.slane %v891, 2
        %v914 = vtanh.pop %v912
        %916 = vrot.lane.b32.xlu0 %v914, 64
        %v917 = vpop.permute.xlu0 %916
        %v919 = vmul.f32 %v910, %v917
        %921 = vrot.lane.b32.xlu0 %v812, 96
        %v922 = vpop.permute.xlu0 %921
        %v924 = vmul.f32 %v910, %v922
        %926 = vrot.lane.b32.xlu0 %v924, 64
        %v927 = vpop.permute.xlu0 %926
        %v929 = vadd.f32 %v919, %v927
        %930 = vrot.lane.b32.xlu0 %v812, 64
        %v931 = vpop.permute.xlu0 %930
        %v933 = vmul.f32 %v910, %v931
        %935 = vrot.lane.b32.xlu0 %v933, 32
        %v936 = vpop.permute.xlu0 %935
        %v938 = vadd.f32 %v929, %v936
        %v939 = vtanh.pop %v938
        %941 = vrot.lane.b32.xlu0 %v939, 32
        %v942 = vpop.permute.xlu0 %941
        %v944 = vmul.f32 %v910, %v942
        %946 = vst [vmem:[#allocation1] ss:$4 sm:$0xff] %v944
        %v947 = vld.sshfl [vmem:[#allocation1] sm:$0xff pattern:$0x73625140]
        %948 = vrot.lane.b32.xlu0 %v947, 32
        %v949 = vpop.permute.xlu0 %948
        %952 = vst [vmem:[#allocation1] ss:$4 sm:$0xff] %v938
        %v953 = vld.sshfl [vmem:[#allocation1] sm:$0xff pattern:$0x73625140]
        %954 = vrot.lane.b32.xlu0 %v953, 96
        %v955 = vpop.permute.xlu0 %954
        %v957 = vsel %vm349, %v949, %v955
        %958 = vst.msk [vmem:[#allocation4 + $0x4] sm:$0x1] %vm138, %v957
        %959 = vst.msk [vmem:[#allocation4 + $0x13] sm:$0x2] %vm352, %v957
        %s960 = sadd.s32 %s142, 12
        %s961 = sld [smem:[#allocation6 + %s960]]
        %s962 = sadd.s32 %s142, 13
        %s963 = sld [smem:[#allocation6 + %s962]]
        %s964 = sadd.s32 %s142, 14
        %s965 = sld [smem:[#allocation6 + %s964]]
        %s966 = sshra.s32 %s961, 3
        %s967 = sand.u32 %s961, 7
        %s968 = sshra.s32 %s961, 3
        %s969 = sand.u32 %s961, 7
        %s970 = smul.u32 %s966, 2
        %s971 = smul.u32 %s970, 8
        %s972 = sadd.s32 %s971, %s969
        %s973 = scalar_lea.vmem %s2, %s972
        %v974 = vld [vmem:[%s973] ss:$8 sm:$0x3]
        %975 = vst.msk [vmem:[#allocation2] ss:$2 sm:$0x3] %vm160, %v974
        %s976 = scalar_lea.vmem [#allocation4], %s963
        %v977 = vld [vmem:[%s976] sm:$0x1]
        %978 = vst.msk [vmem:[#allocation3] sm:$0x1] %vm138, %v977
        %s979 = scalar_lea.vmem [#allocation4], %s965
        %v980 = vld [vmem:[%s979] sm:$0x1]
        %982 = vrot.lane.b32.xlu0 %v980, 64
        %v983 = vpop.permute.xlu0 %982
        %985 = vst.msk [vmem:[#allocation3] sm:$0x1] %vm171, %v983
        %s986 = sadd.s32 %s174, 12
        %s987 = sld [smem:[#allocation6 + %s986]]
        %s988 = sadd.s32 %s174, 13
        %s989 = sld [smem:[#allocation6 + %s988]]
        %s990 = sadd.s32 %s174, 14
        %s991 = sld [smem:[#allocation6 + %s990]]
        %s992 = sshra.s32 %s987, 3
        %s993 = sand.u32 %s987, 7
        %s994 = sshra.s32 %s987, 3
        %s995 = sand.u32 %s987, 7
        %s996 = smul.u32 %s992, 2
        %s997 = smul.u32 %s996, 8
        %s998 = sadd.s32 %s997, %s995
        %s999 = scalar_lea.vmem %s2, %s998
        %v1000 = vld [vmem:[%s999] ss:$8 sm:$0x3]
        %1001 = vst.msk [vmem:[%s189] ss:$2 sm:$0x3] %vm160, %v1000
        %s1002 = sadd.s32 %s989, 16
        %s1003 = scalar_lea.vmem [#allocation4], %s1002
        %v1004 = vld [vmem:[%s1003] sm:$0x1]
        %1005 = vst.msk [vmem:[#allocation3 + $0x1] sm:$0x1] %vm138, %v1004
        %s1006 = sadd.s32 %s991, 16
        %s1007 = scalar_lea.vmem [#allocation4], %s1006
        %v1008 = vld [vmem:[%s1007] sm:$0x1]
        %1010 = vrot.lane.b32.xlu0 %v1008, 64
        %v1011 = vpop.permute.xlu0 %1010
        %1013 = vst.msk [vmem:[#allocation3 + $0x1] sm:$0x1] %vm171, %v1011
        %v1014 = vld [vmem:[#allocation3] sm:$0xff]
        %v1015 = vld [vmem:[%s3] sm:$0xff]
        %v1016 = vld [vmem:[%s3 + $0x8] sm:$0xff]
        %v1017 = vld [vmem:[%s3 + $0x10] sm:$0xff]
        %v1018 = vld [vmem:[%s3 + $0x18] sm:$0xff]
        %v1019 = vld [vmem:[%s3 + $0x20] sm:$0xff]
        %v1020 = vld [vmem:[%s3 + $0x28] sm:$0xff]
        %v1021 = vld [vmem:[%s3 + $0x30] sm:$0xff]
        %v1022 = vld [vmem:[%s3 + $0x38] sm:$0xff]
        %v1023 = vld [vmem:[%s3 + $0x40] sm:$0xff]
        %v1024 = vld [vmem:[%s3 + $0x48] sm:$0xff]
        %v1025 = vld [vmem:[%s3 + $0x50] sm:$0xff]
        %v1026 = vld [vmem:[%s3 + $0x58] sm:$0xff]
        %v1027 = vld [vmem:[%s3 + $0x60] sm:$0xff]
        %v1028 = vld [vmem:[%s3 + $0x68] sm:$0xff]
        %v1029 = vld [vmem:[%s3 + $0x70] sm:$0xff]
        %v1030 = vld [vmem:[%s3 + $0x78] sm:$0xff]
        %v1031 = vld [vmem:[%s3 + $0x80] sm:$0xff]
        %v1032 = vld [vmem:[%s3 + $0x88] sm:$0xff]
        %v1033 = vld [vmem:[%s3 + $0x90] sm:$0xff]
        %v1034 = vld [vmem:[%s3 + $0x98] sm:$0xff]
        %v1035 = vld [vmem:[%s3 + $0xa0] sm:$0xff]
        %v1036 = vld [vmem:[%s3 + $0xa8] sm:$0xff]
        %v1037 = vld [vmem:[%s3 + $0xb0] sm:$0xff]
        %v1038 = vld [vmem:[%s3 + $0xb8] sm:$0xff]
        %v1039 = vld [vmem:[%s3 + $0xc0] sm:$0xff]
        %v1040 = vld [vmem:[%s3 + $0xc8] sm:$0xff]
        %v1041 = vld [vmem:[%s3 + $0xd0] sm:$0xff]
        %v1042 = vld [vmem:[%s3 + $0xd8] sm:$0xff]
        %v1043 = vld [vmem:[%s3 + $0xe0] sm:$0xff]
        %v1044 = vld [vmem:[%s3 + $0xe8] sm:$0xff]
        %v1045 = vld [vmem:[%s3 + $0xf0] sm:$0xff]
        %v1046 = vld [vmem:[%s3 + $0xf8] sm:$0xff]
        %1047 = vmatpush.msra.mxu0 %v1045
        %1048 = vmatpush.msra.mxu0 %v1043
        %1049 = vmatpush.msra.mxu0 %v1041
        %1050 = vmatpush.msra.mxu0 %v1039
        %1051 = vmatpush.msra.mxu0 %v1037
        %1052 = vmatpush.msra.mxu0 %v1035
        %1053 = vmatpush.msra.mxu0 %v1033
        %1054 = vmatpush.msra.mxu0 %v1031
        %1055 = vmatpush.msra.mxu0 %v1029
        %1056 = vmatpush.msra.mxu0 %v1027
        %1057 = vmatpush.msra.mxu0 %v1025
        %1058 = vmatpush.msra.mxu0 %v1023
        %1059 = vmatpush.msra.mxu0 %v1021
        %1060 = vmatpush.msra.mxu0 %v1019
        %1061 = vmatpush.msra.mxu0 %v1017
        %1062 = vmatpush.msra.mxu0 %v1015
        %1063 = vmatmul.f32.gmra.mxu0 %v1014
        %v1064 = vpop.f32.mrf.mxu0
        %v1065 = vadd.f32 0.0, %v1064
        %1066 = vdwg.mxu0
        %1067 = vmatpush.msra.mxu0 %v1046
        %1068 = vmatpush.msra.mxu0 %v1044
        %1069 = vmatpush.msra.mxu0 %v1042
        %1070 = vmatpush.msra.mxu0 %v1040
        %1071 = vmatpush.msra.mxu0 %v1038
        %1072 = vmatpush.msra.mxu0 %v1036
        %1073 = vmatpush.msra.mxu0 %v1034
        %1074 = vmatpush.msra.mxu0 %v1032
        %1075 = vmatpush.msra.mxu0 %v1030
        %1076 = vmatpush.msra.mxu0 %v1028
        %1077 = vmatpush.msra.mxu0 %v1026
        %1078 = vmatpush.msra.mxu0 %v1024
        %1079 = vmatpush.msra.mxu0 %v1022
        %1080 = vmatpush.msra.mxu0 %v1020
        %1081 = vmatpush.msra.mxu0 %v1018
        %1082 = vmatpush.msra.mxu0 %v1016
        %1083 = vmatmul.f32.gmra.mxu0 %v1014
        %v1084 = vpop.f32.mrf.mxu0
        %v1085 = vadd.f32 0.0, %v1084
        %1086 = vdwg.mxu0
        %v1087 = vld [vmem:[#allocation2] sm:$0xf]
        %v1090 = vrot.slane %v1085, 6
        %v1091 = vsel %vm280, %v1065, %v1090
        %v1093 = vadd.f32 %v1087, %v1091
        %v1094 = vsub.f32 0.0, %v1093
        %v1095 = vmul.f32 %v1094, 1.442695
        %v1096 = vpow.pop %v1095
        %v1097 = vadd.f32 %v1096, 1.0
        %v1098 = vrcp.pop %v1097
        %v1099 = vmul.f32 %v1097, %v1098
        %v1100 = vsub.f32 1.0, %v1099
        %v1101 = vmul.f32 %v1098, %v1100
        %v1102 = vadd.f32 %v1098, %v1101
        %vm1103 = vweird.f32 %v1097
        %vm1104 = vweird.f32 %v1098
        %vm1105 = vmor %vm1103, %vm1104
        %v1106 = vsel %vm1105, %v1098, %v1102
        %v1107 = vand.u32 2147483647, %v1097
        %vm1108 = vcmp.eq.f32.partialorder %v1107, 8.507059e+37
        %v1109 = vand.u32 %v1097, 2147483648
        %v1110 = vor.u32 1.1754944e-38, %v1109
        %v1111 = vsel %vm1108, %v1110, %v1106
        %v1112 = vmul.f32 1.0, %v1111
        %v1114 = vrot.slane %v1093, 2
        %v1116 = vtanh.pop %v1114
        %1118 = vrot.lane.b32.xlu0 %v1116, 64
        %v1119 = vpop.permute.xlu0 %1118
        %v1121 = vmul.f32 %v1112, %v1119
        %1123 = vrot.lane.b32.xlu0 %v1014, 96
        %v1124 = vpop.permute.xlu0 %1123
        %v1126 = vmul.f32 %v1112, %v1124
        %1128 = vrot.lane.b32.xlu0 %v1126, 64
        %v1129 = vpop.permute.xlu0 %1128
        %v1131 = vadd.f32 %v1121, %v1129
        %1132 = vrot.lane.b32.xlu0 %v1014, 64
        %v1133 = vpop.permute.xlu0 %1132
        %v1135 = vmul.f32 %v1112, %v1133
        %1137 = vrot.lane.b32.xlu0 %v1135, 32
        %v1138 = vpop.permute.xlu0 %1137
        %v1140 = vadd.f32 %v1131, %v1138
        %v1141 = vtanh.pop %v1140
        %1143 = vrot.lane.b32.xlu0 %v1141, 32
        %v1144 = vpop.permute.xlu0 %1143
        %v1146 = vmul.f32 %v1112, %v1144
        %1148 = vst [vmem:[#allocation1] ss:$4 sm:$0xff] %v1146
        %v1149 = vld.sshfl [vmem:[#allocation1] sm:$0xff pattern:$0x73625140]
        %1150 = vrot.lane.b32.xlu0 %v1149, 32
        %v1151 = vpop.permute.xlu0 %1150
        %1154 = vst [vmem:[#allocation1] ss:$4 sm:$0xff] %v1140
        %v1155 = vld.sshfl [vmem:[#allocation1] sm:$0xff pattern:$0x73625140]
        %1156 = vrot.lane.b32.xlu0 %v1155, 96
        %v1157 = vpop.permute.xlu0 %1156
        %v1159 = vsel %vm349, %v1151, %v1157
        %1160 = vst.msk [vmem:[#allocation4 + $0x5] sm:$0x1] %vm138, %v1159
        %1161 = vst.msk [vmem:[#allocation4 + $0x14] sm:$0x2] %vm352, %v1159
        %s1162 = sadd.s32 %s142, 15
        %s1163 = sld [smem:[#allocation6 + %s1162]]
        %s1164 = sadd.s32 %s142, 16
        %s1165 = sld [smem:[#allocation6 + %s1164]]
        %s1166 = sadd.s32 %s142, 17
        %s1167 = sld [smem:[#allocation6 + %s1166]]
        %s1168 = sshra.s32 %s1163, 3
        %s1169 = sand.u32 %s1163, 7
        %s1170 = sshra.s32 %s1163, 3
        %s1171 = sand.u32 %s1163, 7
        %s1172 = smul.u32 %s1168, 2
        %s1173 = smul.u32 %s1172, 8
        %s1174 = sadd.s32 %s1173, %s1171
        %s1175 = scalar_lea.vmem %s2, %s1174
        %v1176 = vld [vmem:[%s1175] ss:$8 sm:$0x3]
        %1177 = vst.msk [vmem:[#allocation2] ss:$2 sm:$0x3] %vm160, %v1176
        %s1178 = scalar_lea.vmem [#allocation4], %s1165
        %v1179 = vld [vmem:[%s1178] sm:$0x1]
        %1180 = vst.msk [vmem:[#allocation3] sm:$0x1] %vm138, %v1179
        %s1181 = scalar_lea.vmem [#allocation4], %s1167
        %v1182 = vld [vmem:[%s1181] sm:$0x1]
        %1184 = vrot.lane.b32.xlu0 %v1182, 64
        %v1185 = vpop.permute.xlu0 %1184
        %1187 = vst.msk [vmem:[#allocation3] sm:$0x1] %vm171, %v1185
        %s1188 = sadd.s32 %s174, 15
        %s1189 = sld [smem:[#allocation6 + %s1188]]
        %s1190 = sadd.s32 %s174, 16
        %s1191 = sld [smem:[#allocation6 + %s1190]]
        %s1192 = sadd.s32 %s174, 17
        %s1193 = sld [smem:[#allocation6 + %s1192]]
        %s1194 = sshra.s32 %s1189, 3
        %s1195 = sand.u32 %s1189, 7
        %s1196 = sshra.s32 %s1189, 3
        %s1197 = sand.u32 %s1189, 7
        %s1198 = smul.u32 %s1194, 2
        %s1199 = smul.u32 %s1198, 8
        %s1200 = sadd.s32 %s1199, %s1197
        %s1201 = scalar_lea.vmem %s2, %s1200
        %v1202 = vld [vmem:[%s1201] ss:$8 sm:$0x3]
        %1203 = vst.msk [vmem:[%s189] ss:$2 sm:$0x3] %vm160, %v1202
        %s1204 = sadd.s32 %s1191, 16
        %s1205 = scalar_lea.vmem [#allocation4], %s1204
        %v1206 = vld [vmem:[%s1205] sm:$0x1]
        %1207 = vst.msk [vmem:[#allocation3 + $0x1] sm:$0x1] %vm138, %v1206
        %s1208 = sadd.s32 %s1193, 16
        %s1209 = scalar_lea.vmem [#allocation4], %s1208
        %v1210 = vld [vmem:[%s1209] sm:$0x1]
        %1212 = vrot.lane.b32.xlu0 %v1210, 64
        %v1213 = vpop.permute.xlu0 %1212
        %1215 = vst.msk [vmem:[#allocation3 + $0x1] sm:$0x1] %vm171, %v1213
        %v1216 = vld [vmem:[#allocation3] sm:$0xff]
        %v1217 = vld [vmem:[%s3] sm:$0xff]
        %v1218 = vld [vmem:[%s3 + $0x8] sm:$0xff]
        %v1219 = vld [vmem:[%s3 + $0x10] sm:$0xff]
        %v1220 = vld [vmem:[%s3 + $0x18] sm:$0xff]
        %v1221 = vld [vmem:[%s3 + $0x20] sm:$0xff]
        %v1222 = vld [vmem:[%s3 + $0x28] sm:$0xff]
        %v1223 = vld [vmem:[%s3 + $0x30] sm:$0xff]
        %v1224 = vld [vmem:[%s3 + $0x38] sm:$0xff]
        %v1225 = vld [vmem:[%s3 + $0x40] sm:$0xff]
        %v1226 = vld [vmem:[%s3 + $0x48] sm:$0xff]
        %v1227 = vld [vmem:[%s3 + $0x50] sm:$0xff]
        %v1228 = vld [vmem:[%s3 + $0x58] sm:$0xff]
        %v1229 = vld [vmem:[%s3 + $0x60] sm:$0xff]
        %v1230 = vld [vmem:[%s3 + $0x68] sm:$0xff]
        %v1231 = vld [vmem:[%s3 + $0x70] sm:$0xff]
        %v1232 = vld [vmem:[%s3 + $0x78] sm:$0xff]
        %v1233 = vld [vmem:[%s3 + $0x80] sm:$0xff]
        %v1234 = vld [vmem:[%s3 + $0x88] sm:$0xff]
        %v1235 = vld [vmem:[%s3 + $0x90] sm:$0xff]
        %v1236 = vld [vmem:[%s3 + $0x98] sm:$0xff]
        %v1237 = vld [vmem:[%s3 + $0xa0] sm:$0xff]
        %v1238 = vld [vmem:[%s3 + $0xa8] sm:$0xff]
        %v1239 = vld [vmem:[%s3 + $0xb0] sm:$0xff]
        %v1240 = vld [vmem:[%s3 + $0xb8] sm:$0xff]
        %v1241 = vld [vmem:[%s3 + $0xc0] sm:$0xff]
        %v1242 = vld [vmem:[%s3 + $0xc8] sm:$0xff]
        %v1243 = vld [vmem:[%s3 + $0xd0] sm:$0xff]
        %v1244 = vld [vmem:[%s3 + $0xd8] sm:$0xff]
        %v1245 = vld [vmem:[%s3 + $0xe0] sm:$0xff]
        %v1246 = vld [vmem:[%s3 + $0xe8] sm:$0xff]
        %v1247 = vld [vmem:[%s3 + $0xf0] sm:$0xff]
        %v1248 = vld [vmem:[%s3 + $0xf8] sm:$0xff]
        %1249 = vmatpush.msra.mxu0 %v1247
        %1250 = vmatpush.msra.mxu0 %v1245
        %1251 = vmatpush.msra.mxu0 %v1243
        %1252 = vmatpush.msra.mxu0 %v1241
        %1253 = vmatpush.msra.mxu0 %v1239
        %1254 = vmatpush.msra.mxu0 %v1237
        %1255 = vmatpush.msra.mxu0 %v1235
        %1256 = vmatpush.msra.mxu0 %v1233
        %1257 = vmatpush.msra.mxu0 %v1231
        %1258 = vmatpush.msra.mxu0 %v1229
        %1259 = vmatpush.msra.mxu0 %v1227
        %1260 = vmatpush.msra.mxu0 %v1225
        %1261 = vmatpush.msra.mxu0 %v1223
        %1262 = vmatpush.msra.mxu0 %v1221
        %1263 = vmatpush.msra.mxu0 %v1219
        %1264 = vmatpush.msra.mxu0 %v1217
        %1265 = vmatmul.f32.gmra.mxu0 %v1216
        %v1266 = vpop.f32.mrf.mxu0
        %v1267 = vadd.f32 0.0, %v1266
        %1268 = vdwg.mxu0
        %1269 = vmatpush.msra.mxu0 %v1248
        %1270 = vmatpush.msra.mxu0 %v1246
        %1271 = vmatpush.msra.mxu0 %v1244
        %1272 = vmatpush.msra.mxu0 %v1242
        %1273 = vmatpush.msra.mxu0 %v1240
        %1274 = vmatpush.msra.mxu0 %v1238
        %1275 = vmatpush.msra.mxu0 %v1236
        %1276 = vmatpush.msra.mxu0 %v1234
        %1277 = vmatpush.msra.mxu0 %v1232
        %1278 = vmatpush.msra.mxu0 %v1230
        %1279 = vmatpush.msra.mxu0 %v1228
        %1280 = vmatpush.msra.mxu0 %v1226
        %1281 = vmatpush.msra.mxu0 %v1224
        %1282 = vmatpush.msra.mxu0 %v1222
        %1283 = vmatpush.msra.mxu0 %v1220
        %1284 = vmatpush.msra.mxu0 %v1218
        %1285 = vmatmul.f32.gmra.mxu0 %v1216
        %v1286 = vpop.f32.mrf.mxu0
        %v1287 = vadd.f32 0.0, %v1286
        %1288 = vdwg.mxu0
        %v1289 = vld [vmem:[#allocation2] sm:$0xf]
        %v1292 = vrot.slane %v1287, 6
        %v1293 = vsel %vm280, %v1267, %v1292
        %v1295 = vadd.f32 %v1289, %v1293
        %v1296 = vsub.f32 0.0, %v1295
        %v1297 = vmul.f32 %v1296, 1.442695
        %v1298 = vpow.pop %v1297
        %v1299 = vadd.f32 %v1298, 1.0
        %v1300 = vrcp.pop %v1299
        %v1301 = vmul.f32 %v1299, %v1300
        %v1302 = vsub.f32 1.0, %v1301
        %v1303 = vmul.f32 %v1300, %v1302
        %v1304 = vadd.f32 %v1300, %v1303
        %vm1305 = vweird.f32 %v1299
        %vm1306 = vweird.f32 %v1300
        %vm1307 = vmor %vm1305, %vm1306
        %v1308 = vsel %vm1307, %v1300, %v1304
        %v1309 = vand.u32 2147483647, %v1299
        %vm1310 = vcmp.eq.f32.partialorder %v1309, 8.507059e+37
        %v1311 = vand.u32 %v1299, 2147483648
        %v1312 = vor.u32 1.1754944e-38, %v1311
        %v1313 = vsel %vm1310, %v1312, %v1308
        %v1314 = vmul.f32 1.0, %v1313
        %v1316 = vrot.slane %v1295, 2
        %v1318 = vtanh.pop %v1316
        %1320 = vrot.lane.b32.xlu0 %v1318, 64
        %v1321 = vpop.permute.xlu0 %1320
        %v1323 = vmul.f32 %v1314, %v1321
        %1325 = vrot.lane.b32.xlu0 %v1216, 96
        %v1326 = vpop.permute.xlu0 %1325
        %v1328 = vmul.f32 %v1314, %v1326
        %1330 = vrot.lane.b32.xlu0 %v1328, 64
        %v1331 = vpop.permute.xlu0 %1330
        %v1333 = vadd.f32 %v1323, %v1331
        %1334 = vrot.lane.b32.xlu0 %v1216, 64
        %v1335 = vpop.permute.xlu0 %1334
        %v1337 = vmul.f32 %v1314, %v1335
        %1339 = vrot.lane.b32.xlu0 %v1337, 32
        %v1340 = vpop.permute.xlu0 %1339
        %v1342 = vadd.f32 %v1333, %v1340
        %v1343 = vtanh.pop %v1342
        %1345 = vrot.lane.b32.xlu0 %v1343, 32
        %v1346 = vpop.permute.xlu0 %1345
        %v1348 = vmul.f32 %v1314, %v1346
        %1350 = vst [vmem:[#allocation1] ss:$4 sm:$0xff] %v1348
        %v1351 = vld.sshfl [vmem:[#allocation1] sm:$0xff pattern:$0x73625140]
        %1352 = vrot.lane.b32.xlu0 %v1351, 32
        %v1353 = vpop.permute.xlu0 %1352
        %1356 = vst [vmem:[#allocation1] ss:$4 sm:$0xff] %v1342
        %v1357 = vld.sshfl [vmem:[#allocation1] sm:$0xff pattern:$0x73625140]
        %1358 = vrot.lane.b32.xlu0 %v1357, 96
        %v1359 = vpop.permute.xlu0 %1358
        %v1361 = vsel %vm349, %v1353, %v1359
        %1362 = vst.msk [vmem:[#allocation4 + $0x6] sm:$0x1] %vm138, %v1361
        %1363 = vst.msk [vmem:[#allocation4 + $0x15] sm:$0x2] %vm352, %v1361
        %s1364 = sadd.s32 %s142, 18
        %s1365 = sld [smem:[#allocation6 + %s1364]]
        %s1366 = sadd.s32 %s142, 19
        %s1367 = sld [smem:[#allocation6 + %s1366]]
        %s1368 = sadd.s32 %s142, 20
        %s1369 = sld [smem:[#allocation6 + %s1368]]
        %s1370 = sshra.s32 %s1365, 3
        %s1371 = sand.u32 %s1365, 7
        %s1372 = sshra.s32 %s1365, 3
        %s1373 = sand.u32 %s1365, 7
        %s1374 = smul.u32 %s1370, 2
        %s1375 = smul.u32 %s1374, 8
        %s1376 = sadd.s32 %s1375, %s1373
        %s1377 = scalar_lea.vmem %s2, %s1376
        %v1378 = vld [vmem:[%s1377] ss:$8 sm:$0x3]
        %1379 = vst.msk [vmem:[#allocation2] ss:$2 sm:$0x3] %vm160, %v1378
        %s1380 = scalar_lea.vmem [#allocation4], %s1367
        %v1381 = vld [vmem:[%s1380] sm:$0x1]
        %1382 = vst.msk [vmem:[#allocation3] sm:$0x1] %vm138, %v1381
        %s1383 = scalar_lea.vmem [#allocation4], %s1369
        %v1384 = vld [vmem:[%s1383] sm:$0x1]
        %1386 = vrot.lane.b32.xlu0 %v1384, 64
        %v1387 = vpop.permute.xlu0 %1386
        %1389 = vst.msk [vmem:[#allocation3] sm:$0x1] %vm171, %v1387
        %s1390 = sadd.s32 %s174, 18
        %s1391 = sld [smem:[#allocation6 + %s1390]]
        %s1392 = sadd.s32 %s174, 19
        %s1393 = sld [smem:[#allocation6 + %s1392]]
        %s1394 = sadd.s32 %s174, 20
        %s1395 = sld [smem:[#allocation6 + %s1394]]
        %s1396 = sshra.s32 %s1391, 3
        %s1397 = sand.u32 %s1391, 7
        %s1398 = sshra.s32 %s1391, 3
        %s1399 = sand.u32 %s1391, 7
        %s1400 = smul.u32 %s1396, 2
        %s1401 = smul.u32 %s1400, 8
        %s1402 = sadd.s32 %s1401, %s1399
        %s1403 = scalar_lea.vmem %s2, %s1402
        %v1404 = vld [vmem:[%s1403] ss:$8 sm:$0x3]
        %1405 = vst.msk [vmem:[%s189] ss:$2 sm:$0x3] %vm160, %v1404
        %s1406 = sadd.s32 %s1393, 16
        %s1407 = scalar_lea.vmem [#allocation4], %s1406
        %v1408 = vld [vmem:[%s1407] sm:$0x1]
        %1409 = vst.msk [vmem:[#allocation3 + $0x1] sm:$0x1] %vm138, %v1408
        %s1410 = sadd.s32 %s1395, 16
        %s1411 = scalar_lea.vmem [#allocation4], %s1410
        %v1412 = vld [vmem:[%s1411] sm:$0x1]
        %1414 = vrot.lane.b32.xlu0 %v1412, 64
        %v1415 = vpop.permute.xlu0 %1414
        %1417 = vst.msk [vmem:[#allocation3 + $0x1] sm:$0x1] %vm171, %v1415
        %v1418 = vld [vmem:[#allocation3] sm:$0xff]
        %v1419 = vld [vmem:[%s3] sm:$0xff]
        %v1420 = vld [vmem:[%s3 + $0x8] sm:$0xff]
        %v1421 = vld [vmem:[%s3 + $0x10] sm:$0xff]
        %v1422 = vld [vmem:[%s3 + $0x18] sm:$0xff]
        %v1423 = vld [vmem:[%s3 + $0x20] sm:$0xff]
        %v1424 = vld [vmem:[%s3 + $0x28] sm:$0xff]
        %v1425 = vld [vmem:[%s3 + $0x30] sm:$0xff]
        %v1426 = vld [vmem:[%s3 + $0x38] sm:$0xff]
        %v1427 = vld [vmem:[%s3 + $0x40] sm:$0xff]
        %v1428 = vld [vmem:[%s3 + $0x48] sm:$0xff]
        %v1429 = vld [vmem:[%s3 + $0x50] sm:$0xff]
        %v1430 = vld [vmem:[%s3 + $0x58] sm:$0xff]
        %v1431 = vld [vmem:[%s3 + $0x60] sm:$0xff]
        %v1432 = vld [vmem:[%s3 + $0x68] sm:$0xff]
        %v1433 = vld [vmem:[%s3 + $0x70] sm:$0xff]
        %v1434 = vld [vmem:[%s3 + $0x78] sm:$0xff]
        %v1435 = vld [vmem:[%s3 + $0x80] sm:$0xff]
        %v1436 = vld [vmem:[%s3 + $0x88] sm:$0xff]
        %v1437 = vld [vmem:[%s3 + $0x90] sm:$0xff]
        %v1438 = vld [vmem:[%s3 + $0x98] sm:$0xff]
        %v1439 = vld [vmem:[%s3 + $0xa0] sm:$0xff]
        %v1440 = vld [vmem:[%s3 + $0xa8] sm:$0xff]
        %v1441 = vld [vmem:[%s3 + $0xb0] sm:$0xff]
        %v1442 = vld [vmem:[%s3 + $0xb8] sm:$0xff]
        %v1443 = vld [vmem:[%s3 + $0xc0] sm:$0xff]
        %v1444 = vld [vmem:[%s3 + $0xc8] sm:$0xff]
        %v1445 = vld [vmem:[%s3 + $0xd0] sm:$0xff]
        %v1446 = vld [vmem:[%s3 + $0xd8] sm:$0xff]
        %v1447 = vld [vmem:[%s3 + $0xe0] sm:$0xff]
        %v1448 = vld [vmem:[%s3 + $0xe8] sm:$0xff]
        %v1449 = vld [vmem:[%s3 + $0xf0] sm:$0xff]
        %v1450 = vld [vmem:[%s3 + $0xf8] sm:$0xff]
        %1451 = vmatpush.msra.mxu0 %v1449
        %1452 = vmatpush.msra.mxu0 %v1447
        %1453 = vmatpush.msra.mxu0 %v1445
        %1454 = vmatpush.msra.mxu0 %v1443
        %1455 = vmatpush.msra.mxu0 %v1441
        %1456 = vmatpush.msra.mxu0 %v1439
        %1457 = vmatpush.msra.mxu0 %v1437
        %1458 = vmatpush.msra.mxu0 %v1435
        %1459 = vmatpush.msra.mxu0 %v1433
        %1460 = vmatpush.msra.mxu0 %v1431
        %1461 = vmatpush.msra.mxu0 %v1429
        %1462 = vmatpush.msra.mxu0 %v1427
        %1463 = vmatpush.msra.mxu0 %v1425
        %1464 = vmatpush.msra.mxu0 %v1423
        %1465 = vmatpush.msra.mxu0 %v1421
        %1466 = vmatpush.msra.mxu0 %v1419
        %1467 = vmatmul.f32.gmra.mxu0 %v1418
        %v1468 = vpop.f32.mrf.mxu0
        %v1469 = vadd.f32 0.0, %v1468
        %1470 = vdwg.mxu0
        %1471 = vmatpush.msra.mxu0 %v1450
        %1472 = vmatpush.msra.mxu0 %v1448
        %1473 = vmatpush.msra.mxu0 %v1446
        %1474 = vmatpush.msra.mxu0 %v1444
        %1475 = vmatpush.msra.mxu0 %v1442
        %1476 = vmatpush.msra.mxu0 %v1440
        %1477 = vmatpush.msra.mxu0 %v1438
        %1478 = vmatpush.msra.mxu0 %v1436
        %1479 = vmatpush.msra.mxu0 %v1434
        %1480 = vmatpush.msra.mxu0 %v1432
        %1481 = vmatpush.msra.mxu0 %v1430
        %1482 = vmatpush.msra.mxu0 %v1428
        %1483 = vmatpush.msra.mxu0 %v1426
        %1484 = vmatpush.msra.mxu0 %v1424
        %1485 = vmatpush.msra.mxu0 %v1422
        %1486 = vmatpush.msra.mxu0 %v1420
        %1487 = vmatmul.f32.gmra.mxu0 %v1418
        %v1488 = vpop.f32.mrf.mxu0
        %v1489 = vadd.f32 0.0, %v1488
        %1490 = vdwg.mxu0
        %v1491 = vld [vmem:[#allocation2] sm:$0xf]
        %v1494 = vrot.slane %v1489, 6
        %v1495 = vsel %vm280, %v1469, %v1494
        %v1497 = vadd.f32 %v1491, %v1495
        %v1498 = vsub.f32 0.0, %v1497
        %v1499 = vmul.f32 %v1498, 1.442695
        %v1500 = vpow.pop %v1499
        %v1501 = vadd.f32 %v1500, 1.0
        %v1502 = vrcp.pop %v1501
        %v1503 = vmul.f32 %v1501, %v1502
        %v1504 = vsub.f32 1.0, %v1503
        %v1505 = vmul.f32 %v1502, %v1504
        %v1506 = vadd.f32 %v1502, %v1505
        %vm1507 = vweird.f32 %v1501
        %vm1508 = vweird.f32 %v1502
        %vm1509 = vmor %vm1507, %vm1508
        %v1510 = vsel %vm1509, %v1502, %v1506
        %v1511 = vand.u32 2147483647, %v1501
        %vm1512 = vcmp.eq.f32.partialorder %v1511, 8.507059e+37
        %v1513 = vand.u32 %v1501, 2147483648
        %v1514 = vor.u32 1.1754944e-38, %v1513
        %v1515 = vsel %vm1512, %v1514, %v1510
        %v1516 = vmul.f32 1.0, %v1515
        %v1518 = vrot.slane %v1497, 2
        %v1520 = vtanh.pop %v1518
        %1522 = vrot.lane.b32.xlu0 %v1520, 64
        %v1523 = vpop.permute.xlu0 %1522
        %v1525 = vmul.f32 %v1516, %v1523
        %1527 = vrot.lane.b32.xlu0 %v1418, 96
        %v1528 = vpop.permute.xlu0 %1527
        %v1530 = vmul.f32 %v1516, %v1528
        %1532 = vrot.lane.b32.xlu0 %v1530, 64
        %v1533 = vpop.permute.xlu0 %1532
        %v1535 = vadd.f32 %v1525, %v1533
        %1536 = vrot.lane.b32.xlu0 %v1418, 64
        %v1537 = vpop.permute.xlu0 %1536
        %v1539 = vmul.f32 %v1516, %v1537
        %1541 = vrot.lane.b32.xlu0 %v1539, 32
        %v1542 = vpop.permute.xlu0 %1541
        %v1544 = vadd.f32 %v1535, %v1542
        %v1545 = vtanh.pop %v1544
        %1547 = vrot.lane.b32.xlu0 %v1545, 32
        %v1548 = vpop.permute.xlu0 %1547
        %v1550 = vmul.f32 %v1516, %v1548
        %1552 = vst [vmem:[#allocation1] ss:$4 sm:$0xff] %v1550
        %v1553 = vld.sshfl [vmem:[#allocation1] sm:$0xff pattern:$0x73625140]
        %1554 = vrot.lane.b32.xlu0 %v1553, 32
        %v1555 = vpop.permute.xlu0 %1554
        %1558 = vst [vmem:[#allocation1] ss:$4 sm:$0xff] %v1544
        %v1559 = vld.sshfl [vmem:[#allocation1] sm:$0xff pattern:$0x73625140]
        %1560 = vrot.lane.b32.xlu0 %v1559, 96
        %v1561 = vpop.permute.xlu0 %1560
        %v1563 = vsel %vm349, %v1555, %v1561
        %1564 = vst.msk [vmem:[#allocation4 + $0x7] sm:$0x1] %vm138, %v1563
        %1565 = vst.msk [vmem:[#allocation4 + $0x16] sm:$0x2] %vm352, %v1563
        %s1566 = sadd.s32 %s142, 21
        %s1567 = sld [smem:[#allocation6 + %s1566]]
        %s1568 = sadd.s32 %s142, 22
        %s1569 = sld [smem:[#allocation6 + %s1568]]
        %s1570 = sadd.s32 %s142, 23
        %s1571 = sld [smem:[#allocation6 + %s1570]]
        %s1572 = sshra.s32 %s1567, 3
        %s1573 = sand.u32 %s1567, 7
        %s1574 = sshra.s32 %s1567, 3
        %s1575 = sand.u32 %s1567, 7
        %s1576 = smul.u32 %s1572, 2
        %s1577 = smul.u32 %s1576, 8
        %s1578 = sadd.s32 %s1577, %s1575
        %s1579 = scalar_lea.vmem %s2, %s1578
        %v1580 = vld [vmem:[%s1579] ss:$8 sm:$0x3]
        %1581 = vst.msk [vmem:[#allocation2] ss:$2 sm:$0x3] %vm160, %v1580
        %s1582 = scalar_lea.vmem [#allocation4], %s1569
        %v1583 = vld [vmem:[%s1582] sm:$0x1]
        %1584 = vst.msk [vmem:[#allocation3] sm:$0x1] %vm138, %v1583
        %s1585 = scalar_lea.vmem [#allocation4], %s1571
        %v1586 = vld [vmem:[%s1585] sm:$0x1]
        %1588 = vrot.lane.b32.xlu0 %v1586, 64
        %v1589 = vpop.permute.xlu0 %1588
        %1591 = vst.msk [vmem:[#allocation3] sm:$0x1] %vm171, %v1589
        %s1592 = sadd.s32 %s174, 21
        %s1593 = sld [smem:[#allocation6 + %s1592]]
        %s1594 = sadd.s32 %s174, 22
        %s1595 = sld [smem:[#allocation6 + %s1594]]
        %s1596 = sadd.s32 %s174, 23
        %s1597 = sld [smem:[#allocation6 + %s1596]]
        %s1598 = sshra.s32 %s1593, 3
        %s1599 = sand.u32 %s1593, 7
        %s1600 = sshra.s32 %s1593, 3
        %s1601 = sand.u32 %s1593, 7
        %s1602 = smul.u32 %s1598, 2
        %s1603 = smul.u32 %s1602, 8
        %s1604 = sadd.s32 %s1603, %s1601
        %s1605 = scalar_lea.vmem %s2, %s1604
        %v1606 = vld [vmem:[%s1605] ss:$8 sm:$0x3]
        %1607 = vst.msk [vmem:[%s189] ss:$2 sm:$0x3] %vm160, %v1606
        %s1608 = sadd.s32 %s1595, 16
        %s1609 = scalar_lea.vmem [#allocation4], %s1608
        %v1610 = vld [vmem:[%s1609] sm:$0x1]
        %1611 = vst.msk [vmem:[#allocation3 + $0x1] sm:$0x1] %vm138, %v1610
        %s1612 = sadd.s32 %s1597, 16
        %s1613 = scalar_lea.vmem [#allocation4], %s1612
        %v1614 = vld [vmem:[%s1613] sm:$0x1]
        %1616 = vrot.lane.b32.xlu0 %v1614, 64
        %v1617 = vpop.permute.xlu0 %1616
        %1619 = vst.msk [vmem:[#allocation3 + $0x1] sm:$0x1] %vm171, %v1617
        %v1620 = vld [vmem:[#allocation3] sm:$0xff]
        %v1621 = vld [vmem:[%s3] sm:$0xff]
        %v1622 = vld [vmem:[%s3 + $0x8] sm:$0xff]
        %v1623 = vld [vmem:[%s3 + $0x10] sm:$0xff]
        %v1624 = vld [vmem:[%s3 + $0x18] sm:$0xff]
        %v1625 = vld [vmem:[%s3 + $0x20] sm:$0xff]
        %v1626 = vld [vmem:[%s3 + $0x28] sm:$0xff]
        %v1627 = vld [vmem:[%s3 + $0x30] sm:$0xff]
        %v1628 = vld [vmem:[%s3 + $0x38] sm:$0xff]
        %v1629 = vld [vmem:[%s3 + $0x40] sm:$0xff]
        %v1630 = vld [vmem:[%s3 + $0x48] sm:$0xff]
        %v1631 = vld [vmem:[%s3 + $0x50] sm:$0xff]
        %v1632 = vld [vmem:[%s3 + $0x58] sm:$0xff]
        %v1633 = vld [vmem:[%s3 + $0x60] sm:$0xff]
        %v1634 = vld [vmem:[%s3 + $0x68] sm:$0xff]
        %v1635 = vld [vmem:[%s3 + $0x70] sm:$0xff]
        %v1636 = vld [vmem:[%s3 + $0x78] sm:$0xff]
        %v1637 = vld [vmem:[%s3 + $0x80] sm:$0xff]
        %v1638 = vld [vmem:[%s3 + $0x88] sm:$0xff]
        %v1639 = vld [vmem:[%s3 + $0x90] sm:$0xff]
        %v1640 = vld [vmem:[%s3 + $0x98] sm:$0xff]
        %v1641 = vld [vmem:[%s3 + $0xa0] sm:$0xff]
        %v1642 = vld [vmem:[%s3 + $0xa8] sm:$0xff]
        %v1643 = vld [vmem:[%s3 + $0xb0] sm:$0xff]
        %v1644 = vld [vmem:[%s3 + $0xb8] sm:$0xff]
        %v1645 = vld [vmem:[%s3 + $0xc0] sm:$0xff]
        %v1646 = vld [vmem:[%s3 + $0xc8] sm:$0xff]
        %v1647 = vld [vmem:[%s3 + $0xd0] sm:$0xff]
        %v1648 = vld [vmem:[%s3 + $0xd8] sm:$0xff]
        %v1649 = vld [vmem:[%s3 + $0xe0] sm:$0xff]
        %v1650 = vld [vmem:[%s3 + $0xe8] sm:$0xff]
        %v1651 = vld [vmem:[%s3 + $0xf0] sm:$0xff]
        %v1652 = vld [vmem:[%s3 + $0xf8] sm:$0xff]
        %1653 = vmatpush.msra.mxu0 %v1651
        %1654 = vmatpush.msra.mxu0 %v1649
        %1655 = vmatpush.msra.mxu0 %v1647
        %1656 = vmatpush.msra.mxu0 %v1645
        %1657 = vmatpush.msra.mxu0 %v1643
        %1658 = vmatpush.msra.mxu0 %v1641
        %1659 = vmatpush.msra.mxu0 %v1639
        %1660 = vmatpush.msra.mxu0 %v1637
        %1661 = vmatpush.msra.mxu0 %v1635
        %1662 = vmatpush.msra.mxu0 %v1633
        %1663 = vmatpush.msra.mxu0 %v1631
        %1664 = vmatpush.msra.mxu0 %v1629
        %1665 = vmatpush.msra.mxu0 %v1627
        %1666 = vmatpush.msra.mxu0 %v1625
        %1667 = vmatpush.msra.mxu0 %v1623
        %1668 = vmatpush.msra.mxu0 %v1621
        %1669 = vmatmul.f32.gmra.mxu0 %v1620
        %v1670 = vpop.f32.mrf.mxu0
        %v1671 = vadd.f32 0.0, %v1670
        %1672 = vdwg.mxu0
        %1673 = vmatpush.msra.mxu0 %v1652
        %1674 = vmatpush.msra.mxu0 %v1650
        %1675 = vmatpush.msra.mxu0 %v1648
        %1676 = vmatpush.msra.mxu0 %v1646
        %1677 = vmatpush.msra.mxu0 %v1644
        %1678 = vmatpush.msra.mxu0 %v1642
        %1679 = vmatpush.msra.mxu0 %v1640
        %1680 = vmatpush.msra.mxu0 %v1638
        %1681 = vmatpush.msra.mxu0 %v1636
        %1682 = vmatpush.msra.mxu0 %v1634
        %1683 = vmatpush.msra.mxu0 %v1632
        %1684 = vmatpush.msra.mxu0 %v1630
        %1685 = vmatpush.msra.mxu0 %v1628
        %1686 = vmatpush.msra.mxu0 %v1626
        %1687 = vmatpush.msra.mxu0 %v1624
        %1688 = vmatpush.msra.mxu0 %v1622
        %1689 = vmatmul.f32.gmra.mxu0 %v1620
        %v1690 = vpop.f32.mrf.mxu0
        %v1691 = vadd.f32 0.0, %v1690
        %1692 = vdwg.mxu0
        %v1693 = vld [vmem:[#allocation2] sm:$0xf]
        %v1696 = vrot.slane %v1691, 6
        %v1697 = vsel %vm280, %v1671, %v1696
        %v1699 = vadd.f32 %v1693, %v1697
        %v1700 = vsub.f32 0.0, %v1699
        %v1701 = vmul.f32 %v1700, 1.442695
        %v1702 = vpow.pop %v1701
        %v1703 = vadd.f32 %v1702, 1.0
        %v1704 = vrcp.pop %v1703
        %v1705 = vmul.f32 %v1703, %v1704
        %v1706 = vsub.f32 1.0, %v1705
        %v1707 = vmul.f32 %v1704, %v1706
        %v1708 = vadd.f32 %v1704, %v1707
        %vm1709 = vweird.f32 %v1703
        %vm1710 = vweird.f32 %v1704
        %vm1711 = vmor %vm1709, %vm1710
        %v1712 = vsel %vm1711, %v1704, %v1708
        %v1713 = vand.u32 2147483647, %v1703
        %vm1714 = vcmp.eq.f32.partialorder %v1713, 8.507059e+37
        %v1715 = vand.u32 %v1703, 2147483648
        %v1716 = vor.u32 1.1754944e-38, %v1715
        %v1717 = vsel %vm1714, %v1716, %v1712
        %v1718 = vmul.f32 1.0, %v1717
        %v1720 = vrot.slane %v1699, 2
        %v1722 = vtanh.pop %v1720
        %1724 = vrot.lane.b32.xlu0 %v1722, 64
        %v1725 = vpop.permute.xlu0 %1724
        %v1727 = vmul.f32 %v1718, %v1725
        %1729 = vrot.lane.b32.xlu0 %v1620, 96
        %v1730 = vpop.permute.xlu0 %1729
        %v1732 = vmul.f32 %v1718, %v1730
        %1734 = vrot.lane.b32.xlu0 %v1732, 64
        %v1735 = vpop.permute.xlu0 %1734
        %v1737 = vadd.f32 %v1727, %v1735
        %1738 = vrot.lane.b32.xlu0 %v1620, 64
        %v1739 = vpop.permute.xlu0 %1738
        %v1741 = vmul.f32 %v1718, %v1739
        %1743 = vrot.lane.b32.xlu0 %v1741, 32
        %v1744 = vpop.permute.xlu0 %1743
        %v1746 = vadd.f32 %v1737, %v1744
        %v1747 = vtanh.pop %v1746
        %1749 = vrot.lane.b32.xlu0 %v1747, 32
        %v1750 = vpop.permute.xlu0 %1749
        %v1752 = vmul.f32 %v1718, %v1750
        %1754 = vst [vmem:[#allocation1] ss:$4 sm:$0xff] %v1752
        %v1755 = vld.sshfl [vmem:[#allocation1] sm:$0xff pattern:$0x73625140]
        %1756 = vrot.lane.b32.xlu0 %v1755, 32
        %v1757 = vpop.permute.xlu0 %1756
        %1760 = vst [vmem:[#allocation1] ss:$4 sm:$0xff] %v1746
        %v1761 = vld.sshfl [vmem:[#allocation1] sm:$0xff pattern:$0x73625140]
        %1762 = vrot.lane.b32.xlu0 %v1761, 96
        %v1763 = vpop.permute.xlu0 %1762
        %v1765 = vsel %vm349, %v1757, %v1763
        %1766 = vst.msk [vmem:[#allocation4 + $0x8] sm:$0x1] %vm138, %v1765
        %1767 = vst.msk [vmem:[#allocation4 + $0x17] sm:$0x2] %vm352, %v1765
        %s1768 = sld [smem:[#allocation7 + %s142]]
        %s1769 = sld [smem:[#allocation7 + %s144]]
        %s1770 = scalar_lea.vmem [#allocation4], %s1768
        %v1771 = vld [vmem:[%s1770] sm:$0x1]
        %s1772 = scalar_lea.vmem [#allocation4], %s1769
        %v1773 = vld [vmem:[%s1772] sm:$0x1]
        %1775 = vrot.lane.b32.xlu0 %v1773, 32
        %v1776 = vpop.permute.xlu0 %1775
        %v1778 = vsel %vm349, %v1771, %v1776
        %1779 = vst.msk [vmem:[%s136] sm:$0x1] %vm138, %v1778
        %s1780 = sld [smem:[#allocation7 + %s174]]
        %s1781 = sld [smem:[#allocation7 + %s176]]
        %s1782 = sadd.s32 %s1780, 16
        %s1783 = scalar_lea.vmem [#allocation4], %s1782
        %v1784 = vld [vmem:[%s1783] sm:$0x1]
        %s1785 = sadd.s32 %s1781, 16
        %s1786 = scalar_lea.vmem [#allocation4], %s1785
        %v1787 = vld [vmem:[%s1786] sm:$0x1]
        %1789 = vrot.lane.b32.xlu0 %v1787, 32
        %v1790 = vpop.permute.xlu0 %1789
        %v1792 = vsel %vm349, %v1784, %v1790
        %1793 = vst.msk [vmem:[%s136 + $0x1] sm:$0x1] %vm138, %v1792
        %s1794 = sand.u32 %s81, 1
        %s1795 = scalar_lea.sflag [#allocation9], %s1794
        %s1796 = sand.u32 %s81, 1
        %s1797 = smul.addr %s1796, 2
        %s1798 = scalar_lea.vmem [#allocation8], %s1797
        // Predicated region
        $region29: #{tpu_custom_call.1} parent=27 // pred_check
          %p1799 = pneg %p91
        $region30: #{tpu_custom_call.1} parent=27 // pred_check_branch
          %1801 = sbr.rel (%p1799) target = $region32
        $region31: #{tpu_custom_call.1} parent=27 // pred_region
          %1803 = vsyncadd %s1795, 0
          %s1804 = smul.addr %s31, 2
          %s1805 = scalar_lea.hbm %s4, %s1804
          %s1807 = sshll.u32 %s1798, 4
          %s1808 = int_to_ptr.vmem [resolvable:$true] %s1807
          %s1809 = sshll.u32 %s1805, 4
          %s1810 = int_to_ptr.hbm [resolvable:$true] %s1809
          %1812 = dma.vmem_to_hbm [thread:$0]  %s1808, 32, %s1810, %s1795
        $region32: #{tpu_custom_call.1} parent=27 // pred_fallthru
          _
      $region28: #{tpu_custom_call.1} parent=5 // pred_fallthru
        _
      %p1813 = scmp.le.s32.totalorder 2, %s26
      // Predicated region
      $region33: #{tpu_custom_call.1} parent=5 // pred_check
        %p1814 = pneg %p1813
      $region34: #{tpu_custom_call.1} parent=5 // pred_check_branch
        %1816 = sbr.rel (%p1814) target = $region36
      $region35: #{tpu_custom_call.1} parent=5 // pred_region
        %s1817 = ssub.s32 %s26, 2
        // Predicated region
        $region37: #{tpu_custom_call.1} parent=35 // pred_check
          %p1818 = pneg %p97
        $region38: #{tpu_custom_call.1} parent=35 // pred_check_branch
          %1820 = sbr.rel (%p1818) target = $region40
        $region39: #{tpu_custom_call.1} parent=35 // pred_region
          %s1821 = sand.u32 %s82, 1
          %s1822 = scalar_lea.sflag [#allocation9], %s1821
          %s1823 = sand.u32 %s82, 1
          %s1824 = smul.addr %s1823, 2
          %s1825 = scalar_lea.vmem [#allocation8], %s1824
          %1827 = dma.done %s1822, 32
        $region40: #{tpu_custom_call.1} parent=35 // pred_fallthru
          _
      $region36: #{tpu_custom_call.1} parent=5 // pred_fallthru
        _
    $region6: #{tpu_custom_call.1} parent=1 // loop_footer
      %s30 = sadd.s32 1, %s26
    $region7: #{tpu_custom_call.1} parent=1 // loop_footer_branch
      %25 = sbr.rel target = $region3
    $region8: #{tpu_custom_call.1} parent=1 // loop_exit
      _
    %1828 = vsyncpa [#allocation9], 1
    %s1829 = scalar_lea.sflag [#allocation9], 1
    %1830 = vsyncpa %s1829, 1

</llo_original>
